<compile_context>
chip_gen: v6e
topology: v6e:2x2x1
jax: 0.10.0
libtpu: 0.0.40
codegen_flags: <defaults>
</compile_context>

<pallas_src>
import jax
import jax.numpy as jnp
from jax.experimental import pallas as pl
from jax.experimental.pallas import tpu as pltpu

# ---------------- configuration ----------------
N = 32                 # nodes per graph
E = 64                 # edges per graph
DIM_IN = 16            # raw node feature dim
EDGE_DIM_IN = 8        # raw edge feature dim
HIDDEN = 32            # cfg.gnn.dim_inner
NUM_CLUSTERS = 4       # cfg.gnn.num_clusters
NUM_LAYERS = 2         # cfg.gnn.layers_mp
DIM_OUT = 8            # dim_out
BN_EPS = 1e-5

GPB = 8                        # graphs packed per grid block
NB = GPB * N                   # nodes per block  (256 -> MXU-friendly M)
C_PB = GPB * NUM_CLUSTERS      # clusters per block (32)
NUM_BLOCKS = 4                 # grid size (>= 2 steps per TensorCore on v7x)
HEAD_PAD = 128                 # lane-dense padded output width

AFF_ROWS = 1 + 4 * NUM_LAYERS  # packed affine/bias buffer rows


def vgn_kernel(
    x_ref, adj_ref, eagg_ref, s_ref, stn_ref, pool_ref,
    enc_w_ref, lw_ref, aff_ref, head_w_ref, head_b_ref,
    out_ref,
):
    f32 = jnp.float32
    bf16 = jnp.bfloat16

    # ---------------- MaskEncoder (node) ----------------
    h = jnp.dot(x_ref[...], enc_w_ref[...], preferred_element_type=f32) + aff_ref[0:1, :]

    # edge encoder + destination aggregation was hoisted to XLA; one ref, reused per layer.
    e_agg = eagg_ref[...]                                  # [NB, HIDDEN] bf16

    adj = adj_ref[...]                                     # [GPB, N, N] bf16 (per-graph)
    s = s_ref[...]                                         # [NB, C_PB]  bf16 one-hot
    stn = stn_ref[...]                                     # [C_PB, NB]  bf16, S^T with 1/count folded

    # ---------------- VGNConvLayer stack ----------------
    for l in range(NUM_LAYERS):
        base = 1 + 4 * l
        gin_scale = aff_ref[base + 0: base + 1, :]         # (1 + eps)
        b1 = aff_ref[base + 1: base + 2, :]
        b2 = aff_ref[base + 2: base + 3, :]                # BatchNorm folded in
        bc = aff_ref[base + 3: base + 4, :]

        h_in = h
        hb = h.astype(bf16)                                # single producer-side cast

        # GIN message: per-graph adjacency contraction (no structural-zero K blocks)
        msg = jnp.einsum(
            'gij,gjh->gih', adj, hb.reshape(GPB, N, HIDDEN),
            preferred_element_type=f32,
        ).reshape(NB, HIDDEN) + e_agg

        # GIN MLP: Linear -> ReLU -> Linear (BN folded into second Linear) -> ReLU
        z = (gin_scale * h + msg).astype(bf16)
        z = jnp.maximum(
            jnp.dot(z, lw_ref[3 * l + 0], preferred_element_type=f32) + b1, 0.0)
        z = jnp.dot(z.astype(bf16), lw_ref[3 * l + 1], preferred_element_type=f32) + b2
        z = jnp.maximum(z, 0.0)
        # dropout: identity (eval mode)
        zb = z.astype(bf16)

        # virtual cluster nodes: normalized cluster pool -> Linear -> ReLU -> scatter back
        c = jnp.dot(stn, zb, preferred_element_type=f32)                           # [C_PB, H]
        c = jnp.dot(c.astype(bf16), lw_ref[3 * l + 2], preferred_element_type=f32) + bc
        c = jnp.maximum(c, 0.0)
        z = z + jnp.dot(s, c.astype(bf16), preferred_element_type=f32)

        h = z + h_in                                       # residual

    # ---------------- GNN head: per-graph mean pool + Linear (lane-dense padded) ----------------
    g = jnp.dot(pool_ref[...], h.astype(bf16), preferred_element_type=f32)         # [GPB, HIDDEN]
    out_ref[...] = (jnp.dot(g.astype(bf16), head_w_ref[...], preferred_element_type=f32)
                    + head_b_ref[...])                                             # [GPB, HEAD_PAD]


def vgn_model(x, adj, e_agg, s, stn, pool, kp):
    num_blocks = x.shape[0] // NB

    args = (
        x, adj, e_agg, s, stn, pool,
        kp["enc_w"], kp["lw"], kp["aff"], kp["head_w"], kp["head_b"],
    )

    in_specs = [
        pl.BlockSpec((NB, DIM_IN), lambda i: (i, 0)),                       # x
        pl.BlockSpec((GPB, N, N), lambda i: (i, 0, 0)),                     # adj (per-graph)
        pl.BlockSpec((NB, HIDDEN), lambda i: (i, 0)),                       # e_agg (hoisted)
        pl.BlockSpec((NB, C_PB), lambda i: (i, 0)),                         # s
        pl.BlockSpec((C_PB, NB), lambda i: (i, 0)),                         # stn
        pl.BlockSpec((GPB, NB), lambda i: (i, 0)),                          # pool
        pl.BlockSpec((DIM_IN, HIDDEN), lambda i: (0, 0)),                   # enc_w
        pl.BlockSpec((3 * NUM_LAYERS, HIDDEN, HIDDEN), lambda i: (0, 0, 0)),  # lw (w1,w2',wc)
        pl.BlockSpec((AFF_ROWS, HIDDEN), lambda i: (0, 0)),                 # aff (biases/scales)
        pl.BlockSpec((HIDDEN, HEAD_PAD), lambda i: (0, 0)),                 # head_w
        pl.BlockSpec((1, HEAD_PAD), lambda i: (0, 0)),                      # head_b
    ]
    out_specs = pl.BlockSpec((GPB, HEAD_PAD), lambda i: (i, 0))

    # --- advisory cost estimate so XLA can schedule/overlap the call ---
    mm = lambda m, k, n: 2 * m * k * n
    per_block = (
        mm(NB, DIM_IN, HIDDEN)
        + NUM_LAYERS * (
            GPB * mm(N, N, HIDDEN)                        # batched adj @ h
            + 2 * mm(NB, HIDDEN, HIDDEN)                  # GIN MLP
            + mm(C_PB, NB, HIDDEN) + mm(C_PB, HIDDEN, HIDDEN) + mm(NB, C_PB, HIDDEN)
            + 12 * NB * HIDDEN                            # elementwise epilogue (approx)
        )
        + mm(GPB, NB, HIDDEN) + mm(GPB, HIDDEN, HEAD_PAD)
    )
    flops = num_blocks * per_block
    bytes_accessed = int(sum(int(a.size) * a.dtype.itemsize for a in args)) \
        + num_blocks * GPB * HEAD_PAD * 4

    out = pl.pallas_call(
        vgn_kernel,
        out_shape=jax.ShapeDtypeStruct((num_blocks * GPB, HEAD_PAD), jnp.float32),
        grid_spec=pltpu.PrefetchScalarGridSpec(
            num_scalar_prefetch=0,
            grid=(num_blocks,),
            in_specs=in_specs,
            out_specs=out_specs,
        ),
        compiler_params=pltpu.CompilerParams(dimension_semantics=("parallel",)),
        cost_estimate=pl.CostEstimate(flops=flops, transcendentals=0,
                                      bytes_accessed=bytes_accessed),
    )(*args)

    return out[:, :DIM_OUT]   # strip the lane padding


def init_params(key):
    def dense(k, shape, fan_in):
        return jax.random.normal(k, shape, jnp.float32) / jnp.sqrt(float(fan_in))

    ks = jax.random.split(key, 10)
    return {
        "node_w": dense(ks[0], (DIM_IN, HIDDEN), DIM_IN),
        "node_b": jnp.zeros((1, HIDDEN), jnp.float32),
        "edge_w": dense(ks[1], (EDGE_DIM_IN, HIDDEN), EDGE_DIM_IN),
        "edge_b": jnp.zeros((1, HIDDEN), jnp.float32),
        "w1": dense(ks[2], (NUM_LAYERS, HIDDEN, HIDDEN), HIDDEN),
        "b1": jnp.zeros((NUM_LAYERS, 1, HIDDEN), jnp.float32),
        "w2": dense(ks[3], (NUM_LAYERS, HIDDEN, HIDDEN), HIDDEN),
        "b2": jnp.zeros((NUM_LAYERS, 1, HIDDEN), jnp.float32),
        "gamma": jnp.ones((NUM_LAYERS, 1, HIDDEN), jnp.float32),
        "beta": jnp.zeros((NUM_LAYERS, 1, HIDDEN), jnp.float32),
        "running_mean": 0.1 * jax.random.normal(ks[4], (NUM_LAYERS, 1, HIDDEN), jnp.float32),
        "running_var": 1.0 + 0.1 * jax.random.uniform(ks[5], (NUM_LAYERS, 1, HIDDEN), jnp.float32),
        "wc": dense(ks[6], (NUM_LAYERS, HIDDEN, HIDDEN), HIDDEN),
        "bc": jnp.zeros((NUM_LAYERS, 1, HIDDEN), jnp.float32),
        "w_head": dense(ks[7], (HIDDEN, DIM_OUT), HIDDEN),
        "b_head": jnp.zeros((1, DIM_OUT), jnp.float32),
        "eps": jnp.zeros((NUM_LAYERS,), jnp.float32),   # GIN eps init (train_eps)
    }


def prepare_kernel_params(p):
    """Host-side folding and packing:
       * eval-mode BN folded into the second GIN Linear (w2' = w2*bn_scale, b2' = ...)
       * per-layer matmul weights packed into one [3L, H, H] bf16 buffer
       * all per-row biases/scales packed into one [1+4L, H] f32 buffer
       * head weight/bias zero-padded to a lane-dense width of 128
    """
    bf16 = jnp.bfloat16
    f32 = jnp.float32

    bn_scale = p["gamma"] / jnp.sqrt(p["running_var"] + BN_EPS)      # [L,1,H]
    bn_shift = p["beta"] - p["running_mean"] * bn_scale
    w2_folded = p["w2"] * bn_scale                                   # scale output columns
    b2_folded = p["b2"] * bn_scale + bn_shift
    gin_scale = (jnp.ones((NUM_LAYERS, 1, HIDDEN), f32)
                 * (1.0 + p["eps"])[:, None, None])

    aff_rows = [p["node_b"]]
    for l in range(NUM_LAYERS):
        aff_rows += [gin_scale[l], p["b1"][l], b2_folded[l], p["bc"][l]]
    aff = jnp.concatenate(aff_rows, axis=0).astype(f32)              # [1+4L, H]

    lw = jnp.stack([p["w1"], w2_folded, p["wc"]], axis=1)            # [L,3,H,H]
    lw = lw.reshape(3 * NUM_LAYERS, HIDDEN, HIDDEN).astype(bf16)

    head_w = jnp.zeros((HIDDEN, HEAD_PAD), f32).at[:, :DIM_OUT].set(p["w_head"]).astype(bf16)
    head_b = jnp.zeros((1, HEAD_PAD), f32).at[:, :DIM_OUT].set(p["b_head"])

    return {
        "enc_w": p["node_w"].astype(bf16),
        "lw": lw, "aff": aff,
        "head_w": head_w, "head_b": head_b,
        # kept in f32 for the hoisted (XLA-side) edge aggregation
        "edge_w": p["edge_w"], "edge_b": p["edge_b"],
    }


def precompute_edge_aggregation(eattr, dst_rows, num_nodes, edge_w, edge_b):
    """Hoisted edge MaskEncoder + destination scatter-sum (plain XLA, outside the kernel).
       Valid because the edge encoder is purely linear: sum_dst(e @ W + b) is exact."""
    edge_emb = eattr @ edge_w + edge_b                               # [E_total, H]
    return jnp.zeros((num_nodes, HIDDEN), jnp.float32).at[dst_rows].add(edge_emb)


if __name__ == "__main__":
    key = jax.random.PRNGKey(0)
    k_x, k_e, k_src, k_dst, k_cl, k_p = jax.random.split(key, 6)

    B = NUM_BLOCKS * GPB          # total graphs (32)
    TOTAL_NODES = B * N
    TOTAL_EDGES = B * E

    # raw features (stacked per graph: node row = graph*N + local, edge row = graph*E + local)
    x = jax.random.normal(k_x, (TOTAL_NODES, DIM_IN), jnp.float32)
    eattr = jax.random.normal(k_e, (TOTAL_EDGES, EDGE_DIM_IN), jnp.float32)

    # random per-graph edges
    src = jax.random.randint(k_src, (TOTAL_EDGES,), 0, N)
    dst = jax.random.randint(k_dst, (TOTAL_EDGES,), 0, N)
    g_e = jnp.repeat(jnp.arange(B), E)                    # graph id of each edge
    dst_rows = g_e * N + dst                              # stacked destination node rows

    # per-graph dense adjacency [B, N, N]: adj[g, dst, src] += 1
    adj = jnp.zeros((B, N, N), jnp.float32).at[g_e, dst, src].add(1.0)

    # cluster (virtual node) membership, offset per graph within each block
    cluster = jax.random.randint(k_cl, (TOTAL_NODES,), 0, NUM_CLUSTERS)
    g_n = jnp.repeat(jnp.arange(B), N)
    gin_n = g_n % GPB
    s = jax.nn.one_hot(gin_n * NUM_CLUSTERS + cluster, C_PB, dtype=jnp.float32)  # [TOTAL_NODES, C_PB]
    s_r = s.reshape(NUM_BLOCKS, NB, C_PB)
    cnt = jnp.maximum(s_r.sum(axis=1, keepdims=True), 1.0)
    stn = (s_r / cnt).transpose(0, 2, 1).reshape(NUM_BLOCKS * C_PB, NB)          # S^T with 1/count folded

    # per-graph mean-pool matrix for the head
    pool_blk = jnp.kron(jnp.eye(GPB, dtype=jnp.float32),
                        jnp.full((1, N), 1.0 / N, jnp.float32))                  # [GPB, NB]
    pool = jnp.tile(pool_blk, (NUM_BLOCKS, 1))                                   # [NUM_BLOCKS*GPB, NB]

    params = init_params(k_p)
    kp = prepare_kernel_params(params)

    # hoisted edge encoder + aggregation (plain XLA op, feeds the kernel as one input)
    e_agg = precompute_edge_aggregation(eattr, dst_rows, TOTAL_NODES,
                                        kp["edge_w"], kp["edge_b"])

    bf16 = jnp.bfloat16
    out = vgn_model(
        x.astype(bf16), adj.astype(bf16), e_agg.astype(bf16),
        s.astype(bf16), stn.astype(bf16), pool.astype(bf16), kp,
    )
    out = jax.block_until_ready(out)
    assert out.shape == (B, DIM_OUT) and out.dtype == jnp.float32
    print("KERNEL_OK")
</pallas_src>

<mosaic_0001>
module attributes {stable_mosaic.version = 11 : i64} {
  func.func @vgn_kernel(%arg0: i32, %arg1: memref<256x16xbf16, #tpu.memory_space<vmem>>, %arg2: memref<8x32x32xbf16, #tpu.memory_space<vmem>>, %arg3: memref<256x32xbf16, #tpu.memory_space<vmem>>, %arg4: memref<256x32xbf16, #tpu.memory_space<vmem>>, %arg5: memref<32x256xbf16, #tpu.memory_space<vmem>>, %arg6: memref<8x256xbf16, #tpu.memory_space<vmem>>, %arg7: memref<16x32xbf16, #tpu.memory_space<vmem>>, %arg8: memref<6x32x32xbf16, #tpu.memory_space<vmem>>, %arg9: memref<9x32xf32, #tpu.memory_space<vmem>>, %arg10: memref<32x128xbf16, #tpu.memory_space<vmem>>, %arg11: memref<1x128xf32, #tpu.memory_space<vmem>>, %arg12: memref<8x128xf32, #tpu.memory_space<vmem>>) attributes {dimension_semantics = [#tpu.dimension_semantics<parallel>], iteration_bounds = array<i64: 4>, scalar_prefetch = 0 : i64, scratch_operands = 0 : i64, tpu.core_type = #tpu.core_type<tc>, window_params = [{transform_indices = @transform_0, window_bounds = array<i64: 256, 16>}, {transform_indices = @transform_1, window_bounds = array<i64: 8, 32, 32>}, {transform_indices = @transform_2, window_bounds = array<i64: 256, 32>}, {transform_indices = @transform_3, window_bounds = array<i64: 256, 32>}, {transform_indices = @transform_4, window_bounds = array<i64: 32, 256>}, {transform_indices = @transform_5, window_bounds = array<i64: 8, 256>}, {pipeline_mode = #tpu.pipeline_mode<synchronous>, transform_indices = @transform_6, window_bounds = array<i64: 16, 32>}, {pipeline_mode = #tpu.pipeline_mode<synchronous>, transform_indices = @transform_7, window_bounds = array<i64: 6, 32, 32>}, {pipeline_mode = #tpu.pipeline_mode<synchronous>, transform_indices = @transform_8, window_bounds = array<i64: 9, 32>}, {pipeline_mode = #tpu.pipeline_mode<synchronous>, transform_indices = @transform_9, window_bounds = array<i64: 32, 128>}, {pipeline_mode = #tpu.pipeline_mode<synchronous>, transform_indices = @transform_10, window_bounds = array<i64: 1, 128>}, {transform_indices = @transform_11, window_bounds = array<i64: 8, 128>}]} {
    %c0 = arith.constant 0 : index
    %c0_0 = arith.constant 0 : index
    %0 = vector.load %arg1[%c0, %c0_0] : memref<256x16xbf16, #tpu.memory_space<vmem>>, vector<256x16xbf16>
    %c0_1 = arith.constant 0 : index
    %c0_2 = arith.constant 0 : index
    %1 = vector.load %arg7[%c0_1, %c0_2] : memref<16x32xbf16, #tpu.memory_space<vmem>>, vector<16x32xbf16>
    %cst = arith.constant dense<0.000000e+00> : vector<256x32xf32>
    %2 = tpu.matmul %0, %1, %cst {dimension_numbers = #tpu.dot_dimension_numbers<[1], [0], [0], [1], [0, 0, 1, 1], [], []>} : vector<256x16xbf16>, vector<16x32xbf16>, vector<256x32xf32> -> vector<256x32xf32>
    %c0_3 = arith.constant 0 : index
    %c0_4 = arith.constant 0 : index
    %3 = vector.load %arg9[%c0_3, %c0_4] : memref<9x32xf32, #tpu.memory_space<vmem>>, vector<1x32xf32>
    %4 = vector.broadcast %3 : vector<1x32xf32> to vector<256x32xf32>
    %5 = arith.addf %2, %4 : vector<256x32xf32>
    %c0_5 = arith.constant 0 : index
    %c0_6 = arith.constant 0 : index
    %6 = vector.load %arg3[%c0_5, %c0_6] : memref<256x32xbf16, #tpu.memory_space<vmem>>, vector<256x32xbf16>
    %c0_7 = arith.constant 0 : index
    %c0_8 = arith.constant 0 : index
    %c0_9 = arith.constant 0 : index
    %7 = vector.load %arg2[%c0_7, %c0_8, %c0_9] : memref<8x32x32xbf16, #tpu.memory_space<vmem>>, vector<8x32x32xbf16>
    %c0_10 = arith.constant 0 : index
    %c0_11 = arith.constant 0 : index
    %8 = vector.load %arg4[%c0_10, %c0_11] : memref<256x32xbf16, #tpu.memory_space<vmem>>, vector<256x32xbf16>
    %c0_12 = arith.constant 0 : index
    %c0_13 = arith.constant 0 : index
    %9 = vector.load %arg5[%c0_12, %c0_13] : memref<32x256xbf16, #tpu.memory_space<vmem>>, vector<32x256xbf16>
    %c1 = arith.constant 1 : index
    %c0_14 = arith.constant 0 : index
    %10 = vector.load %arg9[%c1, %c0_14] : memref<9x32xf32, #tpu.memory_space<vmem>>, vector<1x32xf32>
    %c2 = arith.constant 2 : index
    %c0_15 = arith.constant 0 : index
    %11 = vector.load %arg9[%c2, %c0_15] : memref<9x32xf32, #tpu.memory_space<vmem>>, vector<1x32xf32>
    %c3 = arith.constant 3 : index
    %c0_16 = arith.constant 0 : index
    %12 = vector.load %arg9[%c3, %c0_16] : memref<9x32xf32, #tpu.memory_space<vmem>>, vector<1x32xf32>
    %c4 = arith.constant 4 : index
    %c0_17 = arith.constant 0 : index
    %13 = vector.load %arg9[%c4, %c0_17] : memref<9x32xf32, #tpu.memory_space<vmem>>, vector<1x32xf32>
    %14 = arith.truncf %5 : vector<256x32xf32> to vector<256x32xbf16>
    %15 = vector.shape_cast %14 : vector<256x32xbf16> to vector<8x32x32xbf16>
    "tpu.trace_start"() <{level = 10 : i32, message = "gij,gjh->gih"}> : () -> ()
    %cst_18 = arith.constant dense<0.000000e+00> : vector<8x32x32xf32>
    %16 = tpu.matmul %7, %15, %cst_18 {dimension_numbers = #tpu.dot_dimension_numbers<[2], [1], [1], [2], [0, 0, 0, 1, 1, 2], [0], [0]>} : vector<8x32x32xbf16>, vector<8x32x32xbf16>, vector<8x32x32xf32> -> vector<8x32x32xf32>
    "tpu.trace_stop"() : () -> ()
    %17 = vector.shape_cast %16 : vector<8x32x32xf32> to vector<256x32xf32>
    %18 = arith.extf %6 : vector<256x32xbf16> to vector<256x32xf32>
    %19 = arith.addf %17, %18 : vector<256x32xf32>
    %20 = vector.broadcast %10 : vector<1x32xf32> to vector<256x32xf32>
    %21 = arith.mulf %20, %5 : vector<256x32xf32>
    %22 = arith.addf %21, %19 : vector<256x32xf32>
    %23 = arith.truncf %22 : vector<256x32xf32> to vector<256x32xbf16>
    %c0_19 = arith.constant 0 : index
    %c0_20 = arith.constant 0 : index
    %c0_21 = arith.constant 0 : index
    %24 = vector.load %arg8[%c0_19, %c0_20, %c0_21] : memref<6x32x32xbf16, #tpu.memory_space<vmem>>, vector<1x32x32xbf16>
    %25 = vector.shape_cast %24 : vector<1x32x32xbf16> to vector<32x32xbf16>
    %cst_22 = arith.constant dense<0.000000e+00> : vector<256x32xf32>
    %26 = tpu.matmul %23, %25, %cst_22 {dimension_numbers = #tpu.dot_dimension_numbers<[1], [0], [0], [1], [0, 0, 1, 1], [], []>} : vector<256x32xbf16>, vector<32x32xbf16>, vector<256x32xf32> -> vector<256x32xf32>
    %27 = vector.broadcast %11 : vector<1x32xf32> to vector<256x32xf32>
    %28 = arith.addf %26, %27 : vector<256x32xf32>
    %cst_23 = arith.constant 0.000000e+00 : f32
    %29 = vector.broadcast %cst_23 : f32 to vector<256x32xf32>
    %30 = arith.maximumf %28, %29 : vector<256x32xf32>
    %31 = arith.truncf %30 : vector<256x32xf32> to vector<256x32xbf16>
    %c1_24 = arith.constant 1 : index
    %c0_25 = arith.constant 0 : index
    %c0_26 = arith.constant 0 : index
    %32 = vector.load %arg8[%c1_24, %c0_25, %c0_26] : memref<6x32x32xbf16, #tpu.memory_space<vmem>>, vector<1x32x32xbf16>
    %33 = vector.shape_cast %32 : vector<1x32x32xbf16> to vector<32x32xbf16>
    %cst_27 = arith.constant dense<0.000000e+00> : vector<256x32xf32>
    %34 = tpu.matmul %31, %33, %cst_27 {dimension_numbers = #tpu.dot_dimension_numbers<[1], [0], [0], [1], [0, 0, 1, 1], [], []>} : vector<256x32xbf16>, vector<32x32xbf16>, vector<256x32xf32> -> vector<256x32xf32>
    %35 = vector.broadcast %12 : vector<1x32xf32> to vector<256x32xf32>
    %36 = arith.addf %34, %35 : vector<256x32xf32>
    %cst_28 = arith.constant 0.000000e+00 : f32
    %37 = vector.broadcast %cst_28 : f32 to vector<256x32xf32>
    %38 = arith.maximumf %36, %37 : vector<256x32xf32>
    %39 = arith.truncf %38 : vector<256x32xf32> to vector<256x32xbf16>
    %cst_29 = arith.constant dense<0.000000e+00> : vector<32x32xf32>
    %40 = tpu.matmul %9, %39, %cst_29 {dimension_numbers = #tpu.dot_dimension_numbers<[1], [0], [0], [1], [0, 0, 1, 1], [], []>} : vector<32x256xbf16>, vector<256x32xbf16>, vector<32x32xf32> -> vector<32x32xf32>
    %41 = arith.truncf %40 : vector<32x32xf32> to vector<32x32xbf16>
    %c2_30 = arith.constant 2 : index
    %c0_31 = arith.constant 0 : index
    %c0_32 = arith.constant 0 : index
    %42 = vector.load %arg8[%c2_30, %c0_31, %c0_32] : memref<6x32x32xbf16, #tpu.memory_space<vmem>>, vector<1x32x32xbf16>
    %43 = vector.shape_cast %42 : vector<1x32x32xbf16> to vector<32x32xbf16>
    %cst_33 = arith.constant dense<0.000000e+00> : vector<32x32xf32>
    %44 = tpu.matmul %41, %43, %cst_33 {dimension_numbers = #tpu.dot_dimension_numbers<[1], [0], [0], [1], [0, 0, 1, 1], [], []>} : vector<32x32xbf16>, vector<32x32xbf16>, vector<32x32xf32> -> vector<32x32xf32>
    %45 = vector.broadcast %13 : vector<1x32xf32> to vector<32x32xf32>
    %46 = arith.addf %44, %45 : vector<32x32xf32>
    %cst_34 = arith.constant 0.000000e+00 : f32
    %47 = vector.broadcast %cst_34 : f32 to vector<32x32xf32>
    %48 = arith.maximumf %46, %47 : vector<32x32xf32>
    %49 = arith.truncf %48 : vector<32x32xf32> to vector<32x32xbf16>
    %cst_35 = arith.constant dense<0.000000e+00> : vector<256x32xf32>
    %50 = tpu.matmul %8, %49, %cst_35 {dimension_numbers = #tpu.dot_dimension_numbers<[1], [0], [0], [1], [0, 0, 1, 1], [], []>} : vector<256x32xbf16>, vector<32x32xbf16>, vector<256x32xf32> -> vector<256x32xf32>
    %51 = arith.addf %38, %50 : vector<256x32xf32>
    %52 = arith.addf %51, %5 : vector<256x32xf32>
    %c5 = arith.constant 5 : index
    %c0_36 = arith.constant 0 : index
    %53 = vector.load %arg9[%c5, %c0_36] : memref<9x32xf32, #tpu.memory_space<vmem>>, vector<1x32xf32>
    %c6 = arith.constant 6 : index
    %c0_37 = arith.constant 0 : index
    %54 = vector.load %arg9[%c6, %c0_37] : memref<9x32xf32, #tpu.memory_space<vmem>>, vector<1x32xf32>
    %c7 = arith.constant 7 : index
    %c0_38 = arith.constant 0 : index
    %55 = vector.load %arg9[%c7, %c0_38] : memref<9x32xf32, #tpu.memory_space<vmem>>, vector<1x32xf32>
    %c8 = arith.constant 8 : index
    %c0_39 = arith.constant 0 : index
    %56 = vector.load %arg9[%c8, %c0_39] : memref<9x32xf32, #tpu.memory_space<vmem>>, vector<1x32xf32>
    %57 = arith.truncf %52 : vector<256x32xf32> to vector<256x32xbf16>
    %58 = vector.shape_cast %57 : vector<256x32xbf16> to vector<8x32x32xbf16>
    "tpu.trace_start"() <{level = 10 : i32, message = "gij,gjh->gih"}> : () -> ()
    %cst_40 = arith.constant dense<0.000000e+00> : vector<8x32x32xf32>
    %59 = tpu.matmul %7, %58, %cst_40 {dimension_numbers = #tpu.dot_dimension_numbers<[2], [1], [1], [2], [0, 0, 0, 1, 1, 2], [0], [0]>} : vector<8x32x32xbf16>, vector<8x32x32xbf16>, vector<8x32x32xf32> -> vector<8x32x32xf32>
    "tpu.trace_stop"() : () -> ()
    %60 = vector.shape_cast %59 : vector<8x32x32xf32> to vector<256x32xf32>
    %61 = arith.extf %6 : vector<256x32xbf16> to vector<256x32xf32>
    %62 = arith.addf %60, %61 : vector<256x32xf32>
    %63 = vector.broadcast %53 : vector<1x32xf32> to vector<256x32xf32>
    %64 = arith.mulf %63, %52 : vector<256x32xf32>
    %65 = arith.addf %64, %62 : vector<256x32xf32>
    %66 = arith.truncf %65 : vector<256x32xf32> to vector<256x32xbf16>
    %c3_41 = arith.constant 3 : index
    %c0_42 = arith.constant 0 : index
    %c0_43 = arith.constant 0 : index
    %67 = vector.load %arg8[%c3_41, %c0_42, %c0_43] : memref<6x32x32xbf16, #tpu.memory_space<vmem>>, vector<1x32x32xbf16>
    %68 = vector.shape_cast %67 : vector<1x32x32xbf16> to vector<32x32xbf16>
    %cst_44 = arith.constant dense<0.000000e+00> : vector<256x32xf32>
    %69 = tpu.matmul %66, %68, %cst_44 {dimension_numbers = #tpu.dot_dimension_numbers<[1], [0], [0], [1], [0, 0, 1, 1], [], []>} : vector<256x32xbf16>, vector<32x32xbf16>, vector<256x32xf32> -> vector<256x32xf32>
    %70 = vector.broadcast %54 : vector<1x32xf32> to vector<256x32xf32>
    %71 = arith.addf %69, %70 : vector<256x32xf32>
    %cst_45 = arith.constant 0.000000e+00 : f32
    %72 = vector.broadcast %cst_45 : f32 to vector<256x32xf32>
    %73 = arith.maximumf %71, %72 : vector<256x32xf32>
    %74 = arith.truncf %73 : vector<256x32xf32> to vector<256x32xbf16>
    %c4_46 = arith.constant 4 : index
    %c0_47 = arith.constant 0 : index
    %c0_48 = arith.constant 0 : index
    %75 = vector.load %arg8[%c4_46, %c0_47, %c0_48] : memref<6x32x32xbf16, #tpu.memory_space<vmem>>, vector<1x32x32xbf16>
    %76 = vector.shape_cast %75 : vector<1x32x32xbf16> to vector<32x32xbf16>
    %cst_49 = arith.constant dense<0.000000e+00> : vector<256x32xf32>
    %77 = tpu.matmul %74, %76, %cst_49 {dimension_numbers = #tpu.dot_dimension_numbers<[1], [0], [0], [1], [0, 0, 1, 1], [], []>} : vector<256x32xbf16>, vector<32x32xbf16>, vector<256x32xf32> -> vector<256x32xf32>
    %78 = vector.broadcast %55 : vector<1x32xf32> to vector<256x32xf32>
    %79 = arith.addf %77, %78 : vector<256x32xf32>
    %cst_50 = arith.constant 0.000000e+00 : f32
    %80 = vector.broadcast %cst_50 : f32 to vector<256x32xf32>
    %81 = arith.maximumf %79, %80 : vector<256x32xf32>
    %82 = arith.truncf %81 : vector<256x32xf32> to vector<256x32xbf16>
    %cst_51 = arith.constant dense<0.000000e+00> : vector<32x32xf32>
    %83 = tpu.matmul %9, %82, %cst_51 {dimension_numbers = #tpu.dot_dimension_numbers<[1], [0], [0], [1], [0, 0, 1, 1], [], []>} : vector<32x256xbf16>, vector<256x32xbf16>, vector<32x32xf32> -> vector<32x32xf32>
    %84 = arith.truncf %83 : vector<32x32xf32> to vector<32x32xbf16>
    %c5_52 = arith.constant 5 : index
    %c0_53 = arith.constant 0 : index
    %c0_54 = arith.constant 0 : index
    %85 = vector.load %arg8[%c5_52, %c0_53, %c0_54] : memref<6x32x32xbf16, #tpu.memory_space<vmem>>, vector<1x32x32xbf16>
    %86 = vector.shape_cast %85 : vector<1x32x32xbf16> to vector<32x32xbf16>
    %cst_55 = arith.constant dense<0.000000e+00> : vector<32x32xf32>
    %87 = tpu.matmul %84, %86, %cst_55 {dimension_numbers = #tpu.dot_dimension_numbers<[1], [0], [0], [1], [0, 0, 1, 1], [], []>} : vector<32x32xbf16>, vector<32x32xbf16>, vector<32x32xf32> -> vector<32x32xf32>
    %88 = vector.broadcast %56 : vector<1x32xf32> to vector<32x32xf32>
    %89 = arith.addf %87, %88 : vector<32x32xf32>
    %cst_56 = arith.constant 0.000000e+00 : f32
    %90 = vector.broadcast %cst_56 : f32 to vector<32x32xf32>
    %91 = arith.maximumf %89, %90 : vector<32x32xf32>
    %92 = arith.truncf %91 : vector<32x32xf32> to vector<32x32xbf16>
    %cst_57 = arith.constant dense<0.000000e+00> : vector<256x32xf32>
    %93 = tpu.matmul %8, %92, %cst_57 {dimension_numbers = #tpu.dot_dimension_numbers<[1], [0], [0], [1], [0, 0, 1, 1], [], []>} : vector<256x32xbf16>, vector<32x32xbf16>, vector<256x32xf32> -> vector<256x32xf32>
    %94 = arith.addf %81, %93 : vector<256x32xf32>
    %95 = arith.addf %94, %52 : vector<256x32xf32>
    %c0_58 = arith.constant 0 : index
    %c0_59 = arith.constant 0 : index
    %96 = vector.load %arg6[%c0_58, %c0_59] : memref<8x256xbf16, #tpu.memory_space<vmem>>, vector<8x256xbf16>
    %97 = arith.truncf %95 : vector<256x32xf32> to vector<256x32xbf16>
    %cst_60 = arith.constant dense<0.000000e+00> : vector<8x32xf32>
    %98 = tpu.matmul %96, %97, %cst_60 {dimension_numbers = #tpu.dot_dimension_numbers<[1], [0], [0], [1], [0, 0, 1, 1], [], []>} : vector<8x256xbf16>, vector<256x32xbf16>, vector<8x32xf32> -> vector<8x32xf32>
    %99 = arith.truncf %98 : vector<8x32xf32> to vector<8x32xbf16>
    %c0_61 = arith.constant 0 : index
    %c0_62 = arith.constant 0 : index
    %100 = vector.load %arg10[%c0_61, %c0_62] : memref<32x128xbf16, #tpu.memory_space<vmem>>, vector<32x128xbf16>
    %cst_63 = arith.constant dense<0.000000e+00> : vector<8x128xf32>
    %101 = tpu.matmul %99, %100, %cst_63 {dimension_numbers = #tpu.dot_dimension_numbers<[1], [0], [0], [1], [0, 0, 1, 1], [], []>} : vector<8x32xbf16>, vector<32x128xbf16>, vector<8x128xf32> -> vector<8x128xf32>
    %c0_64 = arith.constant 0 : index
    %c0_65 = arith.constant 0 : index
    %102 = vector.load %arg11[%c0_64, %c0_65] : memref<1x128xf32, #tpu.memory_space<vmem>>, vector<1x128xf32>
    %103 = vector.broadcast %102 : vector<1x128xf32> to vector<8x128xf32>
    %104 = arith.addf %101, %103 : vector<8x128xf32>
    %c0_66 = arith.constant 0 : index
    %c0_67 = arith.constant 0 : index
    %105 = vector.load %arg12[%c0_66, %c0_67] : memref<8x128xf32, #tpu.memory_space<vmem>>, vector<8x128xf32>
    tpu.vector_store %arg12[%c0_66, %c0_67], %104 {strides = array<i32>} : memref<8x128xf32, #tpu.memory_space<vmem>>, vector<8x128xf32>,
    return
  }
  func.func @transform_0(%arg0: i32) -> (i32, i32) {
    %c0_i32 = arith.constant 0 : i32
    %c0_i32_0 = arith.constant 0 : i32
    return %arg0, %c0_i32 : i32, i32
  }
  func.func @transform_1(%arg0: i32) -> (i32, i32, i32) {
    %c0_i32 = arith.constant 0 : i32
    %c0_i32_0 = arith.constant 0 : i32
    %c0_i32_1 = arith.constant 0 : i32
    return %arg0, %c0_i32, %c0_i32_0 : i32, i32, i32
  }
  func.func @transform_2(%arg0: i32) -> (i32, i32) {
    %c0_i32 = arith.constant 0 : i32
    %c0_i32_0 = arith.constant 0 : i32
    return %arg0, %c0_i32 : i32, i32
  }
  func.func @transform_3(%arg0: i32) -> (i32, i32) {
    %c0_i32 = arith.constant 0 : i32
    %c0_i32_0 = arith.constant 0 : i32
    return %arg0, %c0_i32 : i32, i32
  }
  func.func @transform_4(%arg0: i32) -> (i32, i32) {
    %c0_i32 = arith.constant 0 : i32
    %c0_i32_0 = arith.constant 0 : i32
    return %arg0, %c0_i32 : i32, i32
  }
  func.func @transform_5(%arg0: i32) -> (i32, i32) {
    %c0_i32 = arith.constant 0 : i32
    %c0_i32_0 = arith.constant 0 : i32
    return %arg0, %c0_i32 : i32, i32
  }
  func.func @transform_6(%arg0: i32) -> (i32, i32) {
    %c0_i32 = arith.constant 0 : i32
    %c0_i32_0 = arith.constant 0 : i32
    %c0_i32_1 = arith.constant 0 : i32
    return %c0_i32, %c0_i32_0 : i32, i32
  }
  func.func @transform_7(%arg0: i32) -> (i32, i32, i32) {
    %c0_i32 = arith.constant 0 : i32
    %c0_i32_0 = arith.constant 0 : i32
    %c0_i32_1 = arith.constant 0 : i32
    %c0_i32_2 = arith.constant 0 : i32
    return %c0_i32, %c0_i32_0, %c0_i32_1 : i32, i32, i32
  }
  func.func @transform_8(%arg0: i32) -> (i32, i32) {
    %c0_i32 = arith.constant 0 : i32
    %c0_i32_0 = arith.constant 0 : i32
    %c0_i32_1 = arith.constant 0 : i32
    return %c0_i32, %c0_i32_0 : i32, i32
  }
  func.func @transform_9(%arg0: i32) -> (i32, i32) {
    %c0_i32 = arith.constant 0 : i32
    %c0_i32_0 = arith.constant 0 : i32
    %c0_i32_1 = arith.constant 0 : i32
    return %c0_i32, %c0_i32_0 : i32, i32
  }
  func.func @transform_10(%arg0: i32) -> (i32, i32) {
    %c0_i32 = arith.constant 0 : i32
    %c0_i32_0 = arith.constant 0 : i32
    %c0_i32_1 = arith.constant 0 : i32
    return %c0_i32, %c0_i32_0 : i32, i32
  }
  func.func @transform_11(%arg0: i32) -> (i32, i32) {
    %c0_i32 = arith.constant 0 : i32
    %c0_i32_0 = arith.constant 0 : i32
    return %arg0, %c0_i32 : i32, i32
  }
}

</mosaic_0001>

<llo_original>
// kernel: tpu_custom_call.1
$region0: #{tpu_custom_call.1}
  #allocation0 [shape = 'u32[]', space=smem, size = 0x4, offset = 0x4, fixed_abs, tag = 'smem constant byte address 0x4 - core index']
  #allocation1 [shape = 'u32[144,128]{1,0:T(1,128)}', space=vmem, size = 0x12000, scoped, tag = 'internal scratch']
  %s0 = inlined_call_operand.vmem [shape: bf16[1024,16], index: 0, kind: input, shape index: {}]
  %s1 = inlined_call_operand.vmem [shape: bf16[32,32,32], index: 1, kind: input, shape index: {}]
  %s2 = inlined_call_operand.vmem [shape: bf16[1024,32], index: 2, kind: input, shape index: {}]
  %s3 = inlined_call_operand.vmem [shape: bf16[1024,32], index: 3, kind: input, shape index: {}]
  %s4 = inlined_call_operand.vmem [shape: bf16[128,256], index: 4, kind: input, shape index: {}]
  %s5 = inlined_call_operand.vmem [shape: bf16[32,256], index: 5, kind: input, shape index: {}]
  %s6 = inlined_call_operand.vmem [shape: bf16[16,32], index: 6, kind: input, shape index: {}]
  %s7 = inlined_call_operand.vmem [shape: bf16[6,32,32], index: 7, kind: input, shape index: {}]
  %s8 = inlined_call_operand.vmem [shape: f32[9,32], index: 8, kind: input, shape index: {}]
  %s9 = inlined_call_operand.vmem [shape: bf16[32,128], index: 9, kind: input, shape index: {}]
  %s10 = inlined_call_operand.vmem [shape: f32[1,128], index: 10, kind: input, shape index: {}]
  %s11 = inlined_call_operand.hbm [shape: f32[32,128], index: 11, kind: output, shape index: {}]
  %s12 = sld [smem:[#allocation0]]
  $region77: #{tpu_custom_call.1} parent=0
    _
  %s14 = ssub.s32 1, %s12
  %s15 = scalar_select 0, %s14, %s12
  $region1: #{tpu_custom_call.1} parent=0
    #allocation2 [shape = 'u8[8192]{0}', space=vmem, size = 0x2000, scoped, tag = 'output window, operand 0']
    #allocation3 [shape = 's32[2]{0}', space=sflag, size = 0x8, scoped, tag = 'scoped memory for tpu_custom_call.1']
    %16 = vsyncpa [#allocation3], 0
    %s17 = scalar_lea.sflag [#allocation3], 1
    %18 = vsyncpa %s17, 0
    loop: start=0, step=1, limit=6
    $region2: #{tpu_custom_call.1} parent=1 // loop_pre_header
      _
    $region3: #{tpu_custom_call.1} parent=1 // loop_header
      %s20 = sphi 0, %s24
      %p21 = scmp.ge.s32.totalorder %s20, 6
      %s30 = sphi 0, %s32
      %s33 = sphi 0, %s30
      %s34 = sphi 0, %s33
      %s50 = sphi 0, %s34
      %s56 = sphi 0, %s58
      %s59 = sphi 0, %s56
      %s60 = sphi 0, %s59
      %s76 = sphi 0, %s60
      %s82 = sphi 0, %s84
      %s85 = sphi 0, %s82
      %s86 = sphi 0, %s85
      %s102 = sphi 0, %s86
      %s108 = sphi 0, %s110
      %s111 = sphi 0, %s108
      %s112 = sphi 0, %s111
      %s128 = sphi 0, %s112
      %s134 = sphi 0, %s136
      %s137 = sphi 0, %s134
      %s138 = sphi 0, %s137
      %s154 = sphi 0, %s138
      %s160 = sphi 0, %s162
      %s163 = sphi 0, %s160
      %s164 = sphi 0, %s163
      %s180 = sphi 0, %s164
      %s184 = sphi 0, %s184
      %s186 = sphi 0, %s184
      %s187 = sphi 0, %s186
      %s201 = sphi 0, %s187
      %s205 = sphi 0, %s205
      %s207 = sphi 0, %s205
      %s208 = sphi 0, %s207
      %s222 = sphi 0, %s208
      %s226 = sphi 0, %s226
      %s228 = sphi 0, %s226
      %s229 = sphi 0, %s228
      %s243 = sphi 0, %s229
      %s247 = sphi 0, %s247
      %s249 = sphi 0, %s247
      %s250 = sphi 0, %s249
      %s264 = sphi 0, %s250
      %s268 = sphi 0, %s268
      %s270 = sphi 0, %s268
      %s271 = sphi 0, %s270
      %s285 = sphi 0, %s271
      %s291 = sphi 0, %s293
      %s294 = sphi 0, %s291
      %s295 = sphi 0, %s294
      %s311 = sphi 0, %s295
    $region4: #{tpu_custom_call.1} parent=1 // loop_header_branch
      %23 = sbr.rel (%p21) target = $region8
    $region5: #{tpu_custom_call.1} parent=1 // loop_body
      %s25 = ssub.s32 %s20, 1
      %s26 = ssub.s32 %s20, 2
      %s27 = sadd.s32 %s20, 1
      %s28 = ssub.s32 %s20, %s27
      %p29 = scmp.eq.s32.totalorder %s28, 0
      %s31 = sadd.s32 %s30, 1
      %s32 = scalar_select %p29, %s30, %s31
      %p35 = pneg %p29
      %p36 = scmp.eq.s32.totalorder %s20, 3
      %p37 = por %p35, %p36
      %p38 = scmp.ne.s32.totalorder %s30, %s33
      %p39 = scmp.eq.s32.totalorder %s20, 0
      %p40 = por %p38, %p39
      %p41 = scmp.ne.s32.totalorder %s30, %s33
      %p42 = scmp.eq.s32.totalorder %s25, 3
      %p43 = por %p41, %p42
      %p44 = scmp.ne.s32.totalorder %s33, %s34
      %p45 = scmp.eq.s32.totalorder %s25, 0
      %p46 = por %p44, %p45
      %p47 = scmp.ne.s32.totalorder %s33, %s34
      %p48 = scmp.eq.s32.totalorder %s26, 3
      %p49 = por %p47, %p48
      %p51 = scmp.ne.s32.totalorder %s34, %s50
      %p52 = scmp.eq.s32.totalorder %s26, 0
      %p53 = por %p51, %p52
      %s54 = ssub.s32 %s20, %s27
      %p55 = scmp.eq.s32.totalorder %s54, 0
      %s57 = sadd.s32 %s56, 1
      %s58 = scalar_select %p55, %s56, %s57
      %p61 = pneg %p55
      %p62 = scmp.eq.s32.totalorder %s20, 3
      %p63 = por %p61, %p62
      %p64 = scmp.ne.s32.totalorder %s56, %s59
      %p65 = scmp.eq.s32.totalorder %s20, 0
      %p66 = por %p64, %p65
      %p67 = scmp.ne.s32.totalorder %s56, %s59
      %p68 = scmp.eq.s32.totalorder %s25, 3
      %p69 = por %p67, %p68
      %p70 = scmp.ne.s32.totalorder %s59, %s60
      %p71 = scmp.eq.s32.totalorder %s25, 0
      %p72 = por %p70, %p71
      %p73 = scmp.ne.s32.totalorder %s59, %s60
      %p74 = scmp.eq.s32.totalorder %s26, 3
      %p75 = por %p73, %p74
      %p77 = scmp.ne.s32.totalorder %s60, %s76
      %p78 = scmp.eq.s32.totalorder %s26, 0
      %p79 = por %p77, %p78
      %s80 = ssub.s32 %s20, %s27
      %p81 = scmp.eq.s32.totalorder %s80, 0
      %s83 = sadd.s32 %s82, 1
      %s84 = scalar_select %p81, %s82, %s83
      %p87 = pneg %p81
      %p88 = scmp.eq.s32.totalorder %s20, 3
      %p89 = por %p87, %p88
      %p90 = scmp.ne.s32.totalorder %s82, %s85
      %p91 = scmp.eq.s32.totalorder %s20, 0
      %p92 = por %p90, %p91
      %p93 = scmp.ne.s32.totalorder %s82, %s85
      %p94 = scmp.eq.s32.totalorder %s25, 3
      %p95 = por %p93, %p94
      %p96 = scmp.ne.s32.totalorder %s85, %s86
      %p97 = scmp.eq.s32.totalorder %s25, 0
      %p98 = por %p96, %p97
      %p99 = scmp.ne.s32.totalorder %s85, %s86
      %p100 = scmp.eq.s32.totalorder %s26, 3
      %p101 = por %p99, %p100
      %p103 = scmp.ne.s32.totalorder %s86, %s102
      %p104 = scmp.eq.s32.totalorder %s26, 0
      %p105 = por %p103, %p104
      %s106 = ssub.s32 %s20, %s27
      %p107 = scmp.eq.s32.totalorder %s106, 0
      %s109 = sadd.s32 %s108, 1
      %s110 = scalar_select %p107, %s108, %s109
      %p113 = pneg %p107
      %p114 = scmp.eq.s32.totalorder %s20, 3
      %p115 = por %p113, %p114
      %p116 = scmp.ne.s32.totalorder %s108, %s111
      %p117 = scmp.eq.s32.totalorder %s20, 0
      %p118 = por %p116, %p117
      %p119 = scmp.ne.s32.totalorder %s108, %s111
      %p120 = scmp.eq.s32.totalorder %s25, 3
      %p121 = por %p119, %p120
      %p122 = scmp.ne.s32.totalorder %s111, %s112
      %p123 = scmp.eq.s32.totalorder %s25, 0
      %p124 = por %p122, %p123
      %p125 = scmp.ne.s32.totalorder %s111, %s112
      %p126 = scmp.eq.s32.totalorder %s26, 3
      %p127 = por %p125, %p126
      %p129 = scmp.ne.s32.totalorder %s112, %s128
      %p130 = scmp.eq.s32.totalorder %s26, 0
      %p131 = por %p129, %p130
      %s132 = ssub.s32 %s20, %s27
      %p133 = scmp.eq.s32.totalorder %s132, 0
      %s135 = sadd.s32 %s134, 1
      %s136 = scalar_select %p133, %s134, %s135
      %p139 = pneg %p133
      %p140 = scmp.eq.s32.totalorder %s20, 3
      %p141 = por %p139, %p140
      %p142 = scmp.ne.s32.totalorder %s134, %s137
      %p143 = scmp.eq.s32.totalorder %s20, 0
      %p144 = por %p142, %p143
      %p145 = scmp.ne.s32.totalorder %s134, %s137
      %p146 = scmp.eq.s32.totalorder %s25, 3
      %p147 = por %p145, %p146
      %p148 = scmp.ne.s32.totalorder %s137, %s138
      %p149 = scmp.eq.s32.totalorder %s25, 0
      %p150 = por %p148, %p149
      %p151 = scmp.ne.s32.totalorder %s137, %s138
      %p152 = scmp.eq.s32.totalorder %s26, 3
      %p153 = por %p151, %p152
      %p155 = scmp.ne.s32.totalorder %s138, %s154
      %p156 = scmp.eq.s32.totalorder %s26, 0
      %p157 = por %p155, %p156
      %s158 = ssub.s32 %s20, %s27
      %p159 = scmp.eq.s32.totalorder %s158, 0
      %s161 = sadd.s32 %s160, 1
      %s162 = scalar_select %p159, %s160, %s161
      %p165 = pneg %p159
      %p166 = scmp.eq.s32.totalorder %s20, 3
      %p167 = por %p165, %p166
      %p168 = scmp.ne.s32.totalorder %s160, %s163
      %p169 = scmp.eq.s32.totalorder %s20, 0
      %p170 = por %p168, %p169
      %p171 = scmp.ne.s32.totalorder %s160, %s163
      %p172 = scmp.eq.s32.totalorder %s25, 3
      %p173 = por %p171, %p172
      %p174 = scmp.ne.s32.totalorder %s163, %s164
      %p175 = scmp.eq.s32.totalorder %s25, 0
      %p176 = por %p174, %p175
      %p177 = scmp.ne.s32.totalorder %s163, %s164
      %p178 = scmp.eq.s32.totalorder %s26, 3
      %p179 = por %p177, %p178
      %p181 = scmp.ne.s32.totalorder %s164, %s180
      %p182 = scmp.eq.s32.totalorder %s26, 0
      %p183 = por %p181, %p182
      %s185 = sadd.s32 %s184, 1
      %p188 = scmp.eq.s32.totalorder %s20, 3
      %p189 = scmp.ne.s32.totalorder %s184, %s186
      %p190 = scmp.eq.s32.totalorder %s20, 0
      %p191 = por %p189, %p190
      %p192 = scmp.ne.s32.totalorder %s184, %s186
      %p193 = scmp.eq.s32.totalorder %s25, 3
      %p194 = por %p192, %p193
      %p195 = scmp.ne.s32.totalorder %s186, %s187
      %p196 = scmp.eq.s32.totalorder %s25, 0
      %p197 = por %p195, %p196
      %p198 = scmp.ne.s32.totalorder %s186, %s187
      %p199 = scmp.eq.s32.totalorder %s26, 3
      %p200 = por %p198, %p199
      %p202 = scmp.ne.s32.totalorder %s187, %s201
      %p203 = scmp.eq.s32.totalorder %s26, 0
      %p204 = por %p202, %p203
      %s206 = sadd.s32 %s205, 1
      %p209 = scmp.eq.s32.totalorder %s20, 3
      %p210 = scmp.ne.s32.totalorder %s205, %s207
      %p211 = scmp.eq.s32.totalorder %s20, 0
      %p212 = por %p210, %p211
      %p213 = scmp.ne.s32.totalorder %s205, %s207
      %p214 = scmp.eq.s32.totalorder %s25, 3
      %p215 = por %p213, %p214
      %p216 = scmp.ne.s32.totalorder %s207, %s208
      %p217 = scmp.eq.s32.totalorder %s25, 0
      %p218 = por %p216, %p217
      %p219 = scmp.ne.s32.totalorder %s207, %s208
      %p220 = scmp.eq.s32.totalorder %s26, 3
      %p221 = por %p219, %p220
      %p223 = scmp.ne.s32.totalorder %s208, %s222
      %p224 = scmp.eq.s32.totalorder %s26, 0
      %p225 = por %p223, %p224
      %s227 = sadd.s32 %s226, 1
      %p230 = scmp.eq.s32.totalorder %s20, 3
      %p231 = scmp.ne.s32.totalorder %s226, %s228
      %p232 = scmp.eq.s32.totalorder %s20, 0
      %p233 = por %p231, %p232
      %p234 = scmp.ne.s32.totalorder %s226, %s228
      %p235 = scmp.eq.s32.totalorder %s25, 3
      %p236 = por %p234, %p235
      %p237 = scmp.ne.s32.totalorder %s228, %s229
      %p238 = scmp.eq.s32.totalorder %s25, 0
      %p239 = por %p237, %p238
      %p240 = scmp.ne.s32.totalorder %s228, %s229
      %p241 = scmp.eq.s32.totalorder %s26, 3
      %p242 = por %p240, %p241
      %p244 = scmp.ne.s32.totalorder %s229, %s243
      %p245 = scmp.eq.s32.totalorder %s26, 0
      %p246 = por %p244, %p245
      %s248 = sadd.s32 %s247, 1
      %p251 = scmp.eq.s32.totalorder %s20, 3
      %p252 = scmp.ne.s32.totalorder %s247, %s249
      %p253 = scmp.eq.s32.totalorder %s20, 0
      %p254 = por %p252, %p253
      %p255 = scmp.ne.s32.totalorder %s247, %s249
      %p256 = scmp.eq.s32.totalorder %s25, 3
      %p257 = por %p255, %p256
      %p258 = scmp.ne.s32.totalorder %s249, %s250
      %p259 = scmp.eq.s32.totalorder %s25, 0
      %p260 = por %p258, %p259
      %p261 = scmp.ne.s32.totalorder %s249, %s250
      %p262 = scmp.eq.s32.totalorder %s26, 3
      %p263 = por %p261, %p262
      %p265 = scmp.ne.s32.totalorder %s250, %s264
      %p266 = scmp.eq.s32.totalorder %s26, 0
      %p267 = por %p265, %p266
      %s269 = sadd.s32 %s268, 1
      %p272 = scmp.eq.s32.totalorder %s20, 3
      %p273 = scmp.ne.s32.totalorder %s268, %s270
      %p274 = scmp.eq.s32.totalorder %s20, 0
      %p275 = por %p273, %p274
      %p276 = scmp.ne.s32.totalorder %s268, %s270
      %p277 = scmp.eq.s32.totalorder %s25, 3
      %p278 = por %p276, %p277
      %p279 = scmp.ne.s32.totalorder %s270, %s271
      %p280 = scmp.eq.s32.totalorder %s25, 0
      %p281 = por %p279, %p280
      %p282 = scmp.ne.s32.totalorder %s270, %s271
      %p283 = scmp.eq.s32.totalorder %s26, 3
      %p284 = por %p282, %p283
      %p286 = scmp.ne.s32.totalorder %s271, %s285
      %p287 = scmp.eq.s32.totalorder %s26, 0
      %p288 = por %p286, %p287
      %s289 = ssub.s32 %s20, %s27
      %p290 = scmp.eq.s32.totalorder %s289, 0
      %s292 = sadd.s32 %s291, 1
      %s293 = scalar_select %p290, %s291, %s292
      %p296 = pneg %p290
      %p297 = scmp.eq.s32.totalorder %s20, 3
      %p298 = por %p296, %p297
      %p299 = scmp.ne.s32.totalorder %s291, %s294
      %p300 = scmp.eq.s32.totalorder %s20, 0
      %p301 = por %p299, %p300
      %p302 = scmp.ne.s32.totalorder %s291, %s294
      %p303 = scmp.eq.s32.totalorder %s25, 3
      %p304 = por %p302, %p303
      %p305 = scmp.ne.s32.totalorder %s294, %s295
      %p306 = scmp.eq.s32.totalorder %s25, 0
      %p307 = por %p305, %p306
      %p308 = scmp.ne.s32.totalorder %s294, %s295
      %p309 = scmp.eq.s32.totalorder %s26, 3
      %p310 = por %p308, %p309
      %p312 = scmp.ne.s32.totalorder %s295, %s311
      %p313 = scmp.eq.s32.totalorder %s26, 0
      %p314 = por %p312, %p313
      %p315 = scmp.le.s32.totalorder 1, %s20
      %p316 = scmp.lt.s32.totalorder %s20, 5
      %p317 = pnand %p315, %p316
      %p318 = pneg %p317
      // Predicated region
      $region9: #{tpu_custom_call.1} parent=5 // pred_check
        _
      $region10: #{tpu_custom_call.1} parent=5 // pred_check_branch
        %320 = sbr.rel (%p317) target = $region12
      $region11: #{tpu_custom_call.1} parent=5 // pred_region
        %s321 = ssub.s32 %s20, 1
        // Predicated region
        $region13: #{tpu_custom_call.1} parent=11 // pred_check
          %p322 = pneg %p197
        $region14: #{tpu_custom_call.1} parent=11 // pred_check_branch
          %324 = sbr.rel (%p322) target = $region16
        $region15: #{tpu_custom_call.1} parent=11 // pred_region
          _
        $region16: #{tpu_custom_call.1} parent=11 // pred_fallthru
          _
        // Predicated region
        $region17: #{tpu_custom_call.1} parent=11 // pred_check
          %p325 = pneg %p218
        $region18: #{tpu_custom_call.1} parent=11 // pred_check_branch
          %327 = sbr.rel (%p325) target = $region20
        $region19: #{tpu_custom_call.1} parent=11 // pred_region
          _
        $region20: #{tpu_custom_call.1} parent=11 // pred_fallthru
          _
        // Predicated region
        $region21: #{tpu_custom_call.1} parent=11 // pred_check
          %p328 = pneg %p239
        $region22: #{tpu_custom_call.1} parent=11 // pred_check_branch
          %330 = sbr.rel (%p328) target = $region24
        $region23: #{tpu_custom_call.1} parent=11 // pred_region
          _
        $region24: #{tpu_custom_call.1} parent=11 // pred_fallthru
          _
        // Predicated region
        $region25: #{tpu_custom_call.1} parent=11 // pred_check
          %p331 = pneg %p260
        $region26: #{tpu_custom_call.1} parent=11 // pred_check_branch
          %333 = sbr.rel (%p331) target = $region28
        $region27: #{tpu_custom_call.1} parent=11 // pred_region
          _
        $region28: #{tpu_custom_call.1} parent=11 // pred_fallthru
          _
        // Predicated region
        $region29: #{tpu_custom_call.1} parent=11 // pred_check
          %p334 = pneg %p281
        $region30: #{tpu_custom_call.1} parent=11 // pred_check_branch
          %336 = sbr.rel (%p334) target = $region32
        $region31: #{tpu_custom_call.1} parent=11 // pred_region
          _
        $region32: #{tpu_custom_call.1} parent=11 // pred_fallthru
          _
      $region12: #{tpu_custom_call.1} parent=5 // pred_fallthru
        _
      %p337 = scmp.lt.s32.totalorder %s20, 4
      // Predicated region
      $region33: #{tpu_custom_call.1} parent=5 // pred_check
        %p338 = pneg %p337
      $region34: #{tpu_custom_call.1} parent=5 // pred_check_branch
        %340 = sbr.rel (%p338) target = $region36
      $region35: #{tpu_custom_call.1} parent=5 // pred_region
        // Predicated region
        $region37: #{tpu_custom_call.1} parent=35 // pred_check
          %p341 = pneg %p40
        $region38: #{tpu_custom_call.1} parent=35 // pred_check_branch
          %343 = sbr.rel (%p341) target = $region40
        $region39: #{tpu_custom_call.1} parent=35 // pred_region
          %s344 = smul.u32 32, %s20
          %p345 = scmp.lt.s32.totalorder %s344, 127
          %s346 = scalar_select %p345, %s344, 127
          %s347 = smul.addr %s346, 4
          %s348 = scalar_lea.vmem %s0, %s347
          %s349 = smul.u32 32, %s20
        $region40: #{tpu_custom_call.1} parent=35 // pred_fallthru
          _
        // Predicated region
        $region41: #{tpu_custom_call.1} parent=35 // pred_check
          %p350 = pneg %p66
        $region42: #{tpu_custom_call.1} parent=35 // pred_check_branch
          %352 = sbr.rel (%p350) target = $region44
        $region43: #{tpu_custom_call.1} parent=35 // pred_region
          %s353 = smul.u32 8, %s20
          %p354 = scmp.lt.s32.totalorder %s353, 31
          %s355 = scalar_select %p354, %s353, 31
          %s356 = smul.addr %s355, 4
          %s357 = smul.addr %s356, 4
          %s358 = scalar_lea.vmem %s1, %s357
          %s359 = smul.u32 8, %s20
        $region44: #{tpu_custom_call.1} parent=35 // pred_fallthru
          _
        // Predicated region
        $region45: #{tpu_custom_call.1} parent=35 // pred_check
          %p360 = pneg %p92
        $region46: #{tpu_custom_call.1} parent=35 // pred_check_branch
          %362 = sbr.rel (%p360) target = $region48
        $region47: #{tpu_custom_call.1} parent=35 // pred_region
          %s363 = smul.u32 32, %s20
          %p364 = scmp.lt.s32.totalorder %s363, 127
          %s365 = scalar_select %p364, %s363, 127
          %s366 = smul.addr %s365, 4
          %s367 = scalar_lea.vmem %s2, %s366
          %s368 = smul.u32 32, %s20
        $region48: #{tpu_custom_call.1} parent=35 // pred_fallthru
          _
        // Predicated region
        $region49: #{tpu_custom_call.1} parent=35 // pred_check
          %p369 = pneg %p118
        $region50: #{tpu_custom_call.1} parent=35 // pred_check_branch
          %371 = sbr.rel (%p369) target = $region52
        $region51: #{tpu_custom_call.1} parent=35 // pred_region
          %s372 = smul.u32 32, %s20
          %p373 = scmp.lt.s32.totalorder %s372, 127
          %s374 = scalar_select %p373, %s372, 127
          %s375 = smul.addr %s374, 4
          %s376 = scalar_lea.vmem %s3, %s375
          %s377 = smul.u32 32, %s20
        $region52: #{tpu_custom_call.1} parent=35 // pred_fallthru
          _
        // Predicated region
        $region53: #{tpu_custom_call.1} parent=35 // pred_check
          %p378 = pneg %p144
        $region54: #{tpu_custom_call.1} parent=35 // pred_check_branch
          %380 = sbr.rel (%p378) target = $region56
        $region55: #{tpu_custom_call.1} parent=35 // pred_region
          %s381 = smul.u32 4, %s20
          %p382 = scmp.lt.s32.totalorder %s381, 15
          %s383 = scalar_select %p382, %s381, 15
          %s384 = smul.addr %s383, 2
          %s385 = smul.addr %s384, 4
          %s386 = scalar_lea.vmem %s4, %s385
          %s387 = smul.u32 4, %s20
        $region56: #{tpu_custom_call.1} parent=35 // pred_fallthru
          _
        // Predicated region
        $region57: #{tpu_custom_call.1} parent=35 // pred_check
          %p388 = pneg %p170
        $region58: #{tpu_custom_call.1} parent=35 // pred_check_branch
          %390 = sbr.rel (%p388) target = $region60
        $region59: #{tpu_custom_call.1} parent=35 // pred_region
          %p391 = scmp.lt.s32.totalorder %s20, 3
          %s392 = scalar_select %p391, %s20, 3
          %s393 = smul.addr %s392, 2
          %s394 = smul.addr %s393, 4
          %s395 = scalar_lea.vmem %s5, %s394
        $region60: #{tpu_custom_call.1} parent=35 // pred_fallthru
          _
      $region36: #{tpu_custom_call.1} parent=5 // pred_fallthru
        _
      %p396 = scmp.le.s32.totalorder 1, %s20
      %p397 = scmp.lt.s32.totalorder %s20, 5
      %p398 = pnand %p396, %p397
      %p399 = pneg %p398
      // Predicated region
      $region61: #{tpu_custom_call.1} parent=5 // pred_check
        _
      $region62: #{tpu_custom_call.1} parent=5 // pred_check_branch
        %401 = sbr.rel (%p398) target = $region64
      $region63: #{tpu_custom_call.1} parent=5 // pred_region
        %s402 = ssub.s32 %s20, 1
        %s403 = smul.u32 32, %s25
        %p404 = scmp.lt.s32.totalorder %s403, 127
        %s405 = scalar_select %p404, %s403, 127
        %s406 = smul.addr %s405, 4
        %s407 = scalar_lea.vmem %s0, %s406
        %p408 = pneg %p46
        %p409 = pneg %p43
        %s410 = smul.u32 8, %s25
        %p411 = scmp.lt.s32.totalorder %s410, 31
        %s412 = scalar_select %p411, %s410, 31
        %s413 = smul.addr %s412, 4
        %s414 = smul.addr %s413, 4
        %s415 = scalar_lea.vmem %s1, %s414
        %p416 = pneg %p72
        %p417 = pneg %p69
        %s418 = smul.u32 32, %s25
        %p419 = scmp.lt.s32.totalorder %s418, 127
        %s420 = scalar_select %p419, %s418, 127
        %s421 = smul.addr %s420, 4
        %s422 = scalar_lea.vmem %s2, %s421
        %p423 = pneg %p98
        %p424 = pneg %p95
        %s425 = smul.u32 32, %s25
        %p426 = scmp.lt.s32.totalorder %s425, 127
        %s427 = scalar_select %p426, %s425, 127
        %s428 = smul.addr %s427, 4
        %s429 = scalar_lea.vmem %s3, %s428
        %p430 = pneg %p124
        %p431 = pneg %p121
        %s432 = smul.u32 4, %s25
        %p433 = scmp.lt.s32.totalorder %s432, 15
        %s434 = scalar_select %p433, %s432, 15
        %s435 = smul.addr %s434, 2
        %s436 = smul.addr %s435, 4
        %s437 = scalar_lea.vmem %s4, %s436
        %p438 = pneg %p150
        %p439 = pneg %p147
        %p440 = scmp.lt.s32.totalorder %s25, 3
        %s441 = scalar_select %p440, %s25, 3
        %s442 = smul.addr %s441, 2
        %s443 = smul.addr %s442, 4
        %s444 = scalar_lea.vmem %s5, %s443
        %p445 = pneg %p176
        %p446 = pneg %p173
        %p447 = pneg %p197
        %p448 = pneg %p194
        %p449 = pneg %p218
        %p450 = pneg %p215
        %p451 = pneg %p239
        %p452 = pneg %p236
        %p453 = pneg %p260
        %p454 = pneg %p257
        %p455 = pneg %p281
        %p456 = pneg %p278
        %p457 = pneg %p307
        %p458 = pneg %p304
        %s459 = sand.u32 %s294, 1
        %s460 = scalar_lea.sflag [#allocation3], %s459
        %s461 = sand.u32 %s294, 1
        %s462 = smul.addr %s461, 8
        %s463 = scalar_lea.vmem [#allocation2], %s462
        %s464 = smul.u32 32, %s25
        %p465 = scmp.lt.s32.totalorder %s464, 127
        %s466 = scalar_select %p465, %s464, 127
        %s467 = smul.addr %s466, 4
        %s468 = scalar_lea.vmem %s0, %s467
        %s469 = smul.u32 32, %s25
        %s470 = smul.u32 8, %s25
        %p471 = scmp.lt.s32.totalorder %s470, 31
        %s472 = scalar_select %p471, %s470, 31
        %s473 = smul.addr %s472, 4
        %s474 = smul.addr %s473, 4
        %s475 = scalar_lea.vmem %s1, %s474
        %s476 = smul.u32 8, %s25
        %s477 = smul.u32 32, %s25
        %p478 = scmp.lt.s32.totalorder %s477, 127
        %s479 = scalar_select %p478, %s477, 127
        %s480 = smul.addr %s479, 4
        %s481 = scalar_lea.vmem %s2, %s480
        %s482 = smul.u32 32, %s25
        %s483 = smul.u32 32, %s25
        %p484 = scmp.lt.s32.totalorder %s483, 127
        %s485 = scalar_select %p484, %s483, 127
        %s486 = smul.addr %s485, 4
        %s487 = scalar_lea.vmem %s3, %s486
        %s488 = smul.u32 32, %s25
        %s489 = smul.u32 4, %s25
        %p490 = scmp.lt.s32.totalorder %s489, 15
        %s491 = scalar_select %p490, %s489, 15
        %s492 = smul.addr %s491, 2
        %s493 = smul.addr %s492, 4
        %s494 = scalar_lea.vmem %s4, %s493
        %s495 = smul.u32 4, %s25
        %p496 = scmp.lt.s32.totalorder %s25, 3
        %s497 = scalar_select %p496, %s25, 3
        %s498 = smul.addr %s497, 2
        %s499 = smul.addr %s498, 4
        %s500 = scalar_lea.vmem %s5, %s499
        %v502 = vld [vmem:[%s468] sm:$0xf]
        %v503 = vld [vmem:[%s468 + $0x4] sm:$0xf]
        %v504 = vld [vmem:[%s468 + $0x8] sm:$0xf]
        %v505 = vld [vmem:[%s468 + $0xc] sm:$0xf]
        %v506 = vld [vmem:[%s468 + $0x10] sm:$0xf]
        %v507 = vld [vmem:[%s468 + $0x14] sm:$0xf]
        %v508 = vld [vmem:[%s468 + $0x18] sm:$0xf]
        %v509 = vld [vmem:[%s468 + $0x1c] sm:$0xf]
        %v510 = vld [vmem:[%s468 + $0x20] sm:$0xf]
        %v511 = vld [vmem:[%s468 + $0x24] sm:$0xf]
        %v512 = vld [vmem:[%s468 + $0x28] sm:$0xf]
        %v513 = vld [vmem:[%s468 + $0x2c] sm:$0xf]
        %v514 = vld [vmem:[%s468 + $0x30] sm:$0xf]
        %v515 = vld [vmem:[%s468 + $0x34] sm:$0xf]
        %v516 = vld [vmem:[%s468 + $0x38] sm:$0xf]
        %v517 = vld [vmem:[%s468 + $0x3c] sm:$0xf]
        %v518 = vld [vmem:[%s468 + $0x40] sm:$0xf]
        %v519 = vld [vmem:[%s468 + $0x44] sm:$0xf]
        %v520 = vld [vmem:[%s468 + $0x48] sm:$0xf]
        %v521 = vld [vmem:[%s468 + $0x4c] sm:$0xf]
        %v522 = vld [vmem:[%s468 + $0x50] sm:$0xf]
        %v523 = vld [vmem:[%s468 + $0x54] sm:$0xf]
        %v524 = vld [vmem:[%s468 + $0x58] sm:$0xf]
        %v525 = vld [vmem:[%s468 + $0x5c] sm:$0xf]
        %v526 = vld [vmem:[%s468 + $0x60] sm:$0xf]
        %v527 = vld [vmem:[%s468 + $0x64] sm:$0xf]
        %v528 = vld [vmem:[%s468 + $0x68] sm:$0xf]
        %v529 = vld [vmem:[%s468 + $0x6c] sm:$0xf]
        %v530 = vld [vmem:[%s468 + $0x70] sm:$0xf]
        %v531 = vld [vmem:[%s468 + $0x74] sm:$0xf]
        %v532 = vld [vmem:[%s468 + $0x78] sm:$0xf]
        %v533 = vld [vmem:[%s468 + $0x7c] sm:$0xf]
        %v534 = vld [vmem:[%s6] sm:$0xf]
        %v535 = vld [vmem:[%s6 + $0x4] sm:$0xf]
        %v536 = vld [vmem:[%s8] sm:$0x1]
        %v537 = vlaneseq
        %v538 = vshrl.u32 %v537, 7
        %v539 = vsub.s32 0, %v538
        %v540 = vrot.slane %v536, %v539
        %v573 = vunpack.c.l.b16 %v502
        %v574 = vunpack.c.l.b16 %v503
        %v575 = vunpack.c.l.b16 %v504
        %v576 = vunpack.c.l.b16 %v505
        %v577 = vunpack.c.l.b16 %v506
        %v578 = vunpack.c.l.b16 %v507
        %v579 = vunpack.c.l.b16 %v508
        %v580 = vunpack.c.l.b16 %v509
        %v581 = vunpack.c.l.b16 %v510
        %v582 = vunpack.c.l.b16 %v511
        %v583 = vunpack.c.l.b16 %v512
        %v584 = vunpack.c.l.b16 %v513
        %v585 = vunpack.c.l.b16 %v514
        %v586 = vunpack.c.l.b16 %v515
        %v587 = vunpack.c.l.b16 %v516
        %v588 = vunpack.c.l.b16 %v517
        %v589 = vunpack.c.l.b16 %v518
        %v590 = vunpack.c.l.b16 %v519
        %v591 = vunpack.c.l.b16 %v520
        %v592 = vunpack.c.l.b16 %v521
        %v593 = vunpack.c.l.b16 %v522
        %v594 = vunpack.c.l.b16 %v523
        %v595 = vunpack.c.l.b16 %v524
        %v596 = vunpack.c.l.b16 %v525
        %v597 = vunpack.c.l.b16 %v526
        %v598 = vunpack.c.l.b16 %v527
        %v599 = vunpack.c.l.b16 %v528
        %v600 = vunpack.c.l.b16 %v529
        %v601 = vunpack.c.l.b16 %v530
        %v602 = vunpack.c.l.b16 %v531
        %v603 = vunpack.c.l.b16 %v532
        %v604 = vunpack.c.l.b16 %v533
        %v605 = vpack.c.b16 %v574, %v573
        %v606 = vpack.c.b16 %v576, %v575
        %v607 = vpack.c.b16 %v578, %v577
        %v608 = vpack.c.b16 %v580, %v579
        %v609 = vpack.c.b16 %v582, %v581
        %v610 = vpack.c.b16 %v584, %v583
        %v611 = vpack.c.b16 %v586, %v585
        %v612 = vpack.c.b16 %v588, %v587
        %v613 = vpack.c.b16 %v590, %v589
        %v614 = vpack.c.b16 %v592, %v591
        %v615 = vpack.c.b16 %v594, %v593
        %v616 = vpack.c.b16 %v596, %v595
        %v617 = vpack.c.b16 %v598, %v597
        %v618 = vpack.c.b16 %v600, %v599
        %v619 = vpack.c.b16 %v602, %v601
        %v620 = vpack.c.b16 %v604, %v603
        %v623 = vunpack.c.l.b16 %v534
        %v624 = vunpack.c.l.b16 %v535
        %v625 = vpack.c.b16 %v624, %v623
        %vm627 = vcmask 130048
        %v629 = vsel %vm627, %v605, 0
        %v632 = vsel %vm627, %v606, 0
        %v635 = vsel %vm627, %v607, 0
        %v638 = vsel %vm627, %v608, 0
        %v641 = vsel %vm627, %v609, 0
        %v644 = vsel %vm627, %v610, 0
        %v647 = vsel %vm627, %v611, 0
        %v650 = vsel %vm627, %v612, 0
        %v653 = vsel %vm627, %v613, 0
        %v656 = vsel %vm627, %v614, 0
        %v659 = vsel %vm627, %v615, 0
        %v662 = vsel %vm627, %v616, 0
        %v665 = vsel %vm627, %v617, 0
        %v668 = vsel %vm627, %v618, 0
        %v671 = vsel %vm627, %v619, 0
        %v674 = vsel %vm627, %v620, 0
        %676 = vmatprep.subr.bf16.mxu0 0
        %677 = vmatpush1.bf16.msra.mxu0 0
        %678 = vmatprep.subr.bf16.mxu0 0
        %679 = vmatpush1.bf16.msra.mxu0 0
        %680 = vmatprep.subr.bf16.mxu0 0
        %681 = vmatpush1.bf16.msra.mxu0 0
        %682 = vmatprep.subr.bf16.mxu0 0
        %683 = vmatpush1.bf16.msra.mxu0 0
        %684 = vmatprep.subr.bf16.mxu0 0
        %685 = vmatpush1.bf16.msra.mxu0 0
        %686 = vmatprep.subr.bf16.mxu0 0
        %687 = vmatpush1.bf16.msra.mxu0 0
        %688 = vmatprep.subr.bf16.mxu0 0
        %689 = vmatpush1.bf16.msra.mxu0 0
        %690 = vmatprep.subr.bf16.mxu0 0
        %691 = vmatpush1.bf16.msra.mxu0 %v625
        %692 = vmatprep.subr.bf16.mxu0 0
        %693 = vmatpush2.bf16.msra.mxu0 0
        %694 = vmatprep.subr.bf16.mxu0 0
        %695 = vmatpush2.bf16.msra.mxu0 0
        %696 = vmatprep.subr.bf16.mxu0 0
        %697 = vmatpush2.bf16.msra.mxu0 0
        %698 = vmatprep.subr.bf16.mxu0 0
        %699 = vmatpush2.bf16.msra.mxu0 0
        %700 = vmatprep.subr.bf16.mxu0 0
        %701 = vmatpush2.bf16.msra.mxu0 0
        %702 = vmatprep.subr.bf16.mxu0 0
        %703 = vmatpush2.bf16.msra.mxu0 0
        %704 = vmatprep.subr.bf16.mxu0 0
        %705 = vmatpush2.bf16.msra.mxu0 0
        %706 = vmatprep.subr.bf16.mxu0 0
        %707 = vmatpush2.bf16.msra.mxu0 0
        %708 = vmatprep.mubr.bf16.mxu0 0
        %709 = vmatmul.mubr.bf16.gmra.mxu0 %v629
        %v710 = vpop.f32.mrf.mxu0
        %v711 = vadd.f32 %v540, %v710
        %v712 = vpop.f32.mrf.mxu0
        %v713 = vpop.f32.mrf.mxu0
        %v714 = vadd.f32 %v540, %v713
        %v715 = vpop.f32.mrf.mxu0
        %716 = vmatprep.mubr.bf16.mxu0 0
        %717 = vmatmul.mubr.bf16.gmra.mxu0 %v632
        %v718 = vpop.f32.mrf.mxu0
        %v719 = vadd.f32 %v540, %v718
        %v720 = vpop.f32.mrf.mxu0
        %v721 = vpop.f32.mrf.mxu0
        %v722 = vadd.f32 %v540, %v721
        %v723 = vpop.f32.mrf.mxu0
        %724 = vmatprep.mubr.bf16.mxu0 0
        %725 = vmatmul.mubr.bf16.gmra.mxu0 %v635
        %v726 = vpop.f32.mrf.mxu0
        %v727 = vadd.f32 %v540, %v726
        %v728 = vpop.f32.mrf.mxu0
        %v729 = vpop.f32.mrf.mxu0
        %v730 = vadd.f32 %v540, %v729
        %v731 = vpop.f32.mrf.mxu0
        %732 = vmatprep.mubr.bf16.mxu0 0
        %733 = vmatmul.mubr.bf16.gmra.mxu0 %v638
        %v734 = vpop.f32.mrf.mxu0
        %v735 = vadd.f32 %v540, %v734
        %v736 = vpop.f32.mrf.mxu0
        %v737 = vpop.f32.mrf.mxu0
        %v738 = vadd.f32 %v540, %v737
        %v739 = vpop.f32.mrf.mxu0
        %740 = vmatprep.mubr.bf16.mxu0 0
        %741 = vmatmul.mubr.bf16.gmra.mxu0 %v641
        %v742 = vpop.f32.mrf.mxu0
        %v743 = vadd.f32 %v540, %v742
        %v744 = vpop.f32.mrf.mxu0
        %v745 = vpop.f32.mrf.mxu0
        %v746 = vadd.f32 %v540, %v745
        %v747 = vpop.f32.mrf.mxu0
        %748 = vmatprep.mubr.bf16.mxu0 0
        %749 = vmatmul.mubr.bf16.gmra.mxu0 %v644
        %v750 = vpop.f32.mrf.mxu0
        %v751 = vadd.f32 %v540, %v750
        %v752 = vpop.f32.mrf.mxu0
        %v753 = vpop.f32.mrf.mxu0
        %v754 = vadd.f32 %v540, %v753
        %v755 = vpop.f32.mrf.mxu0
        %756 = vmatprep.mubr.bf16.mxu0 0
        %757 = vmatmul.mubr.bf16.gmra.mxu0 %v647
        %v758 = vpop.f32.mrf.mxu0
        %v759 = vadd.f32 %v540, %v758
        %v760 = vpop.f32.mrf.mxu0
        %v761 = vpop.f32.mrf.mxu0
        %v762 = vadd.f32 %v540, %v761
        %v763 = vpop.f32.mrf.mxu0
        %764 = vmatprep.mubr.bf16.mxu0 0
        %765 = vmatmul.mubr.bf16.gmra.mxu0 %v650
        %v766 = vpop.f32.mrf.mxu0
        %v767 = vadd.f32 %v540, %v766
        %v768 = vpop.f32.mrf.mxu0
        %v769 = vpop.f32.mrf.mxu0
        %v770 = vadd.f32 %v540, %v769
        %v771 = vpop.f32.mrf.mxu0
        %772 = vmatprep.mubr.bf16.mxu0 0
        %773 = vmatmul.mubr.bf16.gmra.mxu0 %v653
        %v774 = vpop.f32.mrf.mxu0
        %v775 = vadd.f32 %v540, %v774
        %v776 = vpop.f32.mrf.mxu0
        %v777 = vpop.f32.mrf.mxu0
        %v778 = vadd.f32 %v540, %v777
        %v779 = vpop.f32.mrf.mxu0
        %780 = vmatprep.mubr.bf16.mxu0 0
        %781 = vmatmul.mubr.bf16.gmra.mxu0 %v656
        %v782 = vpop.f32.mrf.mxu0
        %v783 = vadd.f32 %v540, %v782
        %v784 = vpop.f32.mrf.mxu0
        %v785 = vpop.f32.mrf.mxu0
        %v786 = vadd.f32 %v540, %v785
        %v787 = vpop.f32.mrf.mxu0
        %788 = vmatprep.mubr.bf16.mxu0 0
        %789 = vmatmul.mubr.bf16.gmra.mxu0 %v659
        %v790 = vpop.f32.mrf.mxu0
        %v791 = vadd.f32 %v540, %v790
        %v792 = vpop.f32.mrf.mxu0
        %v793 = vpop.f32.mrf.mxu0
        %v794 = vadd.f32 %v540, %v793
        %v795 = vpop.f32.mrf.mxu0
        %796 = vmatprep.mubr.bf16.mxu0 0
        %797 = vmatmul.mubr.bf16.gmra.mxu0 %v662
        %v798 = vpop.f32.mrf.mxu0
        %v799 = vadd.f32 %v540, %v798
        %v800 = vpop.f32.mrf.mxu0
        %v801 = vpop.f32.mrf.mxu0
        %v802 = vadd.f32 %v540, %v801
        %v803 = vpop.f32.mrf.mxu0
        %804 = vmatprep.mubr.bf16.mxu0 0
        %805 = vmatmul.mubr.bf16.gmra.mxu0 %v665
        %v806 = vpop.f32.mrf.mxu0
        %v807 = vadd.f32 %v540, %v806
        %v808 = vpop.f32.mrf.mxu0
        %v809 = vpop.f32.mrf.mxu0
        %v810 = vadd.f32 %v540, %v809
        %v811 = vpop.f32.mrf.mxu0
        %812 = vmatprep.mubr.bf16.mxu0 0
        %813 = vmatmul.mubr.bf16.gmra.mxu0 %v668
        %v814 = vpop.f32.mrf.mxu0
        %v815 = vadd.f32 %v540, %v814
        %v816 = vpop.f32.mrf.mxu0
        %v817 = vpop.f32.mrf.mxu0
        %v818 = vadd.f32 %v540, %v817
        %v819 = vpop.f32.mrf.mxu0
        %820 = vmatprep.mubr.bf16.mxu0 0
        %821 = vmatmul.mubr.bf16.gmra.mxu0 %v671
        %v822 = vpop.f32.mrf.mxu0
        %v823 = vadd.f32 %v540, %v822
        %v824 = vpop.f32.mrf.mxu0
        %v825 = vpop.f32.mrf.mxu0
        %v826 = vadd.f32 %v540, %v825
        %v827 = vpop.f32.mrf.mxu0
        %828 = vmatprep.mubr.bf16.mxu0 0
        %829 = vmatmul.mubr.bf16.gmra.mxu0 %v674
        %v830 = vpop.f32.mrf.mxu0
        %v831 = vadd.f32 %v540, %v830
        %v832 = vpop.f32.mrf.mxu0
        %v833 = vpop.f32.mrf.mxu0
        %v834 = vadd.f32 %v540, %v833
        %v835 = vpop.f32.mrf.mxu0
        %836 = vdwg.mxu0
        %v837 = vld [vmem:[%s481] sm:$0xf]
        %v838 = vld [vmem:[%s481 + $0x4] sm:$0xf]
        %v839 = vld [vmem:[%s481 + $0x8] sm:$0xf]
        %v840 = vld [vmem:[%s481 + $0xc] sm:$0xf]
        %v841 = vld [vmem:[%s481 + $0x10] sm:$0xf]
        %v842 = vld [vmem:[%s481 + $0x14] sm:$0xf]
        %v843 = vld [vmem:[%s481 + $0x18] sm:$0xf]
        %v844 = vld [vmem:[%s481 + $0x1c] sm:$0xf]
        %v845 = vld [vmem:[%s481 + $0x20] sm:$0xf]
        %v846 = vld [vmem:[%s481 + $0x24] sm:$0xf]
        %v847 = vld [vmem:[%s481 + $0x28] sm:$0xf]
        %v848 = vld [vmem:[%s481 + $0x2c] sm:$0xf]
        %v849 = vld [vmem:[%s481 + $0x30] sm:$0xf]
        %v850 = vld [vmem:[%s481 + $0x34] sm:$0xf]
        %v851 = vld [vmem:[%s481 + $0x38] sm:$0xf]
        %v852 = vld [vmem:[%s481 + $0x3c] sm:$0xf]
        %v853 = vld [vmem:[%s481 + $0x40] sm:$0xf]
        %v854 = vld [vmem:[%s481 + $0x44] sm:$0xf]
        %v855 = vld [vmem:[%s481 + $0x48] sm:$0xf]
        %v856 = vld [vmem:[%s481 + $0x4c] sm:$0xf]
        %v857 = vld [vmem:[%s481 + $0x50] sm:$0xf]
        %v858 = vld [vmem:[%s481 + $0x54] sm:$0xf]
        %v859 = vld [vmem:[%s481 + $0x58] sm:$0xf]
        %v860 = vld [vmem:[%s481 + $0x5c] sm:$0xf]
        %v861 = vld [vmem:[%s481 + $0x60] sm:$0xf]
        %v862 = vld [vmem:[%s481 + $0x64] sm:$0xf]
        %v863 = vld [vmem:[%s481 + $0x68] sm:$0xf]
        %v864 = vld [vmem:[%s481 + $0x6c] sm:$0xf]
        %v865 = vld [vmem:[%s481 + $0x70] sm:$0xf]
        %v866 = vld [vmem:[%s481 + $0x74] sm:$0xf]
        %v867 = vld [vmem:[%s481 + $0x78] sm:$0xf]
        %v868 = vld [vmem:[%s481 + $0x7c] sm:$0xf]
        %v869 = vld [vmem:[%s475] sm:$0xf]
        %v870 = vld [vmem:[%s475 + $0x4] sm:$0xf]
        %v871 = vld [vmem:[%s475 + $0x8] sm:$0xf]
        %v872 = vld [vmem:[%s475 + $0xc] sm:$0xf]
        %v873 = vld [vmem:[%s475 + $0x10] sm:$0xf]
        %v874 = vld [vmem:[%s475 + $0x14] sm:$0xf]
        %v875 = vld [vmem:[%s475 + $0x18] sm:$0xf]
        %v876 = vld [vmem:[%s475 + $0x1c] sm:$0xf]
        %v877 = vld [vmem:[%s475 + $0x20] sm:$0xf]
        %v878 = vld [vmem:[%s475 + $0x24] sm:$0xf]
        %v879 = vld [vmem:[%s475 + $0x28] sm:$0xf]
        %v880 = vld [vmem:[%s475 + $0x2c] sm:$0xf]
        %v881 = vld [vmem:[%s475 + $0x30] sm:$0xf]
        %v882 = vld [vmem:[%s475 + $0x34] sm:$0xf]
        %v883 = vld [vmem:[%s475 + $0x38] sm:$0xf]
        %v884 = vld [vmem:[%s475 + $0x3c] sm:$0xf]
        %v885 = vld [vmem:[%s475 + $0x40] sm:$0xf]
        %v886 = vld [vmem:[%s475 + $0x44] sm:$0xf]
        %v887 = vld [vmem:[%s475 + $0x48] sm:$0xf]
        %v888 = vld [vmem:[%s475 + $0x4c] sm:$0xf]
        %v889 = vld [vmem:[%s475 + $0x50] sm:$0xf]
        %v890 = vld [vmem:[%s475 + $0x54] sm:$0xf]
        %v891 = vld [vmem:[%s475 + $0x58] sm:$0xf]
        %v892 = vld [vmem:[%s475 + $0x5c] sm:$0xf]
        %v893 = vld [vmem:[%s475 + $0x60] sm:$0xf]
        %v894 = vld [vmem:[%s475 + $0x64] sm:$0xf]
        %v895 = vld [vmem:[%s475 + $0x68] sm:$0xf]
        %v896 = vld [vmem:[%s475 + $0x6c] sm:$0xf]
        %v897 = vld [vmem:[%s475 + $0x70] sm:$0xf]
        %v898 = vld [vmem:[%s475 + $0x74] sm:$0xf]
        %v899 = vld [vmem:[%s475 + $0x78] sm:$0xf]
        %v900 = vld [vmem:[%s475 + $0x7c] sm:$0xf]
        %v901 = vld [vmem:[%s487] sm:$0xf]
        %v902 = vld [vmem:[%s487 + $0x4] sm:$0xf]
        %v903 = vld [vmem:[%s487 + $0x8] sm:$0xf]
        %v904 = vld [vmem:[%s487 + $0xc] sm:$0xf]
        %v905 = vld [vmem:[%s487 + $0x10] sm:$0xf]
        %v906 = vld [vmem:[%s487 + $0x14] sm:$0xf]
        %v907 = vld [vmem:[%s487 + $0x18] sm:$0xf]
        %v908 = vld [vmem:[%s487 + $0x1c] sm:$0xf]
        %v909 = vld [vmem:[%s487 + $0x20] sm:$0xf]
        %v910 = vld [vmem:[%s487 + $0x24] sm:$0xf]
        %v911 = vld [vmem:[%s487 + $0x28] sm:$0xf]
        %v912 = vld [vmem:[%s487 + $0x2c] sm:$0xf]
        %v913 = vld [vmem:[%s487 + $0x30] sm:$0xf]
        %v914 = vld [vmem:[%s487 + $0x34] sm:$0xf]
        %v915 = vld [vmem:[%s487 + $0x38] sm:$0xf]
        %v916 = vld [vmem:[%s487 + $0x3c] sm:$0xf]
        %v917 = vld [vmem:[%s487 + $0x40] sm:$0xf]
        %v918 = vld [vmem:[%s487 + $0x44] sm:$0xf]
        %v919 = vld [vmem:[%s487 + $0x48] sm:$0xf]
        %v920 = vld [vmem:[%s487 + $0x4c] sm:$0xf]
        %v921 = vld [vmem:[%s487 + $0x50] sm:$0xf]
        %v922 = vld [vmem:[%s487 + $0x54] sm:$0xf]
        %v923 = vld [vmem:[%s487 + $0x58] sm:$0xf]
        %v924 = vld [vmem:[%s487 + $0x5c] sm:$0xf]
        %v925 = vld [vmem:[%s487 + $0x60] sm:$0xf]
        %v926 = vld [vmem:[%s487 + $0x64] sm:$0xf]
        %v927 = vld [vmem:[%s487 + $0x68] sm:$0xf]
        %v928 = vld [vmem:[%s487 + $0x6c] sm:$0xf]
        %v929 = vld [vmem:[%s487 + $0x70] sm:$0xf]
        %v930 = vld [vmem:[%s487 + $0x74] sm:$0xf]
        %v931 = vld [vmem:[%s487 + $0x78] sm:$0xf]
        %v932 = vld [vmem:[%s487 + $0x7c] sm:$0xf]
        %v933 = vld [vmem:[%s494] sm:$0xff]
        %v934 = vld [vmem:[%s494 + $0x8] sm:$0xff]
        %v935 = vld [vmem:[%s494 + $0x10] sm:$0xff]
        %v936 = vld [vmem:[%s494 + $0x18] sm:$0xff]
        %v937 = vld [vmem:[%s8 + $0x1] sm:$0x1]
        %v938 = vld [vmem:[%s8 + $0x2] sm:$0x1]
        %v939 = vld [vmem:[%s8 + $0x3] sm:$0x1]
        %v940 = vld [vmem:[%s8 + $0x4] sm:$0x1]
        %v941 = vpack.c.bf16 %v714, %v711
        %v942 = vpack.c.bf16 %v722, %v719
        %v943 = vpack.c.bf16 %v730, %v727
        %v944 = vpack.c.bf16 %v738, %v735
        %v945 = vpack.c.bf16 %v746, %v743
        %v946 = vpack.c.bf16 %v754, %v751
        %v947 = vpack.c.bf16 %v762, %v759
        %v948 = vpack.c.bf16 %v770, %v767
        %v949 = vpack.c.bf16 %v778, %v775
        %v950 = vpack.c.bf16 %v786, %v783
        %v951 = vpack.c.bf16 %v794, %v791
        %v952 = vpack.c.bf16 %v802, %v799
        %v953 = vpack.c.bf16 %v810, %v807
        %v954 = vpack.c.bf16 %v818, %v815
        %v955 = vpack.c.bf16 %v826, %v823
        %v956 = vpack.c.bf16 %v834, %v831
        %v961 = vunpack.c.l.b16 %v869
        %v962 = vunpack.c.l.b16 %v870
        %v963 = vunpack.c.l.b16 %v871
        %v964 = vunpack.c.l.b16 %v872
        %v965 = vpack.c.b16 %v962, %v961
        %v966 = vpack.c.b16 %v964, %v963
        %vm967 = vcmask 261120
        %v969 = vsel %vm967, %v965, 0
        %v972 = vsel %vm967, %v966, 0
        %974 = vmatprep.subr.bf16.mxu0 0
        %975 = vmatpush1.bf16.msra.mxu0 0
        %976 = vmatprep.subr.bf16.mxu0 0
        %977 = vmatpush1.bf16.msra.mxu0 0
        %978 = vmatprep.subr.bf16.mxu0 0
        %979 = vmatpush1.bf16.msra.mxu0 0
        %980 = vmatprep.subr.bf16.mxu0 0
        %981 = vmatpush1.bf16.msra.mxu0 0
        %982 = vmatprep.subr.bf16.mxu0 0
        %983 = vmatpush1.bf16.msra.mxu0 0
        %984 = vmatprep.subr.bf16.mxu0 0
        %985 = vmatpush1.bf16.msra.mxu0 0
        %986 = vmatprep.subr.bf16.mxu0 0
        %987 = vmatpush1.bf16.msra.mxu0 %v942
        %988 = vmatprep.subr.bf16.mxu0 0
        %989 = vmatpush1.bf16.msra.mxu0 %v941
        %990 = vmatprep.subr.bf16.mxu0 0
        %991 = vmatpush2.bf16.msra.mxu0 0
        %992 = vmatprep.subr.bf16.mxu0 0
        %993 = vmatpush2.bf16.msra.mxu0 0
        %994 = vmatprep.subr.bf16.mxu0 0
        %995 = vmatpush2.bf16.msra.mxu0 0
        %996 = vmatprep.subr.bf16.mxu0 0
        %997 = vmatpush2.bf16.msra.mxu0 0
        %998 = vmatprep.subr.bf16.mxu0 0
        %999 = vmatpush2.bf16.msra.mxu0 0
        %1000 = vmatprep.subr.bf16.mxu0 0
        %1001 = vmatpush2.bf16.msra.mxu0 0
        %1002 = vmatprep.subr.bf16.mxu0 0
        %1003 = vmatpush2.bf16.msra.mxu0 0
        %1004 = vmatprep.subr.bf16.mxu0 0
        %1005 = vmatpush2.bf16.msra.mxu0 0
        %1006 = vmatprep.mubr.bf16.mxu0 0
        %1007 = vmatmul.mubr.bf16.gmra.mxu0 %v969
        %v1008 = vpop.f32.mrf.mxu0
        %v1009 = vadd.f32 0.0, %v1008
        %v1010 = vpop.f32.mrf.mxu0
        %v1011 = vpop.f32.mrf.mxu0
        %v1012 = vadd.f32 0.0, %v1011
        %v1013 = vpop.f32.mrf.mxu0
        %1014 = vmatprep.mubr.bf16.mxu0 0
        %1015 = vmatmul.mubr.bf16.gmra.mxu0 %v972
        %v1016 = vpop.f32.mrf.mxu0
        %v1017 = vadd.f32 0.0, %v1016
        %v1018 = vpop.f32.mrf.mxu0
        %v1019 = vpop.f32.mrf.mxu0
        %v1020 = vadd.f32 0.0, %v1019
        %v1021 = vpop.f32.mrf.mxu0
        %1022 = vdwg.mxu0
        %v1027 = vunpack.c.l.b16 %v873
        %v1028 = vunpack.c.l.b16 %v874
        %v1029 = vunpack.c.l.b16 %v875
        %v1030 = vunpack.c.l.b16 %v876
        %v1031 = vpack.c.b16 %v1028, %v1027
        %v1032 = vpack.c.b16 %v1030, %v1029
        %v1034 = vsel %vm967, %v1031, 0
        %v1037 = vsel %vm967, %v1032, 0
        %1039 = vmatprep.subr.bf16.mxu0 0
        %1040 = vmatpush1.bf16.msra.mxu0 0
        %1041 = vmatprep.subr.bf16.mxu0 0
        %1042 = vmatpush1.bf16.msra.mxu0 0
        %1043 = vmatprep.subr.bf16.mxu0 0
        %1044 = vmatpush1.bf16.msra.mxu0 0
        %1045 = vmatprep.subr.bf16.mxu0 0
        %1046 = vmatpush1.bf16.msra.mxu0 0
        %1047 = vmatprep.subr.bf16.mxu0 0
        %1048 = vmatpush1.bf16.msra.mxu0 0
        %1049 = vmatprep.subr.bf16.mxu0 0
        %1050 = vmatpush1.bf16.msra.mxu0 0
        %1051 = vmatprep.subr.bf16.mxu0 0
        %1052 = vmatpush1.bf16.msra.mxu0 %v944
        %1053 = vmatprep.subr.bf16.mxu0 0
        %1054 = vmatpush1.bf16.msra.mxu0 %v943
        %1055 = vmatprep.subr.bf16.mxu0 0
        %1056 = vmatpush2.bf16.msra.mxu0 0
        %1057 = vmatprep.subr.bf16.mxu0 0
        %1058 = vmatpush2.bf16.msra.mxu0 0
        %1059 = vmatprep.subr.bf16.mxu0 0
        %1060 = vmatpush2.bf16.msra.mxu0 0
        %1061 = vmatprep.subr.bf16.mxu0 0
        %1062 = vmatpush2.bf16.msra.mxu0 0
        %1063 = vmatprep.subr.bf16.mxu0 0
        %1064 = vmatpush2.bf16.msra.mxu0 0
        %1065 = vmatprep.subr.bf16.mxu0 0
        %1066 = vmatpush2.bf16.msra.mxu0 0
        %1067 = vmatprep.subr.bf16.mxu0 0
        %1068 = vmatpush2.bf16.msra.mxu0 0
        %1069 = vmatprep.subr.bf16.mxu0 0
        %1070 = vmatpush2.bf16.msra.mxu0 0
        %1071 = vmatprep.mubr.bf16.mxu0 0
        %1072 = vmatmul.mubr.bf16.gmra.mxu0 %v1034
        %v1073 = vpop.f32.mrf.mxu0
        %v1074 = vadd.f32 0.0, %v1073
        %v1075 = vpop.f32.mrf.mxu0
        %v1076 = vpop.f32.mrf.mxu0
        %v1077 = vadd.f32 0.0, %v1076
        %v1078 = vpop.f32.mrf.mxu0
        %1079 = vmatprep.mubr.bf16.mxu0 0
        %1080 = vmatmul.mubr.bf16.gmra.mxu0 %v1037
        %v1081 = vpop.f32.mrf.mxu0
        %v1082 = vadd.f32 0.0, %v1081
        %v1083 = vpop.f32.mrf.mxu0
        %v1084 = vpop.f32.mrf.mxu0
        %v1085 = vadd.f32 0.0, %v1084
        %v1086 = vpop.f32.mrf.mxu0
        %1087 = vdwg.mxu0
        %v1092 = vunpack.c.l.b16 %v877
        %v1093 = vunpack.c.l.b16 %v878
        %v1094 = vunpack.c.l.b16 %v879
        %v1095 = vunpack.c.l.b16 %v880
        %v1096 = vpack.c.b16 %v1093, %v1092
        %v1097 = vpack.c.b16 %v1095, %v1094
        %v1099 = vsel %vm967, %v1096, 0
        %v1102 = vsel %vm967, %v1097, 0
        %1104 = vmatprep.subr.bf16.mxu0 0
        %1105 = vmatpush1.bf16.msra.mxu0 0
        %1106 = vmatprep.subr.bf16.mxu0 0
        %1107 = vmatpush1.bf16.msra.mxu0 0
        %1108 = vmatprep.subr.bf16.mxu0 0
        %1109 = vmatpush1.bf16.msra.mxu0 0
        %1110 = vmatprep.subr.bf16.mxu0 0
        %1111 = vmatpush1.bf16.msra.mxu0 0
        %1112 = vmatprep.subr.bf16.mxu0 0
        %1113 = vmatpush1.bf16.msra.mxu0 0
        %1114 = vmatprep.subr.bf16.mxu0 0
        %1115 = vmatpush1.bf16.msra.mxu0 0
        %1116 = vmatprep.subr.bf16.mxu0 0
        %1117 = vmatpush1.bf16.msra.mxu0 %v946
        %1118 = vmatprep.subr.bf16.mxu0 0
        %1119 = vmatpush1.bf16.msra.mxu0 %v945
        %1120 = vmatprep.subr.bf16.mxu0 0
        %1121 = vmatpush2.bf16.msra.mxu0 0
        %1122 = vmatprep.subr.bf16.mxu0 0
        %1123 = vmatpush2.bf16.msra.mxu0 0
        %1124 = vmatprep.subr.bf16.mxu0 0
        %1125 = vmatpush2.bf16.msra.mxu0 0
        %1126 = vmatprep.subr.bf16.mxu0 0
        %1127 = vmatpush2.bf16.msra.mxu0 0
        %1128 = vmatprep.subr.bf16.mxu0 0
        %1129 = vmatpush2.bf16.msra.mxu0 0
        %1130 = vmatprep.subr.bf16.mxu0 0
        %1131 = vmatpush2.bf16.msra.mxu0 0
        %1132 = vmatprep.subr.bf16.mxu0 0
        %1133 = vmatpush2.bf16.msra.mxu0 0
        %1134 = vmatprep.subr.bf16.mxu0 0
        %1135 = vmatpush2.bf16.msra.mxu0 0
        %1136 = vmatprep.mubr.bf16.mxu0 0
        %1137 = vmatmul.mubr.bf16.gmra.mxu0 %v1099
        %v1138 = vpop.f32.mrf.mxu0
        %v1139 = vadd.f32 0.0, %v1138
        %v1140 = vpop.f32.mrf.mxu0
        %v1141 = vpop.f32.mrf.mxu0
        %v1142 = vadd.f32 0.0, %v1141
        %v1143 = vpop.f32.mrf.mxu0
        %1144 = vmatprep.mubr.bf16.mxu0 0
        %1145 = vmatmul.mubr.bf16.gmra.mxu0 %v1102
        %v1146 = vpop.f32.mrf.mxu0
        %v1147 = vadd.f32 0.0, %v1146
        %v1148 = vpop.f32.mrf.mxu0
        %v1149 = vpop.f32.mrf.mxu0
        %v1150 = vadd.f32 0.0, %v1149
        %v1151 = vpop.f32.mrf.mxu0
        %1152 = vdwg.mxu0
        %v1157 = vunpack.c.l.b16 %v881
        %v1158 = vunpack.c.l.b16 %v882
        %v1159 = vunpack.c.l.b16 %v883
        %v1160 = vunpack.c.l.b16 %v884
        %v1161 = vpack.c.b16 %v1158, %v1157
        %v1162 = vpack.c.b16 %v1160, %v1159
        %v1164 = vsel %vm967, %v1161, 0
        %v1167 = vsel %vm967, %v1162, 0
        %1169 = vmatprep.subr.bf16.mxu0 0
        %1170 = vmatpush1.bf16.msra.mxu0 0
        %1171 = vmatprep.subr.bf16.mxu0 0
        %1172 = vmatpush1.bf16.msra.mxu0 0
        %1173 = vmatprep.subr.bf16.mxu0 0
        %1174 = vmatpush1.bf16.msra.mxu0 0
        %1175 = vmatprep.subr.bf16.mxu0 0
        %1176 = vmatpush1.bf16.msra.mxu0 0
        %1177 = vmatprep.subr.bf16.mxu0 0
        %1178 = vmatpush1.bf16.msra.mxu0 0
        %1179 = vmatprep.subr.bf16.mxu0 0
        %1180 = vmatpush1.bf16.msra.mxu0 0
        %1181 = vmatprep.subr.bf16.mxu0 0
        %1182 = vmatpush1.bf16.msra.mxu0 %v948
        %1183 = vmatprep.subr.bf16.mxu0 0
        %1184 = vmatpush1.bf16.msra.mxu0 %v947
        %1185 = vmatprep.subr.bf16.mxu0 0
        %1186 = vmatpush2.bf16.msra.mxu0 0
        %1187 = vmatprep.subr.bf16.mxu0 0
        %1188 = vmatpush2.bf16.msra.mxu0 0
        %1189 = vmatprep.subr.bf16.mxu0 0
        %1190 = vmatpush2.bf16.msra.mxu0 0
        %1191 = vmatprep.subr.bf16.mxu0 0
        %1192 = vmatpush2.bf16.msra.mxu0 0
        %1193 = vmatprep.subr.bf16.mxu0 0
        %1194 = vmatpush2.bf16.msra.mxu0 0
        %1195 = vmatprep.subr.bf16.mxu0 0
        %1196 = vmatpush2.bf16.msra.mxu0 0
        %1197 = vmatprep.subr.bf16.mxu0 0
        %1198 = vmatpush2.bf16.msra.mxu0 0
        %1199 = vmatprep.subr.bf16.mxu0 0
        %1200 = vmatpush2.bf16.msra.mxu0 0
        %1201 = vmatprep.mubr.bf16.mxu0 0
        %1202 = vmatmul.mubr.bf16.gmra.mxu0 %v1164
        %v1203 = vpop.f32.mrf.mxu0
        %v1204 = vadd.f32 0.0, %v1203
        %v1205 = vpop.f32.mrf.mxu0
        %v1206 = vpop.f32.mrf.mxu0
        %v1207 = vadd.f32 0.0, %v1206
        %v1208 = vpop.f32.mrf.mxu0
        %1209 = vmatprep.mubr.bf16.mxu0 0
        %1210 = vmatmul.mubr.bf16.gmra.mxu0 %v1167
        %v1211 = vpop.f32.mrf.mxu0
        %v1212 = vadd.f32 0.0, %v1211
        %v1213 = vpop.f32.mrf.mxu0
        %v1214 = vpop.f32.mrf.mxu0
        %v1215 = vadd.f32 0.0, %v1214
        %v1216 = vpop.f32.mrf.mxu0
        %1217 = vdwg.mxu0
        %v1222 = vunpack.c.l.b16 %v885
        %v1223 = vunpack.c.l.b16 %v886
        %v1224 = vunpack.c.l.b16 %v887
        %v1225 = vunpack.c.l.b16 %v888
        %v1226 = vpack.c.b16 %v1223, %v1222
        %v1227 = vpack.c.b16 %v1225, %v1224
        %v1229 = vsel %vm967, %v1226, 0
        %v1232 = vsel %vm967, %v1227, 0
        %1234 = vmatprep.subr.bf16.mxu0 0
        %1235 = vmatpush1.bf16.msra.mxu0 0
        %1236 = vmatprep.subr.bf16.mxu0 0
        %1237 = vmatpush1.bf16.msra.mxu0 0
        %1238 = vmatprep.subr.bf16.mxu0 0
        %1239 = vmatpush1.bf16.msra.mxu0 0
        %1240 = vmatprep.subr.bf16.mxu0 0
        %1241 = vmatpush1.bf16.msra.mxu0 0
        %1242 = vmatprep.subr.bf16.mxu0 0
        %1243 = vmatpush1.bf16.msra.mxu0 0
        %1244 = vmatprep.subr.bf16.mxu0 0
        %1245 = vmatpush1.bf16.msra.mxu0 0
        %1246 = vmatprep.subr.bf16.mxu0 0
        %1247 = vmatpush1.bf16.msra.mxu0 %v950
        %1248 = vmatprep.subr.bf16.mxu0 0
        %1249 = vmatpush1.bf16.msra.mxu0 %v949
        %1250 = vmatprep.subr.bf16.mxu0 0
        %1251 = vmatpush2.bf16.msra.mxu0 0
        %1252 = vmatprep.subr.bf16.mxu0 0
        %1253 = vmatpush2.bf16.msra.mxu0 0
        %1254 = vmatprep.subr.bf16.mxu0 0
        %1255 = vmatpush2.bf16.msra.mxu0 0
        %1256 = vmatprep.subr.bf16.mxu0 0
        %1257 = vmatpush2.bf16.msra.mxu0 0
        %1258 = vmatprep.subr.bf16.mxu0 0
        %1259 = vmatpush2.bf16.msra.mxu0 0
        %1260 = vmatprep.subr.bf16.mxu0 0
        %1261 = vmatpush2.bf16.msra.mxu0 0
        %1262 = vmatprep.subr.bf16.mxu0 0
        %1263 = vmatpush2.bf16.msra.mxu0 0
        %1264 = vmatprep.subr.bf16.mxu0 0
        %1265 = vmatpush2.bf16.msra.mxu0 0
        %1266 = vmatprep.mubr.bf16.mxu0 0
        %1267 = vmatmul.mubr.bf16.gmra.mxu0 %v1229
        %v1268 = vpop.f32.mrf.mxu0
        %v1269 = vadd.f32 0.0, %v1268
        %v1270 = vpop.f32.mrf.mxu0
        %v1271 = vpop.f32.mrf.mxu0
        %v1272 = vadd.f32 0.0, %v1271
        %v1273 = vpop.f32.mrf.mxu0
        %1274 = vmatprep.mubr.bf16.mxu0 0
        %1275 = vmatmul.mubr.bf16.gmra.mxu0 %v1232
        %v1276 = vpop.f32.mrf.mxu0
        %v1277 = vadd.f32 0.0, %v1276
        %v1278 = vpop.f32.mrf.mxu0
        %v1279 = vpop.f32.mrf.mxu0
        %v1280 = vadd.f32 0.0, %v1279
        %v1281 = vpop.f32.mrf.mxu0
        %1282 = vdwg.mxu0
        %v1287 = vunpack.c.l.b16 %v889
        %v1288 = vunpack.c.l.b16 %v890
        %v1289 = vunpack.c.l.b16 %v891
        %v1290 = vunpack.c.l.b16 %v892
        %v1291 = vpack.c.b16 %v1288, %v1287
        %v1292 = vpack.c.b16 %v1290, %v1289
        %v1294 = vsel %vm967, %v1291, 0
        %v1297 = vsel %vm967, %v1292, 0
        %1299 = vmatprep.subr.bf16.mxu0 0
        %1300 = vmatpush1.bf16.msra.mxu0 0
        %1301 = vmatprep.subr.bf16.mxu0 0
        %1302 = vmatpush1.bf16.msra.mxu0 0
        %1303 = vmatprep.subr.bf16.mxu0 0
        %1304 = vmatpush1.bf16.msra.mxu0 0
        %1305 = vmatprep.subr.bf16.mxu0 0
        %1306 = vmatpush1.bf16.msra.mxu0 0
        %1307 = vmatprep.subr.bf16.mxu0 0
        %1308 = vmatpush1.bf16.msra.mxu0 0
        %1309 = vmatprep.subr.bf16.mxu0 0
        %1310 = vmatpush1.bf16.msra.mxu0 0
        %1311 = vmatprep.subr.bf16.mxu0 0
        %1312 = vmatpush1.bf16.msra.mxu0 %v952
        %1313 = vmatprep.subr.bf16.mxu0 0
        %1314 = vmatpush1.bf16.msra.mxu0 %v951
        %1315 = vmatprep.subr.bf16.mxu0 0
        %1316 = vmatpush2.bf16.msra.mxu0 0
        %1317 = vmatprep.subr.bf16.mxu0 0
        %1318 = vmatpush2.bf16.msra.mxu0 0
        %1319 = vmatprep.subr.bf16.mxu0 0
        %1320 = vmatpush2.bf16.msra.mxu0 0
        %1321 = vmatprep.subr.bf16.mxu0 0
        %1322 = vmatpush2.bf16.msra.mxu0 0
        %1323 = vmatprep.subr.bf16.mxu0 0
        %1324 = vmatpush2.bf16.msra.mxu0 0
        %1325 = vmatprep.subr.bf16.mxu0 0
        %1326 = vmatpush2.bf16.msra.mxu0 0
        %1327 = vmatprep.subr.bf16.mxu0 0
        %1328 = vmatpush2.bf16.msra.mxu0 0
        %1329 = vmatprep.subr.bf16.mxu0 0
        %1330 = vmatpush2.bf16.msra.mxu0 0
        %1331 = vmatprep.mubr.bf16.mxu0 0
        %1332 = vmatmul.mubr.bf16.gmra.mxu0 %v1294
        %v1333 = vpop.f32.mrf.mxu0
        %v1334 = vadd.f32 0.0, %v1333
        %v1335 = vpop.f32.mrf.mxu0
        %v1336 = vpop.f32.mrf.mxu0
        %v1337 = vadd.f32 0.0, %v1336
        %v1338 = vpop.f32.mrf.mxu0
        %1339 = vmatprep.mubr.bf16.mxu0 0
        %1340 = vmatmul.mubr.bf16.gmra.mxu0 %v1297
        %v1341 = vpop.f32.mrf.mxu0
        %v1342 = vadd.f32 0.0, %v1341
        %v1343 = vpop.f32.mrf.mxu0
        %v1344 = vpop.f32.mrf.mxu0
        %v1345 = vadd.f32 0.0, %v1344
        %v1346 = vpop.f32.mrf.mxu0
        %1347 = vdwg.mxu0
        %v1352 = vunpack.c.l.b16 %v893
        %v1353 = vunpack.c.l.b16 %v894
        %v1354 = vunpack.c.l.b16 %v895
        %v1355 = vunpack.c.l.b16 %v896
        %v1356 = vpack.c.b16 %v1353, %v1352
        %v1357 = vpack.c.b16 %v1355, %v1354
        %v1359 = vsel %vm967, %v1356, 0
        %v1362 = vsel %vm967, %v1357, 0
        %1364 = vmatprep.subr.bf16.mxu0 0
        %1365 = vmatpush1.bf16.msra.mxu0 0
        %1366 = vmatprep.subr.bf16.mxu0 0
        %1367 = vmatpush1.bf16.msra.mxu0 0
        %1368 = vmatprep.subr.bf16.mxu0 0
        %1369 = vmatpush1.bf16.msra.mxu0 0
        %1370 = vmatprep.subr.bf16.mxu0 0
        %1371 = vmatpush1.bf16.msra.mxu0 0
        %1372 = vmatprep.subr.bf16.mxu0 0
        %1373 = vmatpush1.bf16.msra.mxu0 0
        %1374 = vmatprep.subr.bf16.mxu0 0
        %1375 = vmatpush1.bf16.msra.mxu0 0
        %1376 = vmatprep.subr.bf16.mxu0 0
        %1377 = vmatpush1.bf16.msra.mxu0 %v954
        %1378 = vmatprep.subr.bf16.mxu0 0
        %1379 = vmatpush1.bf16.msra.mxu0 %v953
        %1380 = vmatprep.subr.bf16.mxu0 0
        %1381 = vmatpush2.bf16.msra.mxu0 0
        %1382 = vmatprep.subr.bf16.mxu0 0
        %1383 = vmatpush2.bf16.msra.mxu0 0
        %1384 = vmatprep.subr.bf16.mxu0 0
        %1385 = vmatpush2.bf16.msra.mxu0 0
        %1386 = vmatprep.subr.bf16.mxu0 0
        %1387 = vmatpush2.bf16.msra.mxu0 0
        %1388 = vmatprep.subr.bf16.mxu0 0
        %1389 = vmatpush2.bf16.msra.mxu0 0
        %1390 = vmatprep.subr.bf16.mxu0 0
        %1391 = vmatpush2.bf16.msra.mxu0 0
        %1392 = vmatprep.subr.bf16.mxu0 0
        %1393 = vmatpush2.bf16.msra.mxu0 0
        %1394 = vmatprep.subr.bf16.mxu0 0
        %1395 = vmatpush2.bf16.msra.mxu0 0
        %1396 = vmatprep.mubr.bf16.mxu0 0
        %1397 = vmatmul.mubr.bf16.gmra.mxu0 %v1359
        %v1398 = vpop.f32.mrf.mxu0
        %v1399 = vadd.f32 0.0, %v1398
        %v1400 = vpop.f32.mrf.mxu0
        %v1401 = vpop.f32.mrf.mxu0
        %v1402 = vadd.f32 0.0, %v1401
        %v1403 = vpop.f32.mrf.mxu0
        %1404 = vmatprep.mubr.bf16.mxu0 0
        %1405 = vmatmul.mubr.bf16.gmra.mxu0 %v1362
        %v1406 = vpop.f32.mrf.mxu0
        %v1407 = vadd.f32 0.0, %v1406
        %v1408 = vpop.f32.mrf.mxu0
        %v1409 = vpop.f32.mrf.mxu0
        %v1410 = vadd.f32 0.0, %v1409
        %v1411 = vpop.f32.mrf.mxu0
        %1412 = vdwg.mxu0
        %v1417 = vunpack.c.l.b16 %v897
        %v1418 = vunpack.c.l.b16 %v898
        %v1419 = vunpack.c.l.b16 %v899
        %v1420 = vunpack.c.l.b16 %v900
        %v1421 = vpack.c.b16 %v1418, %v1417
        %v1422 = vpack.c.b16 %v1420, %v1419
        %v1424 = vsel %vm967, %v1421, 0
        %v1427 = vsel %vm967, %v1422, 0
        %1429 = vmatprep.subr.bf16.mxu0 0
        %1430 = vmatpush1.bf16.msra.mxu0 0
        %1431 = vmatprep.subr.bf16.mxu0 0
        %1432 = vmatpush1.bf16.msra.mxu0 0
        %1433 = vmatprep.subr.bf16.mxu0 0
        %1434 = vmatpush1.bf16.msra.mxu0 0
        %1435 = vmatprep.subr.bf16.mxu0 0
        %1436 = vmatpush1.bf16.msra.mxu0 0
        %1437 = vmatprep.subr.bf16.mxu0 0
        %1438 = vmatpush1.bf16.msra.mxu0 0
        %1439 = vmatprep.subr.bf16.mxu0 0
        %1440 = vmatpush1.bf16.msra.mxu0 0
        %1441 = vmatprep.subr.bf16.mxu0 0
        %1442 = vmatpush1.bf16.msra.mxu0 %v956
        %1443 = vmatprep.subr.bf16.mxu0 0
        %1444 = vmatpush1.bf16.msra.mxu0 %v955
        %1445 = vmatprep.subr.bf16.mxu0 0
        %1446 = vmatpush2.bf16.msra.mxu0 0
        %1447 = vmatprep.subr.bf16.mxu0 0
        %1448 = vmatpush2.bf16.msra.mxu0 0
        %1449 = vmatprep.subr.bf16.mxu0 0
        %1450 = vmatpush2.bf16.msra.mxu0 0
        %1451 = vmatprep.subr.bf16.mxu0 0
        %1452 = vmatpush2.bf16.msra.mxu0 0
        %1453 = vmatprep.subr.bf16.mxu0 0
        %1454 = vmatpush2.bf16.msra.mxu0 0
        %1455 = vmatprep.subr.bf16.mxu0 0
        %1456 = vmatpush2.bf16.msra.mxu0 0
        %1457 = vmatprep.subr.bf16.mxu0 0
        %1458 = vmatpush2.bf16.msra.mxu0 0
        %1459 = vmatprep.subr.bf16.mxu0 0
        %1460 = vmatpush2.bf16.msra.mxu0 0
        %1461 = vmatprep.mubr.bf16.mxu0 0
        %1462 = vmatmul.mubr.bf16.gmra.mxu0 %v1424
        %v1463 = vpop.f32.mrf.mxu0
        %v1464 = vadd.f32 0.0, %v1463
        %v1465 = vpop.f32.mrf.mxu0
        %v1466 = vpop.f32.mrf.mxu0
        %v1467 = vadd.f32 0.0, %v1466
        %v1468 = vpop.f32.mrf.mxu0
        %1469 = vmatprep.mubr.bf16.mxu0 0
        %1470 = vmatmul.mubr.bf16.gmra.mxu0 %v1427
        %v1471 = vpop.f32.mrf.mxu0
        %v1472 = vadd.f32 0.0, %v1471
        %v1473 = vpop.f32.mrf.mxu0
        %v1474 = vpop.f32.mrf.mxu0
        %v1475 = vadd.f32 0.0, %v1474
        %v1476 = vpop.f32.mrf.mxu0
        %1477 = vdwg.mxu0
        %v1478 = vunpack.c.l.bf16 %v837
        %v1479 = vunpack.c.l.bf16 %v838
        %v1480 = vunpack.c.l.bf16 %v839
        %v1481 = vunpack.c.l.bf16 %v840
        %v1482 = vunpack.c.l.bf16 %v841
        %v1483 = vunpack.c.l.bf16 %v842
        %v1484 = vunpack.c.l.bf16 %v843
        %v1485 = vunpack.c.l.bf16 %v844
        %v1486 = vunpack.c.l.bf16 %v845
        %v1487 = vunpack.c.l.bf16 %v846
        %v1488 = vunpack.c.l.bf16 %v847
        %v1489 = vunpack.c.l.bf16 %v848
        %v1490 = vunpack.c.l.bf16 %v849
        %v1491 = vunpack.c.l.bf16 %v850
        %v1492 = vunpack.c.l.bf16 %v851
        %v1493 = vunpack.c.l.bf16 %v852
        %v1494 = vunpack.c.l.bf16 %v853
        %v1495 = vunpack.c.l.bf16 %v854
        %v1496 = vunpack.c.l.bf16 %v855
        %v1497 = vunpack.c.l.bf16 %v856
        %v1498 = vunpack.c.l.bf16 %v857
        %v1499 = vunpack.c.l.bf16 %v858
        %v1500 = vunpack.c.l.bf16 %v859
        %v1501 = vunpack.c.l.bf16 %v860
        %v1502 = vunpack.c.l.bf16 %v861
        %v1503 = vunpack.c.l.bf16 %v862
        %v1504 = vunpack.c.l.bf16 %v863
        %v1505 = vunpack.c.l.bf16 %v864
        %v1506 = vunpack.c.l.bf16 %v865
        %v1507 = vunpack.c.l.bf16 %v866
        %v1508 = vunpack.c.l.bf16 %v867
        %v1509 = vunpack.c.l.bf16 %v868
        %v1510 = vadd.f32 %v1009, %v1478
        %v1511 = vadd.f32 %v1012, %v1479
        %v1512 = vadd.f32 %v1017, %v1480
        %v1513 = vadd.f32 %v1020, %v1481
        %v1514 = vadd.f32 %v1074, %v1482
        %v1515 = vadd.f32 %v1077, %v1483
        %v1516 = vadd.f32 %v1082, %v1484
        %v1517 = vadd.f32 %v1085, %v1485
        %v1518 = vadd.f32 %v1139, %v1486
        %v1519 = vadd.f32 %v1142, %v1487
        %v1520 = vadd.f32 %v1147, %v1488
        %v1521 = vadd.f32 %v1150, %v1489
        %v1522 = vadd.f32 %v1204, %v1490
        %v1523 = vadd.f32 %v1207, %v1491
        %v1524 = vadd.f32 %v1212, %v1492
        %v1525 = vadd.f32 %v1215, %v1493
        %v1526 = vadd.f32 %v1269, %v1494
        %v1527 = vadd.f32 %v1272, %v1495
        %v1528 = vadd.f32 %v1277, %v1496
        %v1529 = vadd.f32 %v1280, %v1497
        %v1530 = vadd.f32 %v1334, %v1498
        %v1531 = vadd.f32 %v1337, %v1499
        %v1532 = vadd.f32 %v1342, %v1500
        %v1533 = vadd.f32 %v1345, %v1501
        %v1534 = vadd.f32 %v1399, %v1502
        %v1535 = vadd.f32 %v1402, %v1503
        %v1536 = vadd.f32 %v1407, %v1504
        %v1537 = vadd.f32 %v1410, %v1505
        %v1538 = vadd.f32 %v1464, %v1506
        %v1539 = vadd.f32 %v1467, %v1507
        %v1540 = vadd.f32 %v1472, %v1508
        %v1541 = vadd.f32 %v1475, %v1509
        %v1542 = vlaneseq
        %v1543 = vshrl.u32 %v1542, 7
        %v1544 = vsub.s32 0, %v1543
        %v1545 = vrot.slane %v937, %v1544
        %v1546 = vmul.f32 %v1545, %v711
        %v1547 = vmul.f32 %v1545, %v714
        %v1548 = vmul.f32 %v1545, %v719
        %v1549 = vmul.f32 %v1545, %v722
        %v1550 = vmul.f32 %v1545, %v727
        %v1551 = vmul.f32 %v1545, %v730
        %v1552 = vmul.f32 %v1545, %v735
        %v1553 = vmul.f32 %v1545, %v738
        %v1554 = vmul.f32 %v1545, %v743
        %v1555 = vmul.f32 %v1545, %v746
        %v1556 = vmul.f32 %v1545, %v751
        %v1557 = vmul.f32 %v1545, %v754
        %v1558 = vmul.f32 %v1545, %v759
        %v1559 = vmul.f32 %v1545, %v762
        %v1560 = vmul.f32 %v1545, %v767
        %v1561 = vmul.f32 %v1545, %v770
        %v1562 = vmul.f32 %v1545, %v775
        %v1563 = vmul.f32 %v1545, %v778
        %v1564 = vmul.f32 %v1545, %v783
        %v1565 = vmul.f32 %v1545, %v786
        %v1566 = vmul.f32 %v1545, %v791
        %v1567 = vmul.f32 %v1545, %v794
        %v1568 = vmul.f32 %v1545, %v799
        %v1569 = vmul.f32 %v1545, %v802
        %v1570 = vmul.f32 %v1545, %v807
        %v1571 = vmul.f32 %v1545, %v810
        %v1572 = vmul.f32 %v1545, %v815
        %v1573 = vmul.f32 %v1545, %v818
        %v1574 = vmul.f32 %v1545, %v823
        %v1575 = vmul.f32 %v1545, %v826
        %v1576 = vmul.f32 %v1545, %v831
        %v1577 = vmul.f32 %v1545, %v834
        %v1578 = vadd.f32 %v1546, %v1510
        %v1579 = vadd.f32 %v1547, %v1511
        %v1580 = vadd.f32 %v1548, %v1512
        %v1581 = vadd.f32 %v1549, %v1513
        %v1582 = vadd.f32 %v1550, %v1514
        %v1583 = vadd.f32 %v1551, %v1515
        %v1584 = vadd.f32 %v1552, %v1516
        %v1585 = vadd.f32 %v1553, %v1517
        %v1586 = vadd.f32 %v1554, %v1518
        %v1587 = vadd.f32 %v1555, %v1519
        %v1588 = vadd.f32 %v1556, %v1520
        %v1589 = vadd.f32 %v1557, %v1521
        %v1590 = vadd.f32 %v1558, %v1522
        %v1591 = vadd.f32 %v1559, %v1523
        %v1592 = vadd.f32 %v1560, %v1524
        %v1593 = vadd.f32 %v1561, %v1525
        %v1594 = vadd.f32 %v1562, %v1526
        %v1595 = vadd.f32 %v1563, %v1527
        %v1596 = vadd.f32 %v1564, %v1528
        %v1597 = vadd.f32 %v1565, %v1529
        %v1598 = vadd.f32 %v1566, %v1530
        %v1599 = vadd.f32 %v1567, %v1531
        %v1600 = vadd.f32 %v1568, %v1532
        %v1601 = vadd.f32 %v1569, %v1533
        %v1602 = vadd.f32 %v1570, %v1534
        %v1603 = vadd.f32 %v1571, %v1535
        %v1604 = vadd.f32 %v1572, %v1536
        %v1605 = vadd.f32 %v1573, %v1537
        %v1606 = vadd.f32 %v1574, %v1538
        %v1607 = vadd.f32 %v1575, %v1539
        %v1608 = vadd.f32 %v1576, %v1540
        %v1609 = vadd.f32 %v1577, %v1541
        %v1610 = vpack.c.bf16 %v1579, %v1578
        %v1611 = vpack.c.bf16 %v1581, %v1580
        %v1612 = vpack.c.bf16 %v1583, %v1582
        %v1613 = vpack.c.bf16 %v1585, %v1584
        %v1614 = vpack.c.bf16 %v1587, %v1586
        %v1615 = vpack.c.bf16 %v1589, %v1588
        %v1616 = vpack.c.bf16 %v1591, %v1590
        %v1617 = vpack.c.bf16 %v1593, %v1592
        %v1618 = vpack.c.bf16 %v1595, %v1594
        %v1619 = vpack.c.bf16 %v1597, %v1596
        %v1620 = vpack.c.bf16 %v1599, %v1598
        %v1621 = vpack.c.bf16 %v1601, %v1600
        %v1622 = vpack.c.bf16 %v1603, %v1602
        %v1623 = vpack.c.bf16 %v1605, %v1604
        %v1624 = vpack.c.bf16 %v1607, %v1606
        %v1625 = vpack.c.bf16 %v1609, %v1608
        %v1626 = vld [vmem:[%s7] sm:$0xf]
        %v1627 = vld [vmem:[%s7 + $0x4] sm:$0xf]
        %v1628 = vld [vmem:[%s7 + $0x8] sm:$0xf]
        %v1629 = vld [vmem:[%s7 + $0xc] sm:$0xf]
        %v1630 = vlaneseq
        %v1631 = vshrl.u32 %v1630, 7
        %v1632 = vsub.s32 0, %v1631
        %v1633 = vrot.slane %v938, %v1632
        %v1638 = vunpack.c.l.b16 %v1626
        %v1639 = vunpack.c.l.b16 %v1627
        %v1640 = vunpack.c.l.b16 %v1628
        %v1641 = vunpack.c.l.b16 %v1629
        %v1642 = vpack.c.b16 %v1639, %v1638
        %v1643 = vpack.c.b16 %v1641, %v1640
        %v1647 = vsel %vm967, %v1610, 0
        %v1650 = vsel %vm967, %v1611, 0
        %v1653 = vsel %vm967, %v1612, 0
        %v1656 = vsel %vm967, %v1613, 0
        %v1659 = vsel %vm967, %v1614, 0
        %v1662 = vsel %vm967, %v1615, 0
        %v1665 = vsel %vm967, %v1616, 0
        %v1668 = vsel %vm967, %v1617, 0
        %v1671 = vsel %vm967, %v1618, 0
        %v1674 = vsel %vm967, %v1619, 0
        %v1677 = vsel %vm967, %v1620, 0
        %v1680 = vsel %vm967, %v1621, 0
        %v1683 = vsel %vm967, %v1622, 0
        %v1686 = vsel %vm967, %v1623, 0
        %v1689 = vsel %vm967, %v1624, 0
        %v1692 = vsel %vm967, %v1625, 0
        %1694 = vmatprep.subr.bf16.mxu0 0
        %1695 = vmatpush1.bf16.msra.mxu0 0
        %1696 = vmatprep.subr.bf16.mxu0 0
        %1697 = vmatpush1.bf16.msra.mxu0 0
        %1698 = vmatprep.subr.bf16.mxu0 0
        %1699 = vmatpush1.bf16.msra.mxu0 0
        %1700 = vmatprep.subr.bf16.mxu0 0
        %1701 = vmatpush1.bf16.msra.mxu0 0
        %1702 = vmatprep.subr.bf16.mxu0 0
        %1703 = vmatpush1.bf16.msra.mxu0 0
        %1704 = vmatprep.subr.bf16.mxu0 0
        %1705 = vmatpush1.bf16.msra.mxu0 0
        %1706 = vmatprep.subr.bf16.mxu0 0
        %1707 = vmatpush1.bf16.msra.mxu0 %v1643
        %1708 = vmatprep.subr.bf16.mxu0 0
        %1709 = vmatpush1.bf16.msra.mxu0 %v1642
        %1710 = vmatprep.subr.bf16.mxu0 0
        %1711 = vmatpush2.bf16.msra.mxu0 0
        %1712 = vmatprep.subr.bf16.mxu0 0
        %1713 = vmatpush2.bf16.msra.mxu0 0
        %1714 = vmatprep.subr.bf16.mxu0 0
        %1715 = vmatpush2.bf16.msra.mxu0 0
        %1716 = vmatprep.subr.bf16.mxu0 0
        %1717 = vmatpush2.bf16.msra.mxu0 0
        %1718 = vmatprep.subr.bf16.mxu0 0
        %1719 = vmatpush2.bf16.msra.mxu0 0
        %1720 = vmatprep.subr.bf16.mxu0 0
        %1721 = vmatpush2.bf16.msra.mxu0 0
        %1722 = vmatprep.subr.bf16.mxu0 0
        %1723 = vmatpush2.bf16.msra.mxu0 0
        %1724 = vmatprep.subr.bf16.mxu0 0
        %1725 = vmatpush2.bf16.msra.mxu0 0
        %1726 = vmatprep.mubr.bf16.mxu0 0
        %1727 = vmatmul.mubr.bf16.gmra.mxu0 %v1647
        %v1728 = vpop.f32.mrf.mxu0
        %v1729 = vadd.f32 %v1633, %v1728
        %v1730 = vpop.f32.mrf.mxu0
        %v1731 = vpop.f32.mrf.mxu0
        %v1732 = vadd.f32 %v1633, %v1731
        %v1733 = vpop.f32.mrf.mxu0
        %1734 = vmatprep.mubr.bf16.mxu0 0
        %1735 = vmatmul.mubr.bf16.gmra.mxu0 %v1650
        %v1736 = vpop.f32.mrf.mxu0
        %v1737 = vadd.f32 %v1633, %v1736
        %v1738 = vpop.f32.mrf.mxu0
        %v1739 = vpop.f32.mrf.mxu0
        %v1740 = vadd.f32 %v1633, %v1739
        %v1741 = vpop.f32.mrf.mxu0
        %1742 = vmatprep.mubr.bf16.mxu0 0
        %1743 = vmatmul.mubr.bf16.gmra.mxu0 %v1653
        %v1744 = vpop.f32.mrf.mxu0
        %v1745 = vadd.f32 %v1633, %v1744
        %v1746 = vpop.f32.mrf.mxu0
        %v1747 = vpop.f32.mrf.mxu0
        %v1748 = vadd.f32 %v1633, %v1747
        %v1749 = vpop.f32.mrf.mxu0
        %1750 = vmatprep.mubr.bf16.mxu0 0
        %1751 = vmatmul.mubr.bf16.gmra.mxu0 %v1656
        %v1752 = vpop.f32.mrf.mxu0
        %v1753 = vadd.f32 %v1633, %v1752
        %v1754 = vpop.f32.mrf.mxu0
        %v1755 = vpop.f32.mrf.mxu0
        %v1756 = vadd.f32 %v1633, %v1755
        %v1757 = vpop.f32.mrf.mxu0
        %1758 = vmatprep.mubr.bf16.mxu0 0
        %1759 = vmatmul.mubr.bf16.gmra.mxu0 %v1659
        %v1760 = vpop.f32.mrf.mxu0
        %v1761 = vadd.f32 %v1633, %v1760
        %v1762 = vpop.f32.mrf.mxu0
        %v1763 = vpop.f32.mrf.mxu0
        %v1764 = vadd.f32 %v1633, %v1763
        %v1765 = vpop.f32.mrf.mxu0
        %1766 = vmatprep.mubr.bf16.mxu0 0
        %1767 = vmatmul.mubr.bf16.gmra.mxu0 %v1662
        %v1768 = vpop.f32.mrf.mxu0
        %v1769 = vadd.f32 %v1633, %v1768
        %v1770 = vpop.f32.mrf.mxu0
        %v1771 = vpop.f32.mrf.mxu0
        %v1772 = vadd.f32 %v1633, %v1771
        %v1773 = vpop.f32.mrf.mxu0
        %1774 = vmatprep.mubr.bf16.mxu0 0
        %1775 = vmatmul.mubr.bf16.gmra.mxu0 %v1665
        %v1776 = vpop.f32.mrf.mxu0
        %v1777 = vadd.f32 %v1633, %v1776
        %v1778 = vpop.f32.mrf.mxu0
        %v1779 = vpop.f32.mrf.mxu0
        %v1780 = vadd.f32 %v1633, %v1779
        %v1781 = vpop.f32.mrf.mxu0
        %1782 = vmatprep.mubr.bf16.mxu0 0
        %1783 = vmatmul.mubr.bf16.gmra.mxu0 %v1668
        %v1784 = vpop.f32.mrf.mxu0
        %v1785 = vadd.f32 %v1633, %v1784
        %v1786 = vpop.f32.mrf.mxu0
        %v1787 = vpop.f32.mrf.mxu0
        %v1788 = vadd.f32 %v1633, %v1787
        %v1789 = vpop.f32.mrf.mxu0
        %1790 = vmatprep.mubr.bf16.mxu0 0
        %1791 = vmatmul.mubr.bf16.gmra.mxu0 %v1671
        %v1792 = vpop.f32.mrf.mxu0
        %v1793 = vadd.f32 %v1633, %v1792
        %v1794 = vpop.f32.mrf.mxu0
        %v1795 = vpop.f32.mrf.mxu0
        %v1796 = vadd.f32 %v1633, %v1795
        %v1797 = vpop.f32.mrf.mxu0
        %1798 = vmatprep.mubr.bf16.mxu0 0
        %1799 = vmatmul.mubr.bf16.gmra.mxu0 %v1674
        %v1800 = vpop.f32.mrf.mxu0
        %v1801 = vadd.f32 %v1633, %v1800
        %v1802 = vpop.f32.mrf.mxu0
        %v1803 = vpop.f32.mrf.mxu0
        %v1804 = vadd.f32 %v1633, %v1803
        %v1805 = vpop.f32.mrf.mxu0
        %1806 = vmatprep.mubr.bf16.mxu0 0
        %1807 = vmatmul.mubr.bf16.gmra.mxu0 %v1677
        %v1808 = vpop.f32.mrf.mxu0
        %v1809 = vadd.f32 %v1633, %v1808
        %v1810 = vpop.f32.mrf.mxu0
        %v1811 = vpop.f32.mrf.mxu0
        %v1812 = vadd.f32 %v1633, %v1811
        %v1813 = vpop.f32.mrf.mxu0
        %1814 = vmatprep.mubr.bf16.mxu0 0
        %1815 = vmatmul.mubr.bf16.gmra.mxu0 %v1680
        %v1816 = vpop.f32.mrf.mxu0
        %v1817 = vadd.f32 %v1633, %v1816
        %v1818 = vpop.f32.mrf.mxu0
        %v1819 = vpop.f32.mrf.mxu0
        %v1820 = vadd.f32 %v1633, %v1819
        %v1821 = vpop.f32.mrf.mxu0
        %1822 = vmatprep.mubr.bf16.mxu0 0
        %1823 = vmatmul.mubr.bf16.gmra.mxu0 %v1683
        %v1824 = vpop.f32.mrf.mxu0
        %v1825 = vadd.f32 %v1633, %v1824
        %v1826 = vpop.f32.mrf.mxu0
        %v1827 = vpop.f32.mrf.mxu0
        %v1828 = vadd.f32 %v1633, %v1827
        %v1829 = vpop.f32.mrf.mxu0
        %1830 = vmatprep.mubr.bf16.mxu0 0
        %1831 = vmatmul.mubr.bf16.gmra.mxu0 %v1686
        %v1832 = vpop.f32.mrf.mxu0
        %v1833 = vadd.f32 %v1633, %v1832
        %v1834 = vpop.f32.mrf.mxu0
        %v1835 = vpop.f32.mrf.mxu0
        %v1836 = vadd.f32 %v1633, %v1835
        %v1837 = vpop.f32.mrf.mxu0
        %1838 = vmatprep.mubr.bf16.mxu0 0
        %1839 = vmatmul.mubr.bf16.gmra.mxu0 %v1689
        %v1840 = vpop.f32.mrf.mxu0
        %v1841 = vadd.f32 %v1633, %v1840
        %v1842 = vpop.f32.mrf.mxu0
        %v1843 = vpop.f32.mrf.mxu0
        %v1844 = vadd.f32 %v1633, %v1843
        %v1845 = vpop.f32.mrf.mxu0
        %1846 = vmatprep.mubr.bf16.mxu0 0
        %1847 = vmatmul.mubr.bf16.gmra.mxu0 %v1692
        %v1848 = vpop.f32.mrf.mxu0
        %v1849 = vadd.f32 %v1633, %v1848
        %v1850 = vpop.f32.mrf.mxu0
        %v1851 = vpop.f32.mrf.mxu0
        %v1852 = vadd.f32 %v1633, %v1851
        %v1853 = vpop.f32.mrf.mxu0
        %1854 = vdwg.mxu0
        %v1855 = vmax.f32 %v1729, 0.0
        %v1856 = vmax.f32 %v1732, 0.0
        %v1857 = vmax.f32 %v1737, 0.0
        %v1858 = vmax.f32 %v1740, 0.0
        %v1859 = vmax.f32 %v1745, 0.0
        %v1860 = vmax.f32 %v1748, 0.0
        %v1861 = vmax.f32 %v1753, 0.0
        %v1862 = vmax.f32 %v1756, 0.0
        %v1863 = vmax.f32 %v1761, 0.0
        %v1864 = vmax.f32 %v1764, 0.0
        %v1865 = vmax.f32 %v1769, 0.0
        %v1866 = vmax.f32 %v1772, 0.0
        %v1867 = vmax.f32 %v1777, 0.0
        %v1868 = vmax.f32 %v1780, 0.0
        %v1869 = vmax.f32 %v1785, 0.0
        %v1870 = vmax.f32 %v1788, 0.0
        %v1871 = vmax.f32 %v1793, 0.0
        %v1872 = vmax.f32 %v1796, 0.0
        %v1873 = vmax.f32 %v1801, 0.0
        %v1874 = vmax.f32 %v1804, 0.0
        %v1875 = vmax.f32 %v1809, 0.0
        %v1876 = vmax.f32 %v1812, 0.0
        %v1877 = vmax.f32 %v1817, 0.0
        %v1878 = vmax.f32 %v1820, 0.0
        %v1879 = vmax.f32 %v1825, 0.0
        %v1880 = vmax.f32 %v1828, 0.0
        %v1881 = vmax.f32 %v1833, 0.0
        %v1882 = vmax.f32 %v1836, 0.0
        %v1883 = vmax.f32 %v1841, 0.0
        %v1884 = vmax.f32 %v1844, 0.0
        %v1885 = vmax.f32 %v1849, 0.0
        %v1886 = vmax.f32 %v1852, 0.0
        %v1887 = vpack.c.bf16 %v1856, %v1855
        %v1888 = vpack.c.bf16 %v1858, %v1857
        %v1889 = vpack.c.bf16 %v1860, %v1859
        %v1890 = vpack.c.bf16 %v1862, %v1861
        %v1891 = vpack.c.bf16 %v1864, %v1863
        %v1892 = vpack.c.bf16 %v1866, %v1865
        %v1893 = vpack.c.bf16 %v1868, %v1867
        %v1894 = vpack.c.bf16 %v1870, %v1869
        %v1895 = vpack.c.bf16 %v1872, %v1871
        %v1896 = vpack.c.bf16 %v1874, %v1873
        %v1897 = vpack.c.bf16 %v1876, %v1875
        %v1898 = vpack.c.bf16 %v1878, %v1877
        %v1899 = vpack.c.bf16 %v1880, %v1879
        %v1900 = vpack.c.bf16 %v1882, %v1881
        %v1901 = vpack.c.bf16 %v1884, %v1883
        %v1902 = vpack.c.bf16 %v1886, %v1885
        %s1903 = scalar_lea.vmem %s7, 16
        %v1904 = vld [vmem:[%s1903] sm:$0xf]
        %v1905 = vld [vmem:[%s1903 + $0x4] sm:$0xf]
        %v1906 = vld [vmem:[%s1903 + $0x8] sm:$0xf]
        %v1907 = vld [vmem:[%s1903 + $0xc] sm:$0xf]
        %v1908 = vlaneseq
        %v1909 = vshrl.u32 %v1908, 7
        %v1910 = vsub.s32 0, %v1909
        %v1911 = vrot.slane %v939, %v1910
        %v1916 = vunpack.c.l.b16 %v1904
        %v1917 = vunpack.c.l.b16 %v1905
        %v1918 = vunpack.c.l.b16 %v1906
        %v1919 = vunpack.c.l.b16 %v1907
        %v1920 = vpack.c.b16 %v1917, %v1916
        %v1921 = vpack.c.b16 %v1919, %v1918
        %v1925 = vsel %vm967, %v1887, 0
        %v1928 = vsel %vm967, %v1888, 0
        %v1931 = vsel %vm967, %v1889, 0
        %v1934 = vsel %vm967, %v1890, 0
        %v1937 = vsel %vm967, %v1891, 0
        %v1940 = vsel %vm967, %v1892, 0
        %v1943 = vsel %vm967, %v1893, 0
        %v1946 = vsel %vm967, %v1894, 0
        %v1949 = vsel %vm967, %v1895, 0
        %v1952 = vsel %vm967, %v1896, 0
        %v1955 = vsel %vm967, %v1897, 0
        %v1958 = vsel %vm967, %v1898, 0
        %v1961 = vsel %vm967, %v1899, 0
        %v1964 = vsel %vm967, %v1900, 0
        %v1967 = vsel %vm967, %v1901, 0
        %v1970 = vsel %vm967, %v1902, 0
        %1972 = vmatprep.subr.bf16.mxu0 0
        %1973 = vmatpush1.bf16.msra.mxu0 0
        %1974 = vmatprep.subr.bf16.mxu0 0
        %1975 = vmatpush1.bf16.msra.mxu0 0
        %1976 = vmatprep.subr.bf16.mxu0 0
        %1977 = vmatpush1.bf16.msra.mxu0 0
        %1978 = vmatprep.subr.bf16.mxu0 0
        %1979 = vmatpush1.bf16.msra.mxu0 0
        %1980 = vmatprep.subr.bf16.mxu0 0
        %1981 = vmatpush1.bf16.msra.mxu0 0
        %1982 = vmatprep.subr.bf16.mxu0 0
        %1983 = vmatpush1.bf16.msra.mxu0 0
        %1984 = vmatprep.subr.bf16.mxu0 0
        %1985 = vmatpush1.bf16.msra.mxu0 %v1921
        %1986 = vmatprep.subr.bf16.mxu0 0
        %1987 = vmatpush1.bf16.msra.mxu0 %v1920
        %1988 = vmatprep.subr.bf16.mxu0 0
        %1989 = vmatpush2.bf16.msra.mxu0 0
        %1990 = vmatprep.subr.bf16.mxu0 0
        %1991 = vmatpush2.bf16.msra.mxu0 0
        %1992 = vmatprep.subr.bf16.mxu0 0
        %1993 = vmatpush2.bf16.msra.mxu0 0
        %1994 = vmatprep.subr.bf16.mxu0 0
        %1995 = vmatpush2.bf16.msra.mxu0 0
        %1996 = vmatprep.subr.bf16.mxu0 0
        %1997 = vmatpush2.bf16.msra.mxu0 0
        %1998 = vmatprep.subr.bf16.mxu0 0
        %1999 = vmatpush2.bf16.msra.mxu0 0
        %2000 = vmatprep.subr.bf16.mxu0 0
        %2001 = vmatpush2.bf16.msra.mxu0 0
        %2002 = vmatprep.subr.bf16.mxu0 0
        %2003 = vmatpush2.bf16.msra.mxu0 0
        %2004 = vmatprep.mubr.bf16.mxu0 0
        %2005 = vmatmul.mubr.bf16.gmra.mxu0 %v1925
        %v2006 = vpop.f32.mrf.mxu0
        %v2007 = vadd.f32 %v1911, %v2006
        %v2008 = vpop.f32.mrf.mxu0
        %v2009 = vpop.f32.mrf.mxu0
        %v2010 = vadd.f32 %v1911, %v2009
        %v2011 = vpop.f32.mrf.mxu0
        %2012 = vmatprep.mubr.bf16.mxu0 0
        %2013 = vmatmul.mubr.bf16.gmra.mxu0 %v1928
        %v2014 = vpop.f32.mrf.mxu0
        %v2015 = vadd.f32 %v1911, %v2014
        %v2016 = vpop.f32.mrf.mxu0
        %v2017 = vpop.f32.mrf.mxu0
        %v2018 = vadd.f32 %v1911, %v2017
        %v2019 = vpop.f32.mrf.mxu0
        %2020 = vmatprep.mubr.bf16.mxu0 0
        %2021 = vmatmul.mubr.bf16.gmra.mxu0 %v1931
        %v2022 = vpop.f32.mrf.mxu0
        %v2023 = vadd.f32 %v1911, %v2022
        %v2024 = vpop.f32.mrf.mxu0
        %v2025 = vpop.f32.mrf.mxu0
        %v2026 = vadd.f32 %v1911, %v2025
        %v2027 = vpop.f32.mrf.mxu0
        %2028 = vmatprep.mubr.bf16.mxu0 0
        %2029 = vmatmul.mubr.bf16.gmra.mxu0 %v1934
        %v2030 = vpop.f32.mrf.mxu0
        %v2031 = vadd.f32 %v1911, %v2030
        %v2032 = vpop.f32.mrf.mxu0
        %v2033 = vpop.f32.mrf.mxu0
        %v2034 = vadd.f32 %v1911, %v2033
        %v2035 = vpop.f32.mrf.mxu0
        %2036 = vmatprep.mubr.bf16.mxu0 0
        %2037 = vmatmul.mubr.bf16.gmra.mxu0 %v1937
        %v2038 = vpop.f32.mrf.mxu0
        %v2039 = vadd.f32 %v1911, %v2038
        %v2040 = vpop.f32.mrf.mxu0
        %v2041 = vpop.f32.mrf.mxu0
        %v2042 = vadd.f32 %v1911, %v2041
        %v2043 = vpop.f32.mrf.mxu0
        %2044 = vmatprep.mubr.bf16.mxu0 0
        %2045 = vmatmul.mubr.bf16.gmra.mxu0 %v1940
        %v2046 = vpop.f32.mrf.mxu0
        %v2047 = vadd.f32 %v1911, %v2046
        %v2048 = vpop.f32.mrf.mxu0
        %v2049 = vpop.f32.mrf.mxu0
        %v2050 = vadd.f32 %v1911, %v2049
        %v2051 = vpop.f32.mrf.mxu0
        %2052 = vmatprep.mubr.bf16.mxu0 0
        %2053 = vmatmul.mubr.bf16.gmra.mxu0 %v1943
        %v2054 = vpop.f32.mrf.mxu0
        %v2055 = vadd.f32 %v1911, %v2054
        %v2056 = vpop.f32.mrf.mxu0
        %v2057 = vpop.f32.mrf.mxu0
        %v2058 = vadd.f32 %v1911, %v2057
        %v2059 = vpop.f32.mrf.mxu0
        %2060 = vmatprep.mubr.bf16.mxu0 0
        %2061 = vmatmul.mubr.bf16.gmra.mxu0 %v1946
        %v2062 = vpop.f32.mrf.mxu0
        %v2063 = vadd.f32 %v1911, %v2062
        %v2064 = vpop.f32.mrf.mxu0
        %v2065 = vpop.f32.mrf.mxu0
        %v2066 = vadd.f32 %v1911, %v2065
        %v2067 = vpop.f32.mrf.mxu0
        %2068 = vmatprep.mubr.bf16.mxu0 0
        %2069 = vmatmul.mubr.bf16.gmra.mxu0 %v1949
        %v2070 = vpop.f32.mrf.mxu0
        %v2071 = vadd.f32 %v1911, %v2070
        %v2072 = vpop.f32.mrf.mxu0
        %v2073 = vpop.f32.mrf.mxu0
        %v2074 = vadd.f32 %v1911, %v2073
        %v2075 = vpop.f32.mrf.mxu0
        %2076 = vmatprep.mubr.bf16.mxu0 0
        %2077 = vmatmul.mubr.bf16.gmra.mxu0 %v1952
        %v2078 = vpop.f32.mrf.mxu0
        %v2079 = vadd.f32 %v1911, %v2078
        %v2080 = vpop.f32.mrf.mxu0
        %v2081 = vpop.f32.mrf.mxu0
        %v2082 = vadd.f32 %v1911, %v2081
        %v2083 = vpop.f32.mrf.mxu0
        %2084 = vmatprep.mubr.bf16.mxu0 0
        %2085 = vmatmul.mubr.bf16.gmra.mxu0 %v1955
        %v2086 = vpop.f32.mrf.mxu0
        %v2087 = vadd.f32 %v1911, %v2086
        %v2088 = vpop.f32.mrf.mxu0
        %v2089 = vpop.f32.mrf.mxu0
        %v2090 = vadd.f32 %v1911, %v2089
        %v2091 = vpop.f32.mrf.mxu0
        %2092 = vmatprep.mubr.bf16.mxu0 0
        %2093 = vmatmul.mubr.bf16.gmra.mxu0 %v1958
        %v2094 = vpop.f32.mrf.mxu0
        %v2095 = vadd.f32 %v1911, %v2094
        %v2096 = vpop.f32.mrf.mxu0
        %v2097 = vpop.f32.mrf.mxu0
        %v2098 = vadd.f32 %v1911, %v2097
        %v2099 = vpop.f32.mrf.mxu0
        %2100 = vmatprep.mubr.bf16.mxu0 0
        %2101 = vmatmul.mubr.bf16.gmra.mxu0 %v1961
        %v2102 = vpop.f32.mrf.mxu0
        %v2103 = vadd.f32 %v1911, %v2102
        %v2104 = vpop.f32.mrf.mxu0
        %v2105 = vpop.f32.mrf.mxu0
        %v2106 = vadd.f32 %v1911, %v2105
        %v2107 = vpop.f32.mrf.mxu0
        %2108 = vmatprep.mubr.bf16.mxu0 0
        %2109 = vmatmul.mubr.bf16.gmra.mxu0 %v1964
        %v2110 = vpop.f32.mrf.mxu0
        %v2111 = vadd.f32 %v1911, %v2110
        %v2112 = vpop.f32.mrf.mxu0
        %v2113 = vpop.f32.mrf.mxu0
        %v2114 = vadd.f32 %v1911, %v2113
        %v2115 = vpop.f32.mrf.mxu0
        %2116 = vmatprep.mubr.bf16.mxu0 0
        %2117 = vmatmul.mubr.bf16.gmra.mxu0 %v1967
        %v2118 = vpop.f32.mrf.mxu0
        %v2119 = vadd.f32 %v1911, %v2118
        %v2120 = vpop.f32.mrf.mxu0
        %v2121 = vpop.f32.mrf.mxu0
        %v2122 = vadd.f32 %v1911, %v2121
        %v2123 = vpop.f32.mrf.mxu0
        %2124 = vmatprep.mubr.bf16.mxu0 0
        %2125 = vmatmul.mubr.bf16.gmra.mxu0 %v1970
        %v2126 = vpop.f32.mrf.mxu0
        %v2127 = vadd.f32 %v1911, %v2126
        %v2128 = vpop.f32.mrf.mxu0
        %v2129 = vpop.f32.mrf.mxu0
        %v2130 = vadd.f32 %v1911, %v2129
        %v2131 = vpop.f32.mrf.mxu0
        %2132 = vdwg.mxu0
        %v2133 = vmax.f32 %v2007, 0.0
        %v2134 = vmax.f32 %v2010, 0.0
        %v2135 = vmax.f32 %v2015, 0.0
        %v2136 = vmax.f32 %v2018, 0.0
        %v2137 = vmax.f32 %v2023, 0.0
        %v2138 = vmax.f32 %v2026, 0.0
        %v2139 = vmax.f32 %v2031, 0.0
        %v2140 = vmax.f32 %v2034, 0.0
        %v2141 = vmax.f32 %v2039, 0.0
        %v2142 = vmax.f32 %v2042, 0.0
        %v2143 = vmax.f32 %v2047, 0.0
        %v2144 = vmax.f32 %v2050, 0.0
        %v2145 = vmax.f32 %v2055, 0.0
        %v2146 = vmax.f32 %v2058, 0.0
        %v2147 = vmax.f32 %v2063, 0.0
        %v2148 = vmax.f32 %v2066, 0.0
        %v2149 = vmax.f32 %v2071, 0.0
        %v2150 = vmax.f32 %v2074, 0.0
        %v2151 = vmax.f32 %v2079, 0.0
        %v2152 = vmax.f32 %v2082, 0.0
        %v2153 = vmax.f32 %v2087, 0.0
        %v2154 = vmax.f32 %v2090, 0.0
        %v2155 = vmax.f32 %v2095, 0.0
        %v2156 = vmax.f32 %v2098, 0.0
        %v2157 = vmax.f32 %v2103, 0.0
        %v2158 = vmax.f32 %v2106, 0.0
        %v2159 = vmax.f32 %v2111, 0.0
        %v2160 = vmax.f32 %v2114, 0.0
        %v2161 = vmax.f32 %v2119, 0.0
        %v2162 = vmax.f32 %v2122, 0.0
        %v2163 = vmax.f32 %v2127, 0.0
        %v2164 = vmax.f32 %v2130, 0.0
        %v2165 = vpack.c.bf16 %v2134, %v2133
        %v2166 = vpack.c.bf16 %v2136, %v2135
        %v2167 = vpack.c.bf16 %v2138, %v2137
        %v2168 = vpack.c.bf16 %v2140, %v2139
        %v2169 = vpack.c.bf16 %v2142, %v2141
        %v2170 = vpack.c.bf16 %v2144, %v2143
        %v2171 = vpack.c.bf16 %v2146, %v2145
        %v2172 = vpack.c.bf16 %v2148, %v2147
        %v2173 = vpack.c.bf16 %v2150, %v2149
        %v2174 = vpack.c.bf16 %v2152, %v2151
        %v2175 = vpack.c.bf16 %v2154, %v2153
        %v2176 = vpack.c.bf16 %v2156, %v2155
        %v2177 = vpack.c.bf16 %v2158, %v2157
        %v2178 = vpack.c.bf16 %v2160, %v2159
        %v2179 = vpack.c.bf16 %v2162, %v2161
        %v2180 = vpack.c.bf16 %v2164, %v2163
        %v2185 = vunpack.c.l.b16 %v933
        %v2186 = vunpack.c.h.b16 %v933
        %v2187 = vunpack.c.l.b16 %v934
        %v2188 = vunpack.c.h.b16 %v934
        %v2189 = vunpack.c.l.b16 %v935
        %v2190 = vunpack.c.h.b16 %v935
        %v2191 = vunpack.c.l.b16 %v936
        %v2192 = vunpack.c.h.b16 %v936
        %v2193 = vpack.c.b16 %v2187, %v2185
        %v2194 = vpack.c.b16 %v2188, %v2186
        %v2195 = vpack.c.b16 %v2191, %v2189
        %v2196 = vpack.c.b16 %v2192, %v2190
        %2201 = vmatprep.subr.bf16.mxu0 0
        %2202 = vmatpush1.bf16.msra.mxu0 %v2172
        %2203 = vmatprep.subr.bf16.mxu0 0
        %2204 = vmatpush1.bf16.msra.mxu0 %v2171
        %2205 = vmatprep.subr.bf16.mxu0 0
        %2206 = vmatpush1.bf16.msra.mxu0 %v2170
        %2207 = vmatprep.subr.bf16.mxu0 0
        %2208 = vmatpush1.bf16.msra.mxu0 %v2169
        %2209 = vmatprep.subr.bf16.mxu0 0
        %2210 = vmatpush1.bf16.msra.mxu0 %v2168
        %2211 = vmatprep.subr.bf16.mxu0 0
        %2212 = vmatpush1.bf16.msra.mxu0 %v2167
        %2213 = vmatprep.subr.bf16.mxu0 0
        %2214 = vmatpush1.bf16.msra.mxu0 %v2166
        %2215 = vmatprep.subr.bf16.mxu0 0
        %2216 = vmatpush1.bf16.msra.mxu0 %v2165
        %2217 = vmatprep.subr.bf16.mxu0 0
        %2218 = vmatpush2.bf16.msra.mxu0 %v2180
        %2219 = vmatprep.subr.bf16.mxu0 0
        %2220 = vmatpush2.bf16.msra.mxu0 %v2179
        %2221 = vmatprep.subr.bf16.mxu0 0
        %2222 = vmatpush2.bf16.msra.mxu0 %v2178
        %2223 = vmatprep.subr.bf16.mxu0 0
        %2224 = vmatpush2.bf16.msra.mxu0 %v2177
        %2225 = vmatprep.subr.bf16.mxu0 0
        %2226 = vmatpush2.bf16.msra.mxu0 %v2176
        %2227 = vmatprep.subr.bf16.mxu0 0
        %2228 = vmatpush2.bf16.msra.mxu0 %v2175
        %2229 = vmatprep.subr.bf16.mxu0 0
        %2230 = vmatpush2.bf16.msra.mxu0 %v2174
        %2231 = vmatprep.subr.bf16.mxu0 0
        %2232 = vmatpush2.bf16.msra.mxu0 %v2173
        %2233 = vmatprep.mubr.bf16.mxu0 %v2194
        %2234 = vmatmul.mubr.bf16.gmra.mxu0 %v2193
        %v2235 = vpop.f32.mrf.mxu0
        %v2236 = vadd.f32 0.0, %v2235
        %v2237 = vpop.f32.mrf.mxu0
        %v2238 = vpop.f32.mrf.mxu0
        %v2239 = vadd.f32 0.0, %v2238
        %v2240 = vpop.f32.mrf.mxu0
        %2241 = vmatprep.mubr.bf16.mxu0 %v2196
        %2242 = vmatmul.mubr.bf16.gmra.mxu0 %v2195
        %v2243 = vpop.f32.mrf.mxu0
        %v2244 = vadd.f32 0.0, %v2243
        %v2245 = vpop.f32.mrf.mxu0
        %v2246 = vpop.f32.mrf.mxu0
        %v2247 = vadd.f32 0.0, %v2246
        %v2248 = vpop.f32.mrf.mxu0
        %2249 = vdwg.mxu0
        %v2250 = vpack.c.bf16 %v2239, %v2236
        %v2251 = vpack.c.bf16 %v2247, %v2244
        %s2252 = scalar_lea.vmem %s7, 32
        %v2253 = vld [vmem:[%s2252] sm:$0xf]
        %v2254 = vld [vmem:[%s2252 + $0x4] sm:$0xf]
        %v2255 = vld [vmem:[%s2252 + $0x8] sm:$0xf]
        %v2256 = vld [vmem:[%s2252 + $0xc] sm:$0xf]
        %v2257 = vlaneseq
        %v2258 = vshrl.u32 %v2257, 7
        %v2259 = vsub.s32 0, %v2258
        %v2260 = vrot.slane %v940, %v2259
        %v2265 = vunpack.c.l.b16 %v2253
        %v2266 = vunpack.c.l.b16 %v2254
        %v2267 = vunpack.c.l.b16 %v2255
        %v2268 = vunpack.c.l.b16 %v2256
        %v2269 = vpack.c.b16 %v2266, %v2265
        %v2270 = vpack.c.b16 %v2268, %v2267
        %v2274 = vsel %vm967, %v2250, 0
        %v2277 = vsel %vm967, %v2251, 0
        %2279 = vmatprep.subr.bf16.mxu0 0
        %2280 = vmatpush1.bf16.msra.mxu0 0
        %2281 = vmatprep.subr.bf16.mxu0 0
        %2282 = vmatpush1.bf16.msra.mxu0 0
        %2283 = vmatprep.subr.bf16.mxu0 0
        %2284 = vmatpush1.bf16.msra.mxu0 0
        %2285 = vmatprep.subr.bf16.mxu0 0
        %2286 = vmatpush1.bf16.msra.mxu0 0
        %2287 = vmatprep.subr.bf16.mxu0 0
        %2288 = vmatpush1.bf16.msra.mxu0 0
        %2289 = vmatprep.subr.bf16.mxu0 0
        %2290 = vmatpush1.bf16.msra.mxu0 0
        %2291 = vmatprep.subr.bf16.mxu0 0
        %2292 = vmatpush1.bf16.msra.mxu0 %v2270
        %2293 = vmatprep.subr.bf16.mxu0 0
        %2294 = vmatpush1.bf16.msra.mxu0 %v2269
        %2295 = vmatprep.subr.bf16.mxu0 0
        %2296 = vmatpush2.bf16.msra.mxu0 0
        %2297 = vmatprep.subr.bf16.mxu0 0
        %2298 = vmatpush2.bf16.msra.mxu0 0
        %2299 = vmatprep.subr.bf16.mxu0 0
        %2300 = vmatpush2.bf16.msra.mxu0 0
        %2301 = vmatprep.subr.bf16.mxu0 0
        %2302 = vmatpush2.bf16.msra.mxu0 0
        %2303 = vmatprep.subr.bf16.mxu0 0
        %2304 = vmatpush2.bf16.msra.mxu0 0
        %2305 = vmatprep.subr.bf16.mxu0 0
        %2306 = vmatpush2.bf16.msra.mxu0 0
        %2307 = vmatprep.subr.bf16.mxu0 0
        %2308 = vmatpush2.bf16.msra.mxu0 0
        %2309 = vmatprep.subr.bf16.mxu0 0
        %2310 = vmatpush2.bf16.msra.mxu0 0
        %2311 = vmatprep.mubr.bf16.mxu0 0
        %2312 = vmatmul.mubr.bf16.gmra.mxu0 %v2274
        %v2313 = vpop.f32.mrf.mxu0
        %v2314 = vadd.f32 %v2260, %v2313
        %v2315 = vpop.f32.mrf.mxu0
        %v2316 = vpop.f32.mrf.mxu0
        %v2317 = vadd.f32 %v2260, %v2316
        %v2318 = vpop.f32.mrf.mxu0
        %2319 = vmatprep.mubr.bf16.mxu0 0
        %2320 = vmatmul.mubr.bf16.gmra.mxu0 %v2277
        %v2321 = vpop.f32.mrf.mxu0
        %v2322 = vadd.f32 %v2260, %v2321
        %v2323 = vpop.f32.mrf.mxu0
        %v2324 = vpop.f32.mrf.mxu0
        %v2325 = vadd.f32 %v2260, %v2324
        %v2326 = vpop.f32.mrf.mxu0
        %2327 = vdwg.mxu0
        %v2328 = vmax.f32 %v2314, 0.0
        %v2329 = vmax.f32 %v2317, 0.0
        %v2330 = vmax.f32 %v2322, 0.0
        %v2331 = vmax.f32 %v2325, 0.0
        %v2332 = vpack.c.bf16 %v2329, %v2328
        %v2333 = vpack.c.bf16 %v2331, %v2330
        %v2366 = vunpack.c.l.b16 %v901
        %v2367 = vunpack.c.l.b16 %v902
        %v2368 = vunpack.c.l.b16 %v903
        %v2369 = vunpack.c.l.b16 %v904
        %v2370 = vunpack.c.l.b16 %v905
        %v2371 = vunpack.c.l.b16 %v906
        %v2372 = vunpack.c.l.b16 %v907
        %v2373 = vunpack.c.l.b16 %v908
        %v2374 = vunpack.c.l.b16 %v909
        %v2375 = vunpack.c.l.b16 %v910
        %v2376 = vunpack.c.l.b16 %v911
        %v2377 = vunpack.c.l.b16 %v912
        %v2378 = vunpack.c.l.b16 %v913
        %v2379 = vunpack.c.l.b16 %v914
        %v2380 = vunpack.c.l.b16 %v915
        %v2381 = vunpack.c.l.b16 %v916
        %v2382 = vunpack.c.l.b16 %v917
        %v2383 = vunpack.c.l.b16 %v918
        %v2384 = vunpack.c.l.b16 %v919
        %v2385 = vunpack.c.l.b16 %v920
        %v2386 = vunpack.c.l.b16 %v921
        %v2387 = vunpack.c.l.b16 %v922
        %v2388 = vunpack.c.l.b16 %v923
        %v2389 = vunpack.c.l.b16 %v924
        %v2390 = vunpack.c.l.b16 %v925
        %v2391 = vunpack.c.l.b16 %v926
        %v2392 = vunpack.c.l.b16 %v927
        %v2393 = vunpack.c.l.b16 %v928
        %v2394 = vunpack.c.l.b16 %v929
        %v2395 = vunpack.c.l.b16 %v930
        %v2396 = vunpack.c.l.b16 %v931
        %v2397 = vunpack.c.l.b16 %v932
        %v2398 = vpack.c.b16 %v2367, %v2366
        %v2399 = vpack.c.b16 %v2369, %v2368
        %v2400 = vpack.c.b16 %v2371, %v2370
        %v2401 = vpack.c.b16 %v2373, %v2372
        %v2402 = vpack.c.b16 %v2375, %v2374
        %v2403 = vpack.c.b16 %v2377, %v2376
        %v2404 = vpack.c.b16 %v2379, %v2378
        %v2405 = vpack.c.b16 %v2381, %v2380
        %v2406 = vpack.c.b16 %v2383, %v2382
        %v2407 = vpack.c.b16 %v2385, %v2384
        %v2408 = vpack.c.b16 %v2387, %v2386
        %v2409 = vpack.c.b16 %v2389, %v2388
        %v2410 = vpack.c.b16 %v2391, %v2390
        %v2411 = vpack.c.b16 %v2393, %v2392
        %v2412 = vpack.c.b16 %v2395, %v2394
        %v2413 = vpack.c.b16 %v2397, %v2396
        %v2415 = vsel %vm967, %v2398, 0
        %v2418 = vsel %vm967, %v2399, 0
        %v2421 = vsel %vm967, %v2400, 0
        %v2424 = vsel %vm967, %v2401, 0
        %v2427 = vsel %vm967, %v2402, 0
        %v2430 = vsel %vm967, %v2403, 0
        %v2433 = vsel %vm967, %v2404, 0
        %v2436 = vsel %vm967, %v2405, 0
        %v2439 = vsel %vm967, %v2406, 0
        %v2442 = vsel %vm967, %v2407, 0
        %v2445 = vsel %vm967, %v2408, 0
        %v2448 = vsel %vm967, %v2409, 0
        %v2451 = vsel %vm967, %v2410, 0
        %v2454 = vsel %vm967, %v2411, 0
        %v2457 = vsel %vm967, %v2412, 0
        %v2460 = vsel %vm967, %v2413, 0
        %2462 = vmatprep.subr.bf16.mxu0 0
        %2463 = vmatpush1.bf16.msra.mxu0 0
        %2464 = vmatprep.subr.bf16.mxu0 0
        %2465 = vmatpush1.bf16.msra.mxu0 0
        %2466 = vmatprep.subr.bf16.mxu0 0
        %2467 = vmatpush1.bf16.msra.mxu0 0
        %2468 = vmatprep.subr.bf16.mxu0 0
        %2469 = vmatpush1.bf16.msra.mxu0 0
        %2470 = vmatprep.subr.bf16.mxu0 0
        %2471 = vmatpush1.bf16.msra.mxu0 0
        %2472 = vmatprep.subr.bf16.mxu0 0
        %2473 = vmatpush1.bf16.msra.mxu0 0
        %2474 = vmatprep.subr.bf16.mxu0 0
        %2475 = vmatpush1.bf16.msra.mxu0 %v2333
        %2476 = vmatprep.subr.bf16.mxu0 0
        %2477 = vmatpush1.bf16.msra.mxu0 %v2332
        %2478 = vmatprep.subr.bf16.mxu0 0
        %2479 = vmatpush2.bf16.msra.mxu0 0
        %2480 = vmatprep.subr.bf16.mxu0 0
        %2481 = vmatpush2.bf16.msra.mxu0 0
        %2482 = vmatprep.subr.bf16.mxu0 0
        %2483 = vmatpush2.bf16.msra.mxu0 0
        %2484 = vmatprep.subr.bf16.mxu0 0
        %2485 = vmatpush2.bf16.msra.mxu0 0
        %2486 = vmatprep.subr.bf16.mxu0 0
        %2487 = vmatpush2.bf16.msra.mxu0 0
        %2488 = vmatprep.subr.bf16.mxu0 0
        %2489 = vmatpush2.bf16.msra.mxu0 0
        %2490 = vmatprep.subr.bf16.mxu0 0
        %2491 = vmatpush2.bf16.msra.mxu0 0
        %2492 = vmatprep.subr.bf16.mxu0 0
        %2493 = vmatpush2.bf16.msra.mxu0 0
        %2494 = vmatprep.mubr.bf16.mxu0 0
        %2495 = vmatmul.mubr.bf16.gmra.mxu0 %v2415
        %v2496 = vpop.f32.mrf.mxu0
        %v2497 = vadd.f32 0.0, %v2496
        %v2498 = vpop.f32.mrf.mxu0
        %v2499 = vpop.f32.mrf.mxu0
        %v2500 = vadd.f32 0.0, %v2499
        %v2501 = vpop.f32.mrf.mxu0
        %2502 = vmatprep.mubr.bf16.mxu0 0
        %2503 = vmatmul.mubr.bf16.gmra.mxu0 %v2418
        %v2504 = vpop.f32.mrf.mxu0
        %v2505 = vadd.f32 0.0, %v2504
        %v2506 = vpop.f32.mrf.mxu0
        %v2507 = vpop.f32.mrf.mxu0
        %v2508 = vadd.f32 0.0, %v2507
        %v2509 = vpop.f32.mrf.mxu0
        %2510 = vmatprep.mubr.bf16.mxu0 0
        %2511 = vmatmul.mubr.bf16.gmra.mxu0 %v2421
        %v2512 = vpop.f32.mrf.mxu0
        %v2513 = vadd.f32 0.0, %v2512
        %v2514 = vpop.f32.mrf.mxu0
        %v2515 = vpop.f32.mrf.mxu0
        %v2516 = vadd.f32 0.0, %v2515
        %v2517 = vpop.f32.mrf.mxu0
        %2518 = vmatprep.mubr.bf16.mxu0 0
        %2519 = vmatmul.mubr.bf16.gmra.mxu0 %v2424
        %v2520 = vpop.f32.mrf.mxu0
        %v2521 = vadd.f32 0.0, %v2520
        %v2522 = vpop.f32.mrf.mxu0
        %v2523 = vpop.f32.mrf.mxu0
        %v2524 = vadd.f32 0.0, %v2523
        %v2525 = vpop.f32.mrf.mxu0
        %2526 = vmatprep.mubr.bf16.mxu0 0
        %2527 = vmatmul.mubr.bf16.gmra.mxu0 %v2427
        %v2528 = vpop.f32.mrf.mxu0
        %v2529 = vadd.f32 0.0, %v2528
        %v2530 = vpop.f32.mrf.mxu0
        %v2531 = vpop.f32.mrf.mxu0
        %v2532 = vadd.f32 0.0, %v2531
        %v2533 = vpop.f32.mrf.mxu0
        %2534 = vmatprep.mubr.bf16.mxu0 0
        %2535 = vmatmul.mubr.bf16.gmra.mxu0 %v2430
        %v2536 = vpop.f32.mrf.mxu0
        %v2537 = vadd.f32 0.0, %v2536
        %v2538 = vpop.f32.mrf.mxu0
        %v2539 = vpop.f32.mrf.mxu0
        %v2540 = vadd.f32 0.0, %v2539
        %v2541 = vpop.f32.mrf.mxu0
        %2542 = vmatprep.mubr.bf16.mxu0 0
        %2543 = vmatmul.mubr.bf16.gmra.mxu0 %v2433
        %v2544 = vpop.f32.mrf.mxu0
        %v2545 = vadd.f32 0.0, %v2544
        %v2546 = vpop.f32.mrf.mxu0
        %v2547 = vpop.f32.mrf.mxu0
        %v2548 = vadd.f32 0.0, %v2547
        %v2549 = vpop.f32.mrf.mxu0
        %2550 = vmatprep.mubr.bf16.mxu0 0
        %2551 = vmatmul.mubr.bf16.gmra.mxu0 %v2436
        %v2552 = vpop.f32.mrf.mxu0
        %v2553 = vadd.f32 0.0, %v2552
        %v2554 = vpop.f32.mrf.mxu0
        %v2555 = vpop.f32.mrf.mxu0
        %v2556 = vadd.f32 0.0, %v2555
        %v2557 = vpop.f32.mrf.mxu0
        %2558 = vmatprep.mubr.bf16.mxu0 0
        %2559 = vmatmul.mubr.bf16.gmra.mxu0 %v2439
        %v2560 = vpop.f32.mrf.mxu0
        %v2561 = vadd.f32 0.0, %v2560
        %v2562 = vpop.f32.mrf.mxu0
        %v2563 = vpop.f32.mrf.mxu0
        %v2564 = vadd.f32 0.0, %v2563
        %v2565 = vpop.f32.mrf.mxu0
        %2566 = vmatprep.mubr.bf16.mxu0 0
        %2567 = vmatmul.mubr.bf16.gmra.mxu0 %v2442
        %v2568 = vpop.f32.mrf.mxu0
        %v2569 = vadd.f32 0.0, %v2568
        %v2570 = vpop.f32.mrf.mxu0
        %v2571 = vpop.f32.mrf.mxu0
        %v2572 = vadd.f32 0.0, %v2571
        %v2573 = vpop.f32.mrf.mxu0
        %2574 = vmatprep.mubr.bf16.mxu0 0
        %2575 = vmatmul.mubr.bf16.gmra.mxu0 %v2445
        %v2576 = vpop.f32.mrf.mxu0
        %v2577 = vadd.f32 0.0, %v2576
        %v2578 = vpop.f32.mrf.mxu0
        %v2579 = vpop.f32.mrf.mxu0
        %v2580 = vadd.f32 0.0, %v2579
        %v2581 = vpop.f32.mrf.mxu0
        %2582 = vmatprep.mubr.bf16.mxu0 0
        %2583 = vmatmul.mubr.bf16.gmra.mxu0 %v2448
        %v2584 = vpop.f32.mrf.mxu0
        %v2585 = vadd.f32 0.0, %v2584
        %v2586 = vpop.f32.mrf.mxu0
        %v2587 = vpop.f32.mrf.mxu0
        %v2588 = vadd.f32 0.0, %v2587
        %v2589 = vpop.f32.mrf.mxu0
        %2590 = vmatprep.mubr.bf16.mxu0 0
        %2591 = vmatmul.mubr.bf16.gmra.mxu0 %v2451
        %v2592 = vpop.f32.mrf.mxu0
        %v2593 = vadd.f32 0.0, %v2592
        %v2594 = vpop.f32.mrf.mxu0
        %v2595 = vpop.f32.mrf.mxu0
        %v2596 = vadd.f32 0.0, %v2595
        %v2597 = vpop.f32.mrf.mxu0
        %2598 = vmatprep.mubr.bf16.mxu0 0
        %2599 = vmatmul.mubr.bf16.gmra.mxu0 %v2454
        %v2600 = vpop.f32.mrf.mxu0
        %v2601 = vadd.f32 0.0, %v2600
        %v2602 = vpop.f32.mrf.mxu0
        %v2603 = vpop.f32.mrf.mxu0
        %v2604 = vadd.f32 0.0, %v2603
        %v2605 = vpop.f32.mrf.mxu0
        %2606 = vmatprep.mubr.bf16.mxu0 0
        %2607 = vmatmul.mubr.bf16.gmra.mxu0 %v2457
        %v2608 = vpop.f32.mrf.mxu0
        %v2609 = vadd.f32 0.0, %v2608
        %v2610 = vpop.f32.mrf.mxu0
        %v2611 = vpop.f32.mrf.mxu0
        %v2612 = vadd.f32 0.0, %v2611
        %v2613 = vpop.f32.mrf.mxu0
        %2614 = vmatprep.mubr.bf16.mxu0 0
        %2615 = vmatmul.mubr.bf16.gmra.mxu0 %v2460
        %v2616 = vpop.f32.mrf.mxu0
        %v2617 = vadd.f32 0.0, %v2616
        %v2618 = vpop.f32.mrf.mxu0
        %v2619 = vpop.f32.mrf.mxu0
        %v2620 = vadd.f32 0.0, %v2619
        %v2621 = vpop.f32.mrf.mxu0
        %2622 = vdwg.mxu0
        %v2623 = vadd.f32 %v2133, %v2497
        %v2624 = vadd.f32 %v2134, %v2500
        %v2625 = vadd.f32 %v2135, %v2505
        %v2626 = vadd.f32 %v2136, %v2508
        %v2627 = vadd.f32 %v2137, %v2513
        %v2628 = vadd.f32 %v2138, %v2516
        %v2629 = vadd.f32 %v2139, %v2521
        %v2630 = vadd.f32 %v2140, %v2524
        %v2631 = vadd.f32 %v2141, %v2529
        %v2632 = vadd.f32 %v2142, %v2532
        %v2633 = vadd.f32 %v2143, %v2537
        %v2634 = vadd.f32 %v2144, %v2540
        %v2635 = vadd.f32 %v2145, %v2545
        %v2636 = vadd.f32 %v2146, %v2548
        %v2637 = vadd.f32 %v2147, %v2553
        %v2638 = vadd.f32 %v2148, %v2556
        %v2639 = vadd.f32 %v2149, %v2561
        %v2640 = vadd.f32 %v2150, %v2564
        %v2641 = vadd.f32 %v2151, %v2569
        %v2642 = vadd.f32 %v2152, %v2572
        %v2643 = vadd.f32 %v2153, %v2577
        %v2644 = vadd.f32 %v2154, %v2580
        %v2645 = vadd.f32 %v2155, %v2585
        %v2646 = vadd.f32 %v2156, %v2588
        %v2647 = vadd.f32 %v2157, %v2593
        %v2648 = vadd.f32 %v2158, %v2596
        %v2649 = vadd.f32 %v2159, %v2601
        %v2650 = vadd.f32 %v2160, %v2604
        %v2651 = vadd.f32 %v2161, %v2609
        %v2652 = vadd.f32 %v2162, %v2612
        %v2653 = vadd.f32 %v2163, %v2617
        %v2654 = vadd.f32 %v2164, %v2620
        %v2655 = vadd.f32 %v2623, %v711
        %v2656 = vadd.f32 %v2624, %v714
        %v2657 = vadd.f32 %v2625, %v719
        %v2658 = vadd.f32 %v2626, %v722
        %v2659 = vadd.f32 %v2627, %v727
        %v2660 = vadd.f32 %v2628, %v730
        %v2661 = vadd.f32 %v2629, %v735
        %v2662 = vadd.f32 %v2630, %v738
        %v2663 = vadd.f32 %v2631, %v743
        %v2664 = vadd.f32 %v2632, %v746
        %v2665 = vadd.f32 %v2633, %v751
        %v2666 = vadd.f32 %v2634, %v754
        %v2667 = vadd.f32 %v2635, %v759
        %v2668 = vadd.f32 %v2636, %v762
        %v2669 = vadd.f32 %v2637, %v767
        %v2670 = vadd.f32 %v2638, %v770
        %v2671 = vadd.f32 %v2639, %v775
        %v2672 = vadd.f32 %v2640, %v778
        %v2673 = vadd.f32 %v2641, %v783
        %v2674 = vadd.f32 %v2642, %v786
        %v2675 = vadd.f32 %v2643, %v791
        %v2676 = vadd.f32 %v2644, %v794
        %v2677 = vadd.f32 %v2645, %v799
        %v2678 = vadd.f32 %v2646, %v802
        %v2679 = vadd.f32 %v2647, %v807
        %v2680 = vadd.f32 %v2648, %v810
        %v2681 = vadd.f32 %v2649, %v815
        %v2682 = vadd.f32 %v2650, %v818
        %v2683 = vadd.f32 %v2651, %v823
        %v2684 = vadd.f32 %v2652, %v826
        %v2685 = vadd.f32 %v2653, %v831
        %v2686 = vadd.f32 %v2654, %v834
        %v2687 = vld [vmem:[%s8 + $0x5] sm:$0x1]
        %v2688 = vld [vmem:[%s8 + $0x6] sm:$0x1]
        %v2689 = vld [vmem:[%s8 + $0x7] sm:$0x1]
        %v2690 = vld [vmem:[%s8 + $0x8] sm:$0x1]
        %v2691 = vpack.c.bf16 %v2656, %v2655
        %v2692 = vpack.c.bf16 %v2658, %v2657
        %v2693 = vpack.c.bf16 %v2660, %v2659
        %v2694 = vpack.c.bf16 %v2662, %v2661
        %v2695 = vpack.c.bf16 %v2664, %v2663
        %v2696 = vpack.c.bf16 %v2666, %v2665
        %v2697 = vpack.c.bf16 %v2668, %v2667
        %v2698 = vpack.c.bf16 %v2670, %v2669
        %v2699 = vpack.c.bf16 %v2672, %v2671
        %v2700 = vpack.c.bf16 %v2674, %v2673
        %v2701 = vpack.c.bf16 %v2676, %v2675
        %v2702 = vpack.c.bf16 %v2678, %v2677
        %v2703 = vpack.c.bf16 %v2680, %v2679
        %v2704 = vpack.c.bf16 %v2682, %v2681
        %v2705 = vpack.c.bf16 %v2684, %v2683
        %v2706 = vpack.c.bf16 %v2686, %v2685
        %2707 = vmatprep.subr.bf16.mxu0 0
        %2708 = vmatpush1.bf16.msra.mxu0 0
        %2709 = vmatprep.subr.bf16.mxu0 0
        %2710 = vmatpush1.bf16.msra.mxu0 0
        %2711 = vmatprep.subr.bf16.mxu0 0
        %2712 = vmatpush1.bf16.msra.mxu0 0
        %2713 = vmatprep.subr.bf16.mxu0 0
        %2714 = vmatpush1.bf16.msra.mxu0 0
        %2715 = vmatprep.subr.bf16.mxu0 0
        %2716 = vmatpush1.bf16.msra.mxu0 0
        %2717 = vmatprep.subr.bf16.mxu0 0
        %2718 = vmatpush1.bf16.msra.mxu0 0
        %2719 = vmatprep.subr.bf16.mxu0 0
        %2720 = vmatpush1.bf16.msra.mxu0 %v2692
        %2721 = vmatprep.subr.bf16.mxu0 0
        %2722 = vmatpush1.bf16.msra.mxu0 %v2691
        %2723 = vmatprep.subr.bf16.mxu0 0
        %2724 = vmatpush2.bf16.msra.mxu0 0
        %2725 = vmatprep.subr.bf16.mxu0 0
        %2726 = vmatpush2.bf16.msra.mxu0 0
        %2727 = vmatprep.subr.bf16.mxu0 0
        %2728 = vmatpush2.bf16.msra.mxu0 0
        %2729 = vmatprep.subr.bf16.mxu0 0
        %2730 = vmatpush2.bf16.msra.mxu0 0
        %2731 = vmatprep.subr.bf16.mxu0 0
        %2732 = vmatpush2.bf16.msra.mxu0 0
        %2733 = vmatprep.subr.bf16.mxu0 0
        %2734 = vmatpush2.bf16.msra.mxu0 0
        %2735 = vmatprep.subr.bf16.mxu0 0
        %2736 = vmatpush2.bf16.msra.mxu0 0
        %2737 = vmatprep.subr.bf16.mxu0 0
        %2738 = vmatpush2.bf16.msra.mxu0 0
        %2739 = vmatprep.mubr.bf16.mxu0 0
        %2740 = vmatmul.mubr.bf16.gmra.mxu0 %v969
        %v2741 = vpop.f32.mrf.mxu0
        %v2742 = vadd.f32 0.0, %v2741
        %v2743 = vpop.f32.mrf.mxu0
        %v2744 = vpop.f32.mrf.mxu0
        %v2745 = vadd.f32 0.0, %v2744
        %v2746 = vpop.f32.mrf.mxu0
        %2747 = vmatprep.mubr.bf16.mxu0 0
        %2748 = vmatmul.mubr.bf16.gmra.mxu0 %v972
        %v2749 = vpop.f32.mrf.mxu0
        %v2750 = vadd.f32 0.0, %v2749
        %v2751 = vpop.f32.mrf.mxu0
        %v2752 = vpop.f32.mrf.mxu0
        %v2753 = vadd.f32 0.0, %v2752
        %v2754 = vpop.f32.mrf.mxu0
        %2755 = vdwg.mxu0
        %2756 = vmatprep.subr.bf16.mxu0 0
        %2757 = vmatpush1.bf16.msra.mxu0 0
        %2758 = vmatprep.subr.bf16.mxu0 0
        %2759 = vmatpush1.bf16.msra.mxu0 0
        %2760 = vmatprep.subr.bf16.mxu0 0
        %2761 = vmatpush1.bf16.msra.mxu0 0
        %2762 = vmatprep.subr.bf16.mxu0 0
        %2763 = vmatpush1.bf16.msra.mxu0 0
        %2764 = vmatprep.subr.bf16.mxu0 0
        %2765 = vmatpush1.bf16.msra.mxu0 0
        %2766 = vmatprep.subr.bf16.mxu0 0
        %2767 = vmatpush1.bf16.msra.mxu0 0
        %2768 = vmatprep.subr.bf16.mxu0 0
        %2769 = vmatpush1.bf16.msra.mxu0 %v2694
        %2770 = vmatprep.subr.bf16.mxu0 0
        %2771 = vmatpush1.bf16.msra.mxu0 %v2693
        %2772 = vmatprep.subr.bf16.mxu0 0
        %2773 = vmatpush2.bf16.msra.mxu0 0
        %2774 = vmatprep.subr.bf16.mxu0 0
        %2775 = vmatpush2.bf16.msra.mxu0 0
        %2776 = vmatprep.subr.bf16.mxu0 0
        %2777 = vmatpush2.bf16.msra.mxu0 0
        %2778 = vmatprep.subr.bf16.mxu0 0
        %2779 = vmatpush2.bf16.msra.mxu0 0
        %2780 = vmatprep.subr.bf16.mxu0 0
        %2781 = vmatpush2.bf16.msra.mxu0 0
        %2782 = vmatprep.subr.bf16.mxu0 0
        %2783 = vmatpush2.bf16.msra.mxu0 0
        %2784 = vmatprep.subr.bf16.mxu0 0
        %2785 = vmatpush2.bf16.msra.mxu0 0
        %2786 = vmatprep.subr.bf16.mxu0 0
        %2787 = vmatpush2.bf16.msra.mxu0 0
        %2788 = vmatprep.mubr.bf16.mxu0 0
        %2789 = vmatmul.mubr.bf16.gmra.mxu0 %v1034
        %v2790 = vpop.f32.mrf.mxu0
        %v2791 = vadd.f32 0.0, %v2790
        %v2792 = vpop.f32.mrf.mxu0
        %v2793 = vpop.f32.mrf.mxu0
        %v2794 = vadd.f32 0.0, %v2793
        %v2795 = vpop.f32.mrf.mxu0
        %2796 = vmatprep.mubr.bf16.mxu0 0
        %2797 = vmatmul.mubr.bf16.gmra.mxu0 %v1037
        %v2798 = vpop.f32.mrf.mxu0
        %v2799 = vadd.f32 0.0, %v2798
        %v2800 = vpop.f32.mrf.mxu0
        %v2801 = vpop.f32.mrf.mxu0
        %v2802 = vadd.f32 0.0, %v2801
        %v2803 = vpop.f32.mrf.mxu0
        %2804 = vdwg.mxu0
        %2805 = vmatprep.subr.bf16.mxu0 0
        %2806 = vmatpush1.bf16.msra.mxu0 0
        %2807 = vmatprep.subr.bf16.mxu0 0
        %2808 = vmatpush1.bf16.msra.mxu0 0
        %2809 = vmatprep.subr.bf16.mxu0 0
        %2810 = vmatpush1.bf16.msra.mxu0 0
        %2811 = vmatprep.subr.bf16.mxu0 0
        %2812 = vmatpush1.bf16.msra.mxu0 0
        %2813 = vmatprep.subr.bf16.mxu0 0
        %2814 = vmatpush1.bf16.msra.mxu0 0
        %2815 = vmatprep.subr.bf16.mxu0 0
        %2816 = vmatpush1.bf16.msra.mxu0 0
        %2817 = vmatprep.subr.bf16.mxu0 0
        %2818 = vmatpush1.bf16.msra.mxu0 %v2696
        %2819 = vmatprep.subr.bf16.mxu0 0
        %2820 = vmatpush1.bf16.msra.mxu0 %v2695
        %2821 = vmatprep.subr.bf16.mxu0 0
        %2822 = vmatpush2.bf16.msra.mxu0 0
        %2823 = vmatprep.subr.bf16.mxu0 0
        %2824 = vmatpush2.bf16.msra.mxu0 0
        %2825 = vmatprep.subr.bf16.mxu0 0
        %2826 = vmatpush2.bf16.msra.mxu0 0
        %2827 = vmatprep.subr.bf16.mxu0 0
        %2828 = vmatpush2.bf16.msra.mxu0 0
        %2829 = vmatprep.subr.bf16.mxu0 0
        %2830 = vmatpush2.bf16.msra.mxu0 0
        %2831 = vmatprep.subr.bf16.mxu0 0
        %2832 = vmatpush2.bf16.msra.mxu0 0
        %2833 = vmatprep.subr.bf16.mxu0 0
        %2834 = vmatpush2.bf16.msra.mxu0 0
        %2835 = vmatprep.subr.bf16.mxu0 0
        %2836 = vmatpush2.bf16.msra.mxu0 0
        %2837 = vmatprep.mubr.bf16.mxu0 0
        %2838 = vmatmul.mubr.bf16.gmra.mxu0 %v1099
        %v2839 = vpop.f32.mrf.mxu0
        %v2840 = vadd.f32 0.0, %v2839
        %v2841 = vpop.f32.mrf.mxu0
        %v2842 = vpop.f32.mrf.mxu0
        %v2843 = vadd.f32 0.0, %v2842
        %v2844 = vpop.f32.mrf.mxu0
        %2845 = vmatprep.mubr.bf16.mxu0 0
        %2846 = vmatmul.mubr.bf16.gmra.mxu0 %v1102
        %v2847 = vpop.f32.mrf.mxu0
        %v2848 = vadd.f32 0.0, %v2847
        %v2849 = vpop.f32.mrf.mxu0
        %v2850 = vpop.f32.mrf.mxu0
        %v2851 = vadd.f32 0.0, %v2850
        %v2852 = vpop.f32.mrf.mxu0
        %2853 = vdwg.mxu0
        %2854 = vmatprep.subr.bf16.mxu0 0
        %2855 = vmatpush1.bf16.msra.mxu0 0
        %2856 = vmatprep.subr.bf16.mxu0 0
        %2857 = vmatpush1.bf16.msra.mxu0 0
        %2858 = vmatprep.subr.bf16.mxu0 0
        %2859 = vmatpush1.bf16.msra.mxu0 0
        %2860 = vmatprep.subr.bf16.mxu0 0
        %2861 = vmatpush1.bf16.msra.mxu0 0
        %2862 = vmatprep.subr.bf16.mxu0 0
        %2863 = vmatpush1.bf16.msra.mxu0 0
        %2864 = vmatprep.subr.bf16.mxu0 0
        %2865 = vmatpush1.bf16.msra.mxu0 0
        %2866 = vmatprep.subr.bf16.mxu0 0
        %2867 = vmatpush1.bf16.msra.mxu0 %v2698
        %2868 = vmatprep.subr.bf16.mxu0 0
        %2869 = vmatpush1.bf16.msra.mxu0 %v2697
        %2870 = vmatprep.subr.bf16.mxu0 0
        %2871 = vmatpush2.bf16.msra.mxu0 0
        %2872 = vmatprep.subr.bf16.mxu0 0
        %2873 = vmatpush2.bf16.msra.mxu0 0
        %2874 = vmatprep.subr.bf16.mxu0 0
        %2875 = vmatpush2.bf16.msra.mxu0 0
        %2876 = vmatprep.subr.bf16.mxu0 0
        %2877 = vmatpush2.bf16.msra.mxu0 0
        %2878 = vmatprep.subr.bf16.mxu0 0
        %2879 = vmatpush2.bf16.msra.mxu0 0
        %2880 = vmatprep.subr.bf16.mxu0 0
        %2881 = vmatpush2.bf16.msra.mxu0 0
        %2882 = vmatprep.subr.bf16.mxu0 0
        %2883 = vmatpush2.bf16.msra.mxu0 0
        %2884 = vmatprep.subr.bf16.mxu0 0
        %2885 = vmatpush2.bf16.msra.mxu0 0
        %2886 = vmatprep.mubr.bf16.mxu0 0
        %2887 = vmatmul.mubr.bf16.gmra.mxu0 %v1164
        %v2888 = vpop.f32.mrf.mxu0
        %v2889 = vadd.f32 0.0, %v2888
        %v2890 = vpop.f32.mrf.mxu0
        %v2891 = vpop.f32.mrf.mxu0
        %v2892 = vadd.f32 0.0, %v2891
        %v2893 = vpop.f32.mrf.mxu0
        %2894 = vmatprep.mubr.bf16.mxu0 0
        %2895 = vmatmul.mubr.bf16.gmra.mxu0 %v1167
        %v2896 = vpop.f32.mrf.mxu0
        %v2897 = vadd.f32 0.0, %v2896
        %v2898 = vpop.f32.mrf.mxu0
        %v2899 = vpop.f32.mrf.mxu0
        %v2900 = vadd.f32 0.0, %v2899
        %v2901 = vpop.f32.mrf.mxu0
        %2902 = vdwg.mxu0
        %2903 = vmatprep.subr.bf16.mxu0 0
        %2904 = vmatpush1.bf16.msra.mxu0 0
        %2905 = vmatprep.subr.bf16.mxu0 0
        %2906 = vmatpush1.bf16.msra.mxu0 0
        %2907 = vmatprep.subr.bf16.mxu0 0
        %2908 = vmatpush1.bf16.msra.mxu0 0
        %2909 = vmatprep.subr.bf16.mxu0 0
        %2910 = vmatpush1.bf16.msra.mxu0 0
        %2911 = vmatprep.subr.bf16.mxu0 0
        %2912 = vmatpush1.bf16.msra.mxu0 0
        %2913 = vmatprep.subr.bf16.mxu0 0
        %2914 = vmatpush1.bf16.msra.mxu0 0
        %2915 = vmatprep.subr.bf16.mxu0 0
        %2916 = vmatpush1.bf16.msra.mxu0 %v2700
        %2917 = vmatprep.subr.bf16.mxu0 0
        %2918 = vmatpush1.bf16.msra.mxu0 %v2699
        %2919 = vmatprep.subr.bf16.mxu0 0
        %2920 = vmatpush2.bf16.msra.mxu0 0
        %2921 = vmatprep.subr.bf16.mxu0 0
        %2922 = vmatpush2.bf16.msra.mxu0 0
        %2923 = vmatprep.subr.bf16.mxu0 0
        %2924 = vmatpush2.bf16.msra.mxu0 0
        %2925 = vmatprep.subr.bf16.mxu0 0
        %2926 = vmatpush2.bf16.msra.mxu0 0
        %2927 = vmatprep.subr.bf16.mxu0 0
        %2928 = vmatpush2.bf16.msra.mxu0 0
        %2929 = vmatprep.subr.bf16.mxu0 0
        %2930 = vmatpush2.bf16.msra.mxu0 0
        %2931 = vmatprep.subr.bf16.mxu0 0
        %2932 = vmatpush2.bf16.msra.mxu0 0
        %2933 = vmatprep.subr.bf16.mxu0 0
        %2934 = vmatpush2.bf16.msra.mxu0 0
        %2935 = vmatprep.mubr.bf16.mxu0 0
        %2936 = vmatmul.mubr.bf16.gmra.mxu0 %v1229
        %v2937 = vpop.f32.mrf.mxu0
        %v2938 = vadd.f32 0.0, %v2937
        %v2939 = vpop.f32.mrf.mxu0
        %v2940 = vpop.f32.mrf.mxu0
        %v2941 = vadd.f32 0.0, %v2940
        %v2942 = vpop.f32.mrf.mxu0
        %2943 = vmatprep.mubr.bf16.mxu0 0
        %2944 = vmatmul.mubr.bf16.gmra.mxu0 %v1232
        %v2945 = vpop.f32.mrf.mxu0
        %v2946 = vadd.f32 0.0, %v2945
        %v2947 = vpop.f32.mrf.mxu0
        %v2948 = vpop.f32.mrf.mxu0
        %v2949 = vadd.f32 0.0, %v2948
        %v2950 = vpop.f32.mrf.mxu0
        %2951 = vdwg.mxu0
        %2952 = vmatprep.subr.bf16.mxu0 0
        %2953 = vmatpush1.bf16.msra.mxu0 0
        %2954 = vmatprep.subr.bf16.mxu0 0
        %2955 = vmatpush1.bf16.msra.mxu0 0
        %2956 = vmatprep.subr.bf16.mxu0 0
        %2957 = vmatpush1.bf16.msra.mxu0 0
        %2958 = vmatprep.subr.bf16.mxu0 0
        %2959 = vmatpush1.bf16.msra.mxu0 0
        %2960 = vmatprep.subr.bf16.mxu0 0
        %2961 = vmatpush1.bf16.msra.mxu0 0
        %2962 = vmatprep.subr.bf16.mxu0 0
        %2963 = vmatpush1.bf16.msra.mxu0 0
        %2964 = vmatprep.subr.bf16.mxu0 0
        %2965 = vmatpush1.bf16.msra.mxu0 %v2702
        %2966 = vmatprep.subr.bf16.mxu0 0
        %2967 = vmatpush1.bf16.msra.mxu0 %v2701
        %2968 = vmatprep.subr.bf16.mxu0 0
        %2969 = vmatpush2.bf16.msra.mxu0 0
        %2970 = vmatprep.subr.bf16.mxu0 0
        %2971 = vmatpush2.bf16.msra.mxu0 0
        %2972 = vmatprep.subr.bf16.mxu0 0
        %2973 = vmatpush2.bf16.msra.mxu0 0
        %2974 = vmatprep.subr.bf16.mxu0 0
        %2975 = vmatpush2.bf16.msra.mxu0 0
        %2976 = vmatprep.subr.bf16.mxu0 0
        %2977 = vmatpush2.bf16.msra.mxu0 0
        %2978 = vmatprep.subr.bf16.mxu0 0
        %2979 = vmatpush2.bf16.msra.mxu0 0
        %2980 = vmatprep.subr.bf16.mxu0 0
        %2981 = vmatpush2.bf16.msra.mxu0 0
        %2982 = vmatprep.subr.bf16.mxu0 0
        %2983 = vmatpush2.bf16.msra.mxu0 0
        %2984 = vmatprep.mubr.bf16.mxu0 0
        %2985 = vmatmul.mubr.bf16.gmra.mxu0 %v1294
        %v2986 = vpop.f32.mrf.mxu0
        %v2987 = vadd.f32 0.0, %v2986
        %v2988 = vpop.f32.mrf.mxu0
        %v2989 = vpop.f32.mrf.mxu0
        %v2990 = vadd.f32 0.0, %v2989
        %v2991 = vpop.f32.mrf.mxu0
        %2992 = vmatprep.mubr.bf16.mxu0 0
        %2993 = vmatmul.mubr.bf16.gmra.mxu0 %v1297
        %v2994 = vpop.f32.mrf.mxu0
        %v2995 = vadd.f32 0.0, %v2994
        %v2996 = vpop.f32.mrf.mxu0
        %v2997 = vpop.f32.mrf.mxu0
        %v2998 = vadd.f32 0.0, %v2997
        %v2999 = vpop.f32.mrf.mxu0
        %3000 = vdwg.mxu0
        %3001 = vmatprep.subr.bf16.mxu0 0
        %3002 = vmatpush1.bf16.msra.mxu0 0
        %3003 = vmatprep.subr.bf16.mxu0 0
        %3004 = vmatpush1.bf16.msra.mxu0 0
        %3005 = vmatprep.subr.bf16.mxu0 0
        %3006 = vmatpush1.bf16.msra.mxu0 0
        %3007 = vmatprep.subr.bf16.mxu0 0
        %3008 = vmatpush1.bf16.msra.mxu0 0
        %3009 = vmatprep.subr.bf16.mxu0 0
        %3010 = vmatpush1.bf16.msra.mxu0 0
        %3011 = vmatprep.subr.bf16.mxu0 0
        %3012 = vmatpush1.bf16.msra.mxu0 0
        %3013 = vmatprep.subr.bf16.mxu0 0
        %3014 = vmatpush1.bf16.msra.mxu0 %v2704
        %3015 = vmatprep.subr.bf16.mxu0 0
        %3016 = vmatpush1.bf16.msra.mxu0 %v2703
        %3017 = vmatprep.subr.bf16.mxu0 0
        %3018 = vmatpush2.bf16.msra.mxu0 0
        %3019 = vmatprep.subr.bf16.mxu0 0
        %3020 = vmatpush2.bf16.msra.mxu0 0
        %3021 = vmatprep.subr.bf16.mxu0 0
        %3022 = vmatpush2.bf16.msra.mxu0 0
        %3023 = vmatprep.subr.bf16.mxu0 0
        %3024 = vmatpush2.bf16.msra.mxu0 0
        %3025 = vmatprep.subr.bf16.mxu0 0
        %3026 = vmatpush2.bf16.msra.mxu0 0
        %3027 = vmatprep.subr.bf16.mxu0 0
        %3028 = vmatpush2.bf16.msra.mxu0 0
        %3029 = vmatprep.subr.bf16.mxu0 0
        %3030 = vmatpush2.bf16.msra.mxu0 0
        %3031 = vmatprep.subr.bf16.mxu0 0
        %3032 = vmatpush2.bf16.msra.mxu0 0
        %3033 = vmatprep.mubr.bf16.mxu0 0
        %3034 = vmatmul.mubr.bf16.gmra.mxu0 %v1359
        %v3035 = vpop.f32.mrf.mxu0
        %v3036 = vadd.f32 0.0, %v3035
        %v3037 = vpop.f32.mrf.mxu0
        %v3038 = vpop.f32.mrf.mxu0
        %v3039 = vadd.f32 0.0, %v3038
        %v3040 = vpop.f32.mrf.mxu0
        %3041 = vmatprep.mubr.bf16.mxu0 0
        %3042 = vmatmul.mubr.bf16.gmra.mxu0 %v1362
        %v3043 = vpop.f32.mrf.mxu0
        %v3044 = vadd.f32 0.0, %v3043
        %v3045 = vpop.f32.mrf.mxu0
        %v3046 = vpop.f32.mrf.mxu0
        %v3047 = vadd.f32 0.0, %v3046
        %v3048 = vpop.f32.mrf.mxu0
        %3049 = vdwg.mxu0
        %3050 = vmatprep.subr.bf16.mxu0 0
        %3051 = vmatpush1.bf16.msra.mxu0 0
        %3052 = vmatprep.subr.bf16.mxu0 0
        %3053 = vmatpush1.bf16.msra.mxu0 0
        %3054 = vmatprep.subr.bf16.mxu0 0
        %3055 = vmatpush1.bf16.msra.mxu0 0
        %3056 = vmatprep.subr.bf16.mxu0 0
        %3057 = vmatpush1.bf16.msra.mxu0 0
        %3058 = vmatprep.subr.bf16.mxu0 0
        %3059 = vmatpush1.bf16.msra.mxu0 0
        %3060 = vmatprep.subr.bf16.mxu0 0
        %3061 = vmatpush1.bf16.msra.mxu0 0
        %3062 = vmatprep.subr.bf16.mxu0 0
        %3063 = vmatpush1.bf16.msra.mxu0 %v2706
        %3064 = vmatprep.subr.bf16.mxu0 0
        %3065 = vmatpush1.bf16.msra.mxu0 %v2705
        %3066 = vmatprep.subr.bf16.mxu0 0
        %3067 = vmatpush2.bf16.msra.mxu0 0
        %3068 = vmatprep.subr.bf16.mxu0 0
        %3069 = vmatpush2.bf16.msra.mxu0 0
        %3070 = vmatprep.subr.bf16.mxu0 0
        %3071 = vmatpush2.bf16.msra.mxu0 0
        %3072 = vmatprep.subr.bf16.mxu0 0
        %3073 = vmatpush2.bf16.msra.mxu0 0
        %3074 = vmatprep.subr.bf16.mxu0 0
        %3075 = vmatpush2.bf16.msra.mxu0 0
        %3076 = vmatprep.subr.bf16.mxu0 0
        %3077 = vmatpush2.bf16.msra.mxu0 0
        %3078 = vmatprep.subr.bf16.mxu0 0
        %3079 = vmatpush2.bf16.msra.mxu0 0
        %3080 = vmatprep.subr.bf16.mxu0 0
        %3081 = vmatpush2.bf16.msra.mxu0 0
        %3082 = vmatprep.mubr.bf16.mxu0 0
        %3083 = vmatmul.mubr.bf16.gmra.mxu0 %v1424
        %v3084 = vpop.f32.mrf.mxu0
        %v3085 = vadd.f32 0.0, %v3084
        %v3086 = vpop.f32.mrf.mxu0
        %v3087 = vpop.f32.mrf.mxu0
        %v3088 = vadd.f32 0.0, %v3087
        %v3089 = vpop.f32.mrf.mxu0
        %3090 = vmatprep.mubr.bf16.mxu0 0
        %3091 = vmatmul.mubr.bf16.gmra.mxu0 %v1427
        %v3092 = vpop.f32.mrf.mxu0
        %v3093 = vadd.f32 0.0, %v3092
        %v3094 = vpop.f32.mrf.mxu0
        %v3095 = vpop.f32.mrf.mxu0
        %v3096 = vadd.f32 0.0, %v3095
        %v3097 = vpop.f32.mrf.mxu0
        %3098 = vdwg.mxu0
        %v3099 = vadd.f32 %v2742, %v1478
        %v3100 = vadd.f32 %v2745, %v1479
        %v3101 = vadd.f32 %v2750, %v1480
        %v3102 = vadd.f32 %v2753, %v1481
        %v3103 = vadd.f32 %v2791, %v1482
        %v3104 = vadd.f32 %v2794, %v1483
        %v3105 = vadd.f32 %v2799, %v1484
        %v3106 = vadd.f32 %v2802, %v1485
        %v3107 = vadd.f32 %v2840, %v1486
        %v3108 = vadd.f32 %v2843, %v1487
        %v3109 = vadd.f32 %v2848, %v1488
        %v3110 = vadd.f32 %v2851, %v1489
        %v3111 = vadd.f32 %v2889, %v1490
        %v3112 = vadd.f32 %v2892, %v1491
        %v3113 = vadd.f32 %v2897, %v1492
        %v3114 = vadd.f32 %v2900, %v1493
        %v3115 = vadd.f32 %v2938, %v1494
        %v3116 = vadd.f32 %v2941, %v1495
        %v3117 = vadd.f32 %v2946, %v1496
        %v3118 = vadd.f32 %v2949, %v1497
        %v3119 = vadd.f32 %v2987, %v1498
        %v3120 = vadd.f32 %v2990, %v1499
        %v3121 = vadd.f32 %v2995, %v1500
        %v3122 = vadd.f32 %v2998, %v1501
        %v3123 = vadd.f32 %v3036, %v1502
        %v3124 = vadd.f32 %v3039, %v1503
        %v3125 = vadd.f32 %v3044, %v1504
        %v3126 = vadd.f32 %v3047, %v1505
        %v3127 = vadd.f32 %v3085, %v1506
        %v3128 = vadd.f32 %v3088, %v1507
        %v3129 = vadd.f32 %v3093, %v1508
        %v3130 = vadd.f32 %v3096, %v1509
        %v3131 = vlaneseq
        %v3132 = vshrl.u32 %v3131, 7
        %v3133 = vsub.s32 0, %v3132
        %v3134 = vrot.slane %v2687, %v3133
        %v3135 = vmul.f32 %v3134, %v2655
        %v3136 = vmul.f32 %v3134, %v2656
        %v3137 = vmul.f32 %v3134, %v2657
        %v3138 = vmul.f32 %v3134, %v2658
        %v3139 = vmul.f32 %v3134, %v2659
        %v3140 = vmul.f32 %v3134, %v2660
        %v3141 = vmul.f32 %v3134, %v2661
        %v3142 = vmul.f32 %v3134, %v2662
        %v3143 = vmul.f32 %v3134, %v2663
        %v3144 = vmul.f32 %v3134, %v2664
        %v3145 = vmul.f32 %v3134, %v2665
        %v3146 = vmul.f32 %v3134, %v2666
        %v3147 = vmul.f32 %v3134, %v2667
        %v3148 = vmul.f32 %v3134, %v2668
        %v3149 = vmul.f32 %v3134, %v2669
        %v3150 = vmul.f32 %v3134, %v2670
        %v3151 = vmul.f32 %v3134, %v2671
        %v3152 = vmul.f32 %v3134, %v2672
        %v3153 = vmul.f32 %v3134, %v2673
        %v3154 = vmul.f32 %v3134, %v2674
        %v3155 = vmul.f32 %v3134, %v2675
        %v3156 = vmul.f32 %v3134, %v2676
        %v3157 = vmul.f32 %v3134, %v2677
        %v3158 = vmul.f32 %v3134, %v2678
        %v3159 = vmul.f32 %v3134, %v2679
        %v3160 = vmul.f32 %v3134, %v2680
        %v3161 = vmul.f32 %v3134, %v2681
        %v3162 = vmul.f32 %v3134, %v2682
        %v3163 = vmul.f32 %v3134, %v2683
        %v3164 = vmul.f32 %v3134, %v2684
        %v3165 = vmul.f32 %v3134, %v2685
        %v3166 = vmul.f32 %v3134, %v2686
        %v3167 = vadd.f32 %v3135, %v3099
        %v3168 = vadd.f32 %v3136, %v3100
        %v3169 = vadd.f32 %v3137, %v3101
        %v3170 = vadd.f32 %v3138, %v3102
        %v3171 = vadd.f32 %v3139, %v3103
        %v3172 = vadd.f32 %v3140, %v3104
        %v3173 = vadd.f32 %v3141, %v3105
        %v3174 = vadd.f32 %v3142, %v3106
        %v3175 = vadd.f32 %v3143, %v3107
        %v3176 = vadd.f32 %v3144, %v3108
        %v3177 = vadd.f32 %v3145, %v3109
        %v3178 = vadd.f32 %v3146, %v3110
        %v3179 = vadd.f32 %v3147, %v3111
        %v3180 = vadd.f32 %v3148, %v3112
        %v3181 = vadd.f32 %v3149, %v3113
        %v3182 = vadd.f32 %v3150, %v3114
        %v3183 = vadd.f32 %v3151, %v3115
        %v3184 = vadd.f32 %v3152, %v3116
        %v3185 = vadd.f32 %v3153, %v3117
        %v3186 = vadd.f32 %v3154, %v3118
        %v3187 = vadd.f32 %v3155, %v3119
        %v3188 = vadd.f32 %v3156, %v3120
        %v3189 = vadd.f32 %v3157, %v3121
        %v3190 = vadd.f32 %v3158, %v3122
        %v3191 = vadd.f32 %v3159, %v3123
        %v3192 = vadd.f32 %v3160, %v3124
        %v3193 = vadd.f32 %v3161, %v3125
        %v3194 = vadd.f32 %v3162, %v3126
        %v3195 = vadd.f32 %v3163, %v3127
        %v3196 = vadd.f32 %v3164, %v3128
        %v3197 = vadd.f32 %v3165, %v3129
        %v3198 = vadd.f32 %v3166, %v3130
        %v3199 = vpack.c.bf16 %v3168, %v3167
        %v3200 = vpack.c.bf16 %v3170, %v3169
        %v3201 = vpack.c.bf16 %v3172, %v3171
        %v3202 = vpack.c.bf16 %v3174, %v3173
        %v3203 = vpack.c.bf16 %v3176, %v3175
        %v3204 = vpack.c.bf16 %v3178, %v3177
        %v3205 = vpack.c.bf16 %v3180, %v3179
        %v3206 = vpack.c.bf16 %v3182, %v3181
        %v3207 = vpack.c.bf16 %v3184, %v3183
        %v3208 = vpack.c.bf16 %v3186, %v3185
        %v3209 = vpack.c.bf16 %v3188, %v3187
        %v3210 = vpack.c.bf16 %v3190, %v3189
        %v3211 = vpack.c.bf16 %v3192, %v3191
        %v3212 = vpack.c.bf16 %v3194, %v3193
        %v3213 = vpack.c.bf16 %v3196, %v3195
        %v3214 = vpack.c.bf16 %v3198, %v3197
        %s3215 = scalar_lea.vmem %s7, 48
        %v3216 = vld [vmem:[%s3215] sm:$0xf]
        %v3217 = vld [vmem:[%s3215 + $0x4] sm:$0xf]
        %v3218 = vld [vmem:[%s3215 + $0x8] sm:$0xf]
        %v3219 = vld [vmem:[%s3215 + $0xc] sm:$0xf]
        %v3220 = vlaneseq
        %v3221 = vshrl.u32 %v3220, 7
        %v3222 = vsub.s32 0, %v3221
        %v3223 = vrot.slane %v2688, %v3222
        %v3228 = vunpack.c.l.b16 %v3216
        %v3229 = vunpack.c.l.b16 %v3217
        %v3230 = vunpack.c.l.b16 %v3218
        %v3231 = vunpack.c.l.b16 %v3219
        %v3232 = vpack.c.b16 %v3229, %v3228
        %v3233 = vpack.c.b16 %v3231, %v3230
        %v3237 = vsel %vm967, %v3199, 0
        %v3240 = vsel %vm967, %v3200, 0
        %v3243 = vsel %vm967, %v3201, 0
        %v3246 = vsel %vm967, %v3202, 0
        %v3249 = vsel %vm967, %v3203, 0
        %v3252 = vsel %vm967, %v3204, 0
        %v3255 = vsel %vm967, %v3205, 0
        %v3258 = vsel %vm967, %v3206, 0
        %v3261 = vsel %vm967, %v3207, 0
        %v3264 = vsel %vm967, %v3208, 0
        %v3267 = vsel %vm967, %v3209, 0
        %v3270 = vsel %vm967, %v3210, 0
        %v3273 = vsel %vm967, %v3211, 0
        %v3276 = vsel %vm967, %v3212, 0
        %v3279 = vsel %vm967, %v3213, 0
        %v3282 = vsel %vm967, %v3214, 0
        %3284 = vmatprep.subr.bf16.mxu0 0
        %3285 = vmatpush1.bf16.msra.mxu0 0
        %3286 = vmatprep.subr.bf16.mxu0 0
        %3287 = vmatpush1.bf16.msra.mxu0 0
        %3288 = vmatprep.subr.bf16.mxu0 0
        %3289 = vmatpush1.bf16.msra.mxu0 0
        %3290 = vmatprep.subr.bf16.mxu0 0
        %3291 = vmatpush1.bf16.msra.mxu0 0
        %3292 = vmatprep.subr.bf16.mxu0 0
        %3293 = vmatpush1.bf16.msra.mxu0 0
        %3294 = vmatprep.subr.bf16.mxu0 0
        %3295 = vmatpush1.bf16.msra.mxu0 0
        %3296 = vmatprep.subr.bf16.mxu0 0
        %3297 = vmatpush1.bf16.msra.mxu0 %v3233
        %3298 = vmatprep.subr.bf16.mxu0 0
        %3299 = vmatpush1.bf16.msra.mxu0 %v3232
        %3300 = vmatprep.subr.bf16.mxu0 0
        %3301 = vmatpush2.bf16.msra.mxu0 0
        %3302 = vmatprep.subr.bf16.mxu0 0
        %3303 = vmatpush2.bf16.msra.mxu0 0
        %3304 = vmatprep.subr.bf16.mxu0 0
        %3305 = vmatpush2.bf16.msra.mxu0 0
        %3306 = vmatprep.subr.bf16.mxu0 0
        %3307 = vmatpush2.bf16.msra.mxu0 0
        %3308 = vmatprep.subr.bf16.mxu0 0
        %3309 = vmatpush2.bf16.msra.mxu0 0
        %3310 = vmatprep.subr.bf16.mxu0 0
        %3311 = vmatpush2.bf16.msra.mxu0 0
        %3312 = vmatprep.subr.bf16.mxu0 0
        %3313 = vmatpush2.bf16.msra.mxu0 0
        %3314 = vmatprep.subr.bf16.mxu0 0
        %3315 = vmatpush2.bf16.msra.mxu0 0
        %3316 = vmatprep.mubr.bf16.mxu0 0
        %3317 = vmatmul.mubr.bf16.gmra.mxu0 %v3237
        %v3318 = vpop.f32.mrf.mxu0
        %v3319 = vadd.f32 %v3223, %v3318
        %v3320 = vpop.f32.mrf.mxu0
        %v3321 = vpop.f32.mrf.mxu0
        %v3322 = vadd.f32 %v3223, %v3321
        %v3323 = vpop.f32.mrf.mxu0
        %3324 = vmatprep.mubr.bf16.mxu0 0
        %3325 = vmatmul.mubr.bf16.gmra.mxu0 %v3240
        %v3326 = vpop.f32.mrf.mxu0
        %v3327 = vadd.f32 %v3223, %v3326
        %v3328 = vpop.f32.mrf.mxu0
        %v3329 = vpop.f32.mrf.mxu0
        %v3330 = vadd.f32 %v3223, %v3329
        %v3331 = vpop.f32.mrf.mxu0
        %3332 = vmatprep.mubr.bf16.mxu0 0
        %3333 = vmatmul.mubr.bf16.gmra.mxu0 %v3243
        %v3334 = vpop.f32.mrf.mxu0
        %v3335 = vadd.f32 %v3223, %v3334
        %v3336 = vpop.f32.mrf.mxu0
        %v3337 = vpop.f32.mrf.mxu0
        %v3338 = vadd.f32 %v3223, %v3337
        %v3339 = vpop.f32.mrf.mxu0
        %3340 = vmatprep.mubr.bf16.mxu0 0
        %3341 = vmatmul.mubr.bf16.gmra.mxu0 %v3246
        %v3342 = vpop.f32.mrf.mxu0
        %v3343 = vadd.f32 %v3223, %v3342
        %v3344 = vpop.f32.mrf.mxu0
        %v3345 = vpop.f32.mrf.mxu0
        %v3346 = vadd.f32 %v3223, %v3345
        %v3347 = vpop.f32.mrf.mxu0
        %3348 = vmatprep.mubr.bf16.mxu0 0
        %3349 = vmatmul.mubr.bf16.gmra.mxu0 %v3249
        %v3350 = vpop.f32.mrf.mxu0
        %v3351 = vadd.f32 %v3223, %v3350
        %v3352 = vpop.f32.mrf.mxu0
        %v3353 = vpop.f32.mrf.mxu0
        %v3354 = vadd.f32 %v3223, %v3353
        %v3355 = vpop.f32.mrf.mxu0
        %3356 = vmatprep.mubr.bf16.mxu0 0
        %3357 = vmatmul.mubr.bf16.gmra.mxu0 %v3252
        %v3358 = vpop.f32.mrf.mxu0
        %v3359 = vadd.f32 %v3223, %v3358
        %v3360 = vpop.f32.mrf.mxu0
        %v3361 = vpop.f32.mrf.mxu0
        %v3362 = vadd.f32 %v3223, %v3361
        %v3363 = vpop.f32.mrf.mxu0
        %3364 = vmatprep.mubr.bf16.mxu0 0
        %3365 = vmatmul.mubr.bf16.gmra.mxu0 %v3255
        %v3366 = vpop.f32.mrf.mxu0
        %v3367 = vadd.f32 %v3223, %v3366
        %v3368 = vpop.f32.mrf.mxu0
        %v3369 = vpop.f32.mrf.mxu0
        %v3370 = vadd.f32 %v3223, %v3369
        %v3371 = vpop.f32.mrf.mxu0
        %3372 = vmatprep.mubr.bf16.mxu0 0
        %3373 = vmatmul.mubr.bf16.gmra.mxu0 %v3258
        %v3374 = vpop.f32.mrf.mxu0
        %v3375 = vadd.f32 %v3223, %v3374
        %v3376 = vpop.f32.mrf.mxu0
        %v3377 = vpop.f32.mrf.mxu0
        %v3378 = vadd.f32 %v3223, %v3377
        %v3379 = vpop.f32.mrf.mxu0
        %3380 = vmatprep.mubr.bf16.mxu0 0
        %3381 = vmatmul.mubr.bf16.gmra.mxu0 %v3261
        %v3382 = vpop.f32.mrf.mxu0
        %v3383 = vadd.f32 %v3223, %v3382
        %v3384 = vpop.f32.mrf.mxu0
        %v3385 = vpop.f32.mrf.mxu0
        %v3386 = vadd.f32 %v3223, %v3385
        %v3387 = vpop.f32.mrf.mxu0
        %3388 = vmatprep.mubr.bf16.mxu0 0
        %3389 = vmatmul.mubr.bf16.gmra.mxu0 %v3264
        %v3390 = vpop.f32.mrf.mxu0
        %v3391 = vadd.f32 %v3223, %v3390
        %v3392 = vpop.f32.mrf.mxu0
        %v3393 = vpop.f32.mrf.mxu0
        %v3394 = vadd.f32 %v3223, %v3393
        %v3395 = vpop.f32.mrf.mxu0
        %3396 = vmatprep.mubr.bf16.mxu0 0
        %3397 = vmatmul.mubr.bf16.gmra.mxu0 %v3267
        %v3398 = vpop.f32.mrf.mxu0
        %v3399 = vadd.f32 %v3223, %v3398
        %v3400 = vpop.f32.mrf.mxu0
        %v3401 = vpop.f32.mrf.mxu0
        %v3402 = vadd.f32 %v3223, %v3401
        %v3403 = vpop.f32.mrf.mxu0
        %3404 = vmatprep.mubr.bf16.mxu0 0
        %3405 = vmatmul.mubr.bf16.gmra.mxu0 %v3270
        %v3406 = vpop.f32.mrf.mxu0
        %v3407 = vadd.f32 %v3223, %v3406
        %v3408 = vpop.f32.mrf.mxu0
        %v3409 = vpop.f32.mrf.mxu0
        %v3410 = vadd.f32 %v3223, %v3409
        %v3411 = vpop.f32.mrf.mxu0
        %3412 = vmatprep.mubr.bf16.mxu0 0
        %3413 = vmatmul.mubr.bf16.gmra.mxu0 %v3273
        %v3414 = vpop.f32.mrf.mxu0
        %v3415 = vadd.f32 %v3223, %v3414
        %v3416 = vpop.f32.mrf.mxu0
        %v3417 = vpop.f32.mrf.mxu0
        %v3418 = vadd.f32 %v3223, %v3417
        %v3419 = vpop.f32.mrf.mxu0
        %3420 = vmatprep.mubr.bf16.mxu0 0
        %3421 = vmatmul.mubr.bf16.gmra.mxu0 %v3276
        %v3422 = vpop.f32.mrf.mxu0
        %v3423 = vadd.f32 %v3223, %v3422
        %v3424 = vpop.f32.mrf.mxu0
        %v3425 = vpop.f32.mrf.mxu0
        %v3426 = vadd.f32 %v3223, %v3425
        %v3427 = vpop.f32.mrf.mxu0
        %3428 = vmatprep.mubr.bf16.mxu0 0
        %3429 = vmatmul.mubr.bf16.gmra.mxu0 %v3279
        %v3430 = vpop.f32.mrf.mxu0
        %v3431 = vadd.f32 %v3223, %v3430
        %v3432 = vpop.f32.mrf.mxu0
        %v3433 = vpop.f32.mrf.mxu0
        %v3434 = vadd.f32 %v3223, %v3433
        %v3435 = vpop.f32.mrf.mxu0
        %3436 = vmatprep.mubr.bf16.mxu0 0
        %3437 = vmatmul.mubr.bf16.gmra.mxu0 %v3282
        %v3438 = vpop.f32.mrf.mxu0
        %v3439 = vadd.f32 %v3223, %v3438
        %v3440 = vpop.f32.mrf.mxu0
        %v3441 = vpop.f32.mrf.mxu0
        %v3442 = vadd.f32 %v3223, %v3441
        %v3443 = vpop.f32.mrf.mxu0
        %3444 = vdwg.mxu0
        %v3445 = vmax.f32 %v3319, 0.0
        %v3446 = vmax.f32 %v3322, 0.0
        %v3447 = vmax.f32 %v3327, 0.0
        %v3448 = vmax.f32 %v3330, 0.0
        %v3449 = vmax.f32 %v3335, 0.0
        %v3450 = vmax.f32 %v3338, 0.0
        %v3451 = vmax.f32 %v3343, 0.0
        %v3452 = vmax.f32 %v3346, 0.0
        %v3453 = vmax.f32 %v3351, 0.0
        %v3454 = vmax.f32 %v3354, 0.0
        %v3455 = vmax.f32 %v3359, 0.0
        %v3456 = vmax.f32 %v3362, 0.0
        %v3457 = vmax.f32 %v3367, 0.0
        %v3458 = vmax.f32 %v3370, 0.0
        %v3459 = vmax.f32 %v3375, 0.0
        %v3460 = vmax.f32 %v3378, 0.0
        %v3461 = vmax.f32 %v3383, 0.0
        %v3462 = vmax.f32 %v3386, 0.0
        %v3463 = vmax.f32 %v3391, 0.0
        %v3464 = vmax.f32 %v3394, 0.0
        %v3465 = vmax.f32 %v3399, 0.0
        %v3466 = vmax.f32 %v3402, 0.0
        %v3467 = vmax.f32 %v3407, 0.0
        %v3468 = vmax.f32 %v3410, 0.0
        %v3469 = vmax.f32 %v3415, 0.0
        %v3470 = vmax.f32 %v3418, 0.0
        %v3471 = vmax.f32 %v3423, 0.0
        %v3472 = vmax.f32 %v3426, 0.0
        %v3473 = vmax.f32 %v3431, 0.0
        %v3474 = vmax.f32 %v3434, 0.0
        %v3475 = vmax.f32 %v3439, 0.0
        %v3476 = vmax.f32 %v3442, 0.0
        %v3477 = vpack.c.bf16 %v3446, %v3445
        %v3478 = vpack.c.bf16 %v3448, %v3447
        %v3479 = vpack.c.bf16 %v3450, %v3449
        %v3480 = vpack.c.bf16 %v3452, %v3451
        %v3481 = vpack.c.bf16 %v3454, %v3453
        %v3482 = vpack.c.bf16 %v3456, %v3455
        %v3483 = vpack.c.bf16 %v3458, %v3457
        %v3484 = vpack.c.bf16 %v3460, %v3459
        %v3485 = vpack.c.bf16 %v3462, %v3461
        %v3486 = vpack.c.bf16 %v3464, %v3463
        %v3487 = vpack.c.bf16 %v3466, %v3465
        %v3488 = vpack.c.bf16 %v3468, %v3467
        %v3489 = vpack.c.bf16 %v3470, %v3469
        %v3490 = vpack.c.bf16 %v3472, %v3471
        %v3491 = vpack.c.bf16 %v3474, %v3473
        %v3492 = vpack.c.bf16 %v3476, %v3475
        %s3493 = scalar_lea.vmem %s7, 64
        %v3494 = vld [vmem:[%s3493] sm:$0xf]
        %v3495 = vld [vmem:[%s3493 + $0x4] sm:$0xf]
        %v3496 = vld [vmem:[%s3493 + $0x8] sm:$0xf]
        %v3497 = vld [vmem:[%s3493 + $0xc] sm:$0xf]
        %v3498 = vlaneseq
        %v3499 = vshrl.u32 %v3498, 7
        %v3500 = vsub.s32 0, %v3499
        %v3501 = vrot.slane %v2689, %v3500
        %v3506 = vunpack.c.l.b16 %v3494
        %v3507 = vunpack.c.l.b16 %v3495
        %v3508 = vunpack.c.l.b16 %v3496
        %v3509 = vunpack.c.l.b16 %v3497
        %v3510 = vpack.c.b16 %v3507, %v3506
        %v3511 = vpack.c.b16 %v3509, %v3508
        %v3515 = vsel %vm967, %v3477, 0
        %v3518 = vsel %vm967, %v3478, 0
        %v3521 = vsel %vm967, %v3479, 0
        %v3524 = vsel %vm967, %v3480, 0
        %v3527 = vsel %vm967, %v3481, 0
        %v3530 = vsel %vm967, %v3482, 0
        %v3533 = vsel %vm967, %v3483, 0
        %v3536 = vsel %vm967, %v3484, 0
        %v3539 = vsel %vm967, %v3485, 0
        %v3542 = vsel %vm967, %v3486, 0
        %v3545 = vsel %vm967, %v3487, 0
        %v3548 = vsel %vm967, %v3488, 0
        %v3551 = vsel %vm967, %v3489, 0
        %v3554 = vsel %vm967, %v3490, 0
        %v3557 = vsel %vm967, %v3491, 0
        %v3560 = vsel %vm967, %v3492, 0
        %3562 = vmatprep.subr.bf16.mxu0 0
        %3563 = vmatpush1.bf16.msra.mxu0 0
        %3564 = vmatprep.subr.bf16.mxu0 0
        %3565 = vmatpush1.bf16.msra.mxu0 0
        %3566 = vmatprep.subr.bf16.mxu0 0
        %3567 = vmatpush1.bf16.msra.mxu0 0
        %3568 = vmatprep.subr.bf16.mxu0 0
        %3569 = vmatpush1.bf16.msra.mxu0 0
        %3570 = vmatprep.subr.bf16.mxu0 0
        %3571 = vmatpush1.bf16.msra.mxu0 0
        %3572 = vmatprep.subr.bf16.mxu0 0
        %3573 = vmatpush1.bf16.msra.mxu0 0
        %3574 = vmatprep.subr.bf16.mxu0 0
        %3575 = vmatpush1.bf16.msra.mxu0 %v3511
        %3576 = vmatprep.subr.bf16.mxu0 0
        %3577 = vmatpush1.bf16.msra.mxu0 %v3510
        %3578 = vmatprep.subr.bf16.mxu0 0
        %3579 = vmatpush2.bf16.msra.mxu0 0
        %3580 = vmatprep.subr.bf16.mxu0 0
        %3581 = vmatpush2.bf16.msra.mxu0 0
        %3582 = vmatprep.subr.bf16.mxu0 0
        %3583 = vmatpush2.bf16.msra.mxu0 0
        %3584 = vmatprep.subr.bf16.mxu0 0
        %3585 = vmatpush2.bf16.msra.mxu0 0
        %3586 = vmatprep.subr.bf16.mxu0 0
        %3587 = vmatpush2.bf16.msra.mxu0 0
        %3588 = vmatprep.subr.bf16.mxu0 0
        %3589 = vmatpush2.bf16.msra.mxu0 0
        %3590 = vmatprep.subr.bf16.mxu0 0
        %3591 = vmatpush2.bf16.msra.mxu0 0
        %3592 = vmatprep.subr.bf16.mxu0 0
        %3593 = vmatpush2.bf16.msra.mxu0 0
        %3594 = vmatprep.mubr.bf16.mxu0 0
        %3595 = vmatmul.mubr.bf16.gmra.mxu0 %v3515
        %v3596 = vpop.f32.mrf.mxu0
        %v3597 = vadd.f32 %v3501, %v3596
        %v3598 = vpop.f32.mrf.mxu0
        %v3599 = vpop.f32.mrf.mxu0
        %v3600 = vadd.f32 %v3501, %v3599
        %v3601 = vpop.f32.mrf.mxu0
        %3602 = vmatprep.mubr.bf16.mxu0 0
        %3603 = vmatmul.mubr.bf16.gmra.mxu0 %v3518
        %v3604 = vpop.f32.mrf.mxu0
        %v3605 = vadd.f32 %v3501, %v3604
        %v3606 = vpop.f32.mrf.mxu0
        %v3607 = vpop.f32.mrf.mxu0
        %v3608 = vadd.f32 %v3501, %v3607
        %v3609 = vpop.f32.mrf.mxu0
        %3610 = vmatprep.mubr.bf16.mxu0 0
        %3611 = vmatmul.mubr.bf16.gmra.mxu0 %v3521
        %v3612 = vpop.f32.mrf.mxu0
        %v3613 = vadd.f32 %v3501, %v3612
        %v3614 = vpop.f32.mrf.mxu0
        %v3615 = vpop.f32.mrf.mxu0
        %v3616 = vadd.f32 %v3501, %v3615
        %v3617 = vpop.f32.mrf.mxu0
        %3618 = vmatprep.mubr.bf16.mxu0 0
        %3619 = vmatmul.mubr.bf16.gmra.mxu0 %v3524
        %v3620 = vpop.f32.mrf.mxu0
        %v3621 = vadd.f32 %v3501, %v3620
        %v3622 = vpop.f32.mrf.mxu0
        %v3623 = vpop.f32.mrf.mxu0
        %v3624 = vadd.f32 %v3501, %v3623
        %v3625 = vpop.f32.mrf.mxu0
        %3626 = vmatprep.mubr.bf16.mxu0 0
        %3627 = vmatmul.mubr.bf16.gmra.mxu0 %v3527
        %v3628 = vpop.f32.mrf.mxu0
        %v3629 = vadd.f32 %v3501, %v3628
        %v3630 = vpop.f32.mrf.mxu0
        %v3631 = vpop.f32.mrf.mxu0
        %v3632 = vadd.f32 %v3501, %v3631
        %v3633 = vpop.f32.mrf.mxu0
        %3634 = vmatprep.mubr.bf16.mxu0 0
        %3635 = vmatmul.mubr.bf16.gmra.mxu0 %v3530
        %v3636 = vpop.f32.mrf.mxu0
        %v3637 = vadd.f32 %v3501, %v3636
        %v3638 = vpop.f32.mrf.mxu0
        %v3639 = vpop.f32.mrf.mxu0
        %v3640 = vadd.f32 %v3501, %v3639
        %v3641 = vpop.f32.mrf.mxu0
        %3642 = vmatprep.mubr.bf16.mxu0 0
        %3643 = vmatmul.mubr.bf16.gmra.mxu0 %v3533
        %v3644 = vpop.f32.mrf.mxu0
        %v3645 = vadd.f32 %v3501, %v3644
        %v3646 = vpop.f32.mrf.mxu0
        %v3647 = vpop.f32.mrf.mxu0
        %v3648 = vadd.f32 %v3501, %v3647
        %v3649 = vpop.f32.mrf.mxu0
        %3650 = vmatprep.mubr.bf16.mxu0 0
        %3651 = vmatmul.mubr.bf16.gmra.mxu0 %v3536
        %v3652 = vpop.f32.mrf.mxu0
        %v3653 = vadd.f32 %v3501, %v3652
        %v3654 = vpop.f32.mrf.mxu0
        %v3655 = vpop.f32.mrf.mxu0
        %v3656 = vadd.f32 %v3501, %v3655
        %v3657 = vpop.f32.mrf.mxu0
        %3658 = vmatprep.mubr.bf16.mxu0 0
        %3659 = vmatmul.mubr.bf16.gmra.mxu0 %v3539
        %v3660 = vpop.f32.mrf.mxu0
        %v3661 = vadd.f32 %v3501, %v3660
        %v3662 = vpop.f32.mrf.mxu0
        %v3663 = vpop.f32.mrf.mxu0
        %v3664 = vadd.f32 %v3501, %v3663
        %v3665 = vpop.f32.mrf.mxu0
        %3666 = vmatprep.mubr.bf16.mxu0 0
        %3667 = vmatmul.mubr.bf16.gmra.mxu0 %v3542
        %v3668 = vpop.f32.mrf.mxu0
        %v3669 = vadd.f32 %v3501, %v3668
        %v3670 = vpop.f32.mrf.mxu0
        %v3671 = vpop.f32.mrf.mxu0
        %v3672 = vadd.f32 %v3501, %v3671
        %v3673 = vpop.f32.mrf.mxu0
        %3674 = vmatprep.mubr.bf16.mxu0 0
        %3675 = vmatmul.mubr.bf16.gmra.mxu0 %v3545
        %v3676 = vpop.f32.mrf.mxu0
        %v3677 = vadd.f32 %v3501, %v3676
        %v3678 = vpop.f32.mrf.mxu0
        %v3679 = vpop.f32.mrf.mxu0
        %v3680 = vadd.f32 %v3501, %v3679
        %v3681 = vpop.f32.mrf.mxu0
        %3682 = vmatprep.mubr.bf16.mxu0 0
        %3683 = vmatmul.mubr.bf16.gmra.mxu0 %v3548
        %v3684 = vpop.f32.mrf.mxu0
        %v3685 = vadd.f32 %v3501, %v3684
        %v3686 = vpop.f32.mrf.mxu0
        %v3687 = vpop.f32.mrf.mxu0
        %v3688 = vadd.f32 %v3501, %v3687
        %v3689 = vpop.f32.mrf.mxu0
        %3690 = vmatprep.mubr.bf16.mxu0 0
        %3691 = vmatmul.mubr.bf16.gmra.mxu0 %v3551
        %v3692 = vpop.f32.mrf.mxu0
        %v3693 = vadd.f32 %v3501, %v3692
        %v3694 = vpop.f32.mrf.mxu0
        %v3695 = vpop.f32.mrf.mxu0
        %v3696 = vadd.f32 %v3501, %v3695
        %v3697 = vpop.f32.mrf.mxu0
        %3698 = vmatprep.mubr.bf16.mxu0 0
        %3699 = vmatmul.mubr.bf16.gmra.mxu0 %v3554
        %v3700 = vpop.f32.mrf.mxu0
        %v3701 = vadd.f32 %v3501, %v3700
        %v3702 = vpop.f32.mrf.mxu0
        %v3703 = vpop.f32.mrf.mxu0
        %v3704 = vadd.f32 %v3501, %v3703
        %v3705 = vpop.f32.mrf.mxu0
        %3706 = vmatprep.mubr.bf16.mxu0 0
        %3707 = vmatmul.mubr.bf16.gmra.mxu0 %v3557
        %v3708 = vpop.f32.mrf.mxu0
        %v3709 = vadd.f32 %v3501, %v3708
        %v3710 = vpop.f32.mrf.mxu0
        %v3711 = vpop.f32.mrf.mxu0
        %v3712 = vadd.f32 %v3501, %v3711
        %v3713 = vpop.f32.mrf.mxu0
        %3714 = vmatprep.mubr.bf16.mxu0 0
        %3715 = vmatmul.mubr.bf16.gmra.mxu0 %v3560
        %v3716 = vpop.f32.mrf.mxu0
        %v3717 = vadd.f32 %v3501, %v3716
        %v3718 = vpop.f32.mrf.mxu0
        %v3719 = vpop.f32.mrf.mxu0
        %v3720 = vadd.f32 %v3501, %v3719
        %v3721 = vpop.f32.mrf.mxu0
        %3722 = vdwg.mxu0
        %v3723 = vmax.f32 %v3597, 0.0
        %v3724 = vmax.f32 %v3600, 0.0
        %v3725 = vmax.f32 %v3605, 0.0
        %v3726 = vmax.f32 %v3608, 0.0
        %v3727 = vmax.f32 %v3613, 0.0
        %v3728 = vmax.f32 %v3616, 0.0
        %v3729 = vmax.f32 %v3621, 0.0
        %v3730 = vmax.f32 %v3624, 0.0
        %v3731 = vmax.f32 %v3629, 0.0
        %v3732 = vmax.f32 %v3632, 0.0
        %v3733 = vmax.f32 %v3637, 0.0
        %v3734 = vmax.f32 %v3640, 0.0
        %v3735 = vmax.f32 %v3645, 0.0
        %v3736 = vmax.f32 %v3648, 0.0
        %v3737 = vmax.f32 %v3653, 0.0
        %v3738 = vmax.f32 %v3656, 0.0
        %v3739 = vmax.f32 %v3661, 0.0
        %v3740 = vmax.f32 %v3664, 0.0
        %v3741 = vmax.f32 %v3669, 0.0
        %v3742 = vmax.f32 %v3672, 0.0
        %v3743 = vmax.f32 %v3677, 0.0
        %v3744 = vmax.f32 %v3680, 0.0
        %v3745 = vmax.f32 %v3685, 0.0
        %v3746 = vmax.f32 %v3688, 0.0
        %v3747 = vmax.f32 %v3693, 0.0
        %v3748 = vmax.f32 %v3696, 0.0
        %v3749 = vmax.f32 %v3701, 0.0
        %v3750 = vmax.f32 %v3704, 0.0
        %v3751 = vmax.f32 %v3709, 0.0
        %v3752 = vmax.f32 %v3712, 0.0
        %v3753 = vmax.f32 %v3717, 0.0
        %v3754 = vmax.f32 %v3720, 0.0
        %v3755 = vpack.c.bf16 %v3724, %v3723
        %v3756 = vpack.c.bf16 %v3726, %v3725
        %v3757 = vpack.c.bf16 %v3728, %v3727
        %v3758 = vpack.c.bf16 %v3730, %v3729
        %v3759 = vpack.c.bf16 %v3732, %v3731
        %v3760 = vpack.c.bf16 %v3734, %v3733
        %v3761 = vpack.c.bf16 %v3736, %v3735
        %v3762 = vpack.c.bf16 %v3738, %v3737
        %v3763 = vpack.c.bf16 %v3740, %v3739
        %v3764 = vpack.c.bf16 %v3742, %v3741
        %v3765 = vpack.c.bf16 %v3744, %v3743
        %v3766 = vpack.c.bf16 %v3746, %v3745
        %v3767 = vpack.c.bf16 %v3748, %v3747
        %v3768 = vpack.c.bf16 %v3750, %v3749
        %v3769 = vpack.c.bf16 %v3752, %v3751
        %v3770 = vpack.c.bf16 %v3754, %v3753
        %3771 = vmatprep.subr.bf16.mxu0 0
        %3772 = vmatpush1.bf16.msra.mxu0 %v3762
        %3773 = vmatprep.subr.bf16.mxu0 0
        %3774 = vmatpush1.bf16.msra.mxu0 %v3761
        %3775 = vmatprep.subr.bf16.mxu0 0
        %3776 = vmatpush1.bf16.msra.mxu0 %v3760
        %3777 = vmatprep.subr.bf16.mxu0 0
        %3778 = vmatpush1.bf16.msra.mxu0 %v3759
        %3779 = vmatprep.subr.bf16.mxu0 0
        %3780 = vmatpush1.bf16.msra.mxu0 %v3758
        %3781 = vmatprep.subr.bf16.mxu0 0
        %3782 = vmatpush1.bf16.msra.mxu0 %v3757
        %3783 = vmatprep.subr.bf16.mxu0 0
        %3784 = vmatpush1.bf16.msra.mxu0 %v3756
        %3785 = vmatprep.subr.bf16.mxu0 0
        %3786 = vmatpush1.bf16.msra.mxu0 %v3755
        %3787 = vmatprep.subr.bf16.mxu0 0
        %3788 = vmatpush2.bf16.msra.mxu0 %v3770
        %3789 = vmatprep.subr.bf16.mxu0 0
        %3790 = vmatpush2.bf16.msra.mxu0 %v3769
        %3791 = vmatprep.subr.bf16.mxu0 0
        %3792 = vmatpush2.bf16.msra.mxu0 %v3768
        %3793 = vmatprep.subr.bf16.mxu0 0
        %3794 = vmatpush2.bf16.msra.mxu0 %v3767
        %3795 = vmatprep.subr.bf16.mxu0 0
        %3796 = vmatpush2.bf16.msra.mxu0 %v3766
        %3797 = vmatprep.subr.bf16.mxu0 0
        %3798 = vmatpush2.bf16.msra.mxu0 %v3765
        %3799 = vmatprep.subr.bf16.mxu0 0
        %3800 = vmatpush2.bf16.msra.mxu0 %v3764
        %3801 = vmatprep.subr.bf16.mxu0 0
        %3802 = vmatpush2.bf16.msra.mxu0 %v3763
        %3803 = vmatprep.mubr.bf16.mxu0 %v2194
        %3804 = vmatmul.mubr.bf16.gmra.mxu0 %v2193
        %v3805 = vpop.f32.mrf.mxu0
        %v3806 = vadd.f32 0.0, %v3805
        %v3807 = vpop.f32.mrf.mxu0
        %v3808 = vpop.f32.mrf.mxu0
        %v3809 = vadd.f32 0.0, %v3808
        %v3810 = vpop.f32.mrf.mxu0
        %3811 = vmatprep.mubr.bf16.mxu0 %v2196
        %3812 = vmatmul.mubr.bf16.gmra.mxu0 %v2195
        %v3813 = vpop.f32.mrf.mxu0
        %v3814 = vadd.f32 0.0, %v3813
        %v3815 = vpop.f32.mrf.mxu0
        %v3816 = vpop.f32.mrf.mxu0
        %v3817 = vadd.f32 0.0, %v3816
        %v3818 = vpop.f32.mrf.mxu0
        %3819 = vdwg.mxu0
        %v3820 = vpack.c.bf16 %v3809, %v3806
        %v3821 = vpack.c.bf16 %v3817, %v3814
        %s3822 = scalar_lea.vmem %s7, 80
        %v3823 = vld [vmem:[%s3822] sm:$0xf]
        %v3824 = vld [vmem:[%s3822 + $0x4] sm:$0xf]
        %v3825 = vld [vmem:[%s3822 + $0x8] sm:$0xf]
        %v3826 = vld [vmem:[%s3822 + $0xc] sm:$0xf]
        %v3827 = vlaneseq
        %v3828 = vshrl.u32 %v3827, 7
        %v3829 = vsub.s32 0, %v3828
        %v3830 = vrot.slane %v2690, %v3829
        %v3835 = vunpack.c.l.b16 %v3823
        %v3836 = vunpack.c.l.b16 %v3824
        %v3837 = vunpack.c.l.b16 %v3825
        %v3838 = vunpack.c.l.b16 %v3826
        %v3839 = vpack.c.b16 %v3836, %v3835
        %v3840 = vpack.c.b16 %v3838, %v3837
        %v3844 = vsel %vm967, %v3820, 0
        %v3847 = vsel %vm967, %v3821, 0
        %3849 = vmatprep.subr.bf16.mxu0 0
        %3850 = vmatpush1.bf16.msra.mxu0 0
        %3851 = vmatprep.subr.bf16.mxu0 0
        %3852 = vmatpush1.bf16.msra.mxu0 0
        %3853 = vmatprep.subr.bf16.mxu0 0
        %3854 = vmatpush1.bf16.msra.mxu0 0
        %3855 = vmatprep.subr.bf16.mxu0 0
        %3856 = vmatpush1.bf16.msra.mxu0 0
        %3857 = vmatprep.subr.bf16.mxu0 0
        %3858 = vmatpush1.bf16.msra.mxu0 0
        %3859 = vmatprep.subr.bf16.mxu0 0
        %3860 = vmatpush1.bf16.msra.mxu0 0
        %3861 = vmatprep.subr.bf16.mxu0 0
        %3862 = vmatpush1.bf16.msra.mxu0 %v3840
        %3863 = vmatprep.subr.bf16.mxu0 0
        %3864 = vmatpush1.bf16.msra.mxu0 %v3839
        %3865 = vmatprep.subr.bf16.mxu0 0
        %3866 = vmatpush2.bf16.msra.mxu0 0
        %3867 = vmatprep.subr.bf16.mxu0 0
        %3868 = vmatpush2.bf16.msra.mxu0 0
        %3869 = vmatprep.subr.bf16.mxu0 0
        %3870 = vmatpush2.bf16.msra.mxu0 0
        %3871 = vmatprep.subr.bf16.mxu0 0
        %3872 = vmatpush2.bf16.msra.mxu0 0
        %3873 = vmatprep.subr.bf16.mxu0 0
        %3874 = vmatpush2.bf16.msra.mxu0 0
        %3875 = vmatprep.subr.bf16.mxu0 0
        %3876 = vmatpush2.bf16.msra.mxu0 0
        %3877 = vmatprep.subr.bf16.mxu0 0
        %3878 = vmatpush2.bf16.msra.mxu0 0
        %3879 = vmatprep.subr.bf16.mxu0 0
        %3880 = vmatpush2.bf16.msra.mxu0 0
        %3881 = vmatprep.mubr.bf16.mxu0 0
        %3882 = vmatmul.mubr.bf16.gmra.mxu0 %v3844
        %v3883 = vpop.f32.mrf.mxu0
        %v3884 = vadd.f32 %v3830, %v3883
        %v3885 = vpop.f32.mrf.mxu0
        %v3886 = vpop.f32.mrf.mxu0
        %v3887 = vadd.f32 %v3830, %v3886
        %v3888 = vpop.f32.mrf.mxu0
        %3889 = vmatprep.mubr.bf16.mxu0 0
        %3890 = vmatmul.mubr.bf16.gmra.mxu0 %v3847
        %v3891 = vpop.f32.mrf.mxu0
        %v3892 = vadd.f32 %v3830, %v3891
        %v3893 = vpop.f32.mrf.mxu0
        %v3894 = vpop.f32.mrf.mxu0
        %v3895 = vadd.f32 %v3830, %v3894
        %v3896 = vpop.f32.mrf.mxu0
        %3897 = vdwg.mxu0
        %v3898 = vmax.f32 %v3884, 0.0
        %v3899 = vmax.f32 %v3887, 0.0
        %v3900 = vmax.f32 %v3892, 0.0
        %v3901 = vmax.f32 %v3895, 0.0
        %v3902 = vpack.c.bf16 %v3899, %v3898
        %v3903 = vpack.c.bf16 %v3901, %v3900
        %3904 = vmatprep.subr.bf16.mxu0 0
        %3905 = vmatpush1.bf16.msra.mxu0 0
        %3906 = vmatprep.subr.bf16.mxu0 0
        %3907 = vmatpush1.bf16.msra.mxu0 0
        %3908 = vmatprep.subr.bf16.mxu0 0
        %3909 = vmatpush1.bf16.msra.mxu0 0
        %3910 = vmatprep.subr.bf16.mxu0 0
        %3911 = vmatpush1.bf16.msra.mxu0 0
        %3912 = vmatprep.subr.bf16.mxu0 0
        %3913 = vmatpush1.bf16.msra.mxu0 0
        %3914 = vmatprep.subr.bf16.mxu0 0
        %3915 = vmatpush1.bf16.msra.mxu0 0
        %3916 = vmatprep.subr.bf16.mxu0 0
        %3917 = vmatpush1.bf16.msra.mxu0 %v3903
        %3918 = vmatprep.subr.bf16.mxu0 0
        %3919 = vmatpush1.bf16.msra.mxu0 %v3902
        %3920 = vmatprep.subr.bf16.mxu0 0
        %3921 = vmatpush2.bf16.msra.mxu0 0
        %3922 = vmatprep.subr.bf16.mxu0 0
        %3923 = vmatpush2.bf16.msra.mxu0 0
        %3924 = vmatprep.subr.bf16.mxu0 0
        %3925 = vmatpush2.bf16.msra.mxu0 0
        %3926 = vmatprep.subr.bf16.mxu0 0
        %3927 = vmatpush2.bf16.msra.mxu0 0
        %3928 = vmatprep.subr.bf16.mxu0 0
        %3929 = vmatpush2.bf16.msra.mxu0 0
        %3930 = vmatprep.subr.bf16.mxu0 0
        %3931 = vmatpush2.bf16.msra.mxu0 0
        %3932 = vmatprep.subr.bf16.mxu0 0
        %3933 = vmatpush2.bf16.msra.mxu0 0
        %3934 = vmatprep.subr.bf16.mxu0 0
        %3935 = vmatpush2.bf16.msra.mxu0 0
        %3936 = vmatprep.mubr.bf16.mxu0 0
        %3937 = vmatmul.mubr.bf16.gmra.mxu0 %v2415
        %v3938 = vpop.f32.mrf.mxu0
        %v3939 = vadd.f32 0.0, %v3938
        %v3940 = vpop.f32.mrf.mxu0
        %v3941 = vpop.f32.mrf.mxu0
        %v3942 = vadd.f32 0.0, %v3941
        %v3943 = vpop.f32.mrf.mxu0
        %3944 = vmatprep.mubr.bf16.mxu0 0
        %3945 = vmatmul.mubr.bf16.gmra.mxu0 %v2418
        %v3946 = vpop.f32.mrf.mxu0
        %v3947 = vadd.f32 0.0, %v3946
        %v3948 = vpop.f32.mrf.mxu0
        %v3949 = vpop.f32.mrf.mxu0
        %v3950 = vadd.f32 0.0, %v3949
        %v3951 = vpop.f32.mrf.mxu0
        %3952 = vmatprep.mubr.bf16.mxu0 0
        %3953 = vmatmul.mubr.bf16.gmra.mxu0 %v2421
        %v3954 = vpop.f32.mrf.mxu0
        %v3955 = vadd.f32 0.0, %v3954
        %v3956 = vpop.f32.mrf.mxu0
        %v3957 = vpop.f32.mrf.mxu0
        %v3958 = vadd.f32 0.0, %v3957
        %v3959 = vpop.f32.mrf.mxu0
        %3960 = vmatprep.mubr.bf16.mxu0 0
        %3961 = vmatmul.mubr.bf16.gmra.mxu0 %v2424
        %v3962 = vpop.f32.mrf.mxu0
        %v3963 = vadd.f32 0.0, %v3962
        %v3964 = vpop.f32.mrf.mxu0
        %v3965 = vpop.f32.mrf.mxu0
        %v3966 = vadd.f32 0.0, %v3965
        %v3967 = vpop.f32.mrf.mxu0
        %3968 = vmatprep.mubr.bf16.mxu0 0
        %3969 = vmatmul.mubr.bf16.gmra.mxu0 %v2427
        %v3970 = vpop.f32.mrf.mxu0
        %v3971 = vadd.f32 0.0, %v3970
        %v3972 = vpop.f32.mrf.mxu0
        %v3973 = vpop.f32.mrf.mxu0
        %v3974 = vadd.f32 0.0, %v3973
        %v3975 = vpop.f32.mrf.mxu0
        %3976 = vmatprep.mubr.bf16.mxu0 0
        %3977 = vmatmul.mubr.bf16.gmra.mxu0 %v2430
        %v3978 = vpop.f32.mrf.mxu0
        %v3979 = vadd.f32 0.0, %v3978
        %v3980 = vpop.f32.mrf.mxu0
        %v3981 = vpop.f32.mrf.mxu0
        %v3982 = vadd.f32 0.0, %v3981
        %v3983 = vpop.f32.mrf.mxu0
        %3984 = vmatprep.mubr.bf16.mxu0 0
        %3985 = vmatmul.mubr.bf16.gmra.mxu0 %v2433
        %v3986 = vpop.f32.mrf.mxu0
        %v3987 = vadd.f32 0.0, %v3986
        %v3988 = vpop.f32.mrf.mxu0
        %v3989 = vpop.f32.mrf.mxu0
        %v3990 = vadd.f32 0.0, %v3989
        %v3991 = vpop.f32.mrf.mxu0
        %3992 = vmatprep.mubr.bf16.mxu0 0
        %3993 = vmatmul.mubr.bf16.gmra.mxu0 %v2436
        %v3994 = vpop.f32.mrf.mxu0
        %v3995 = vadd.f32 0.0, %v3994
        %v3996 = vpop.f32.mrf.mxu0
        %v3997 = vpop.f32.mrf.mxu0
        %v3998 = vadd.f32 0.0, %v3997
        %v3999 = vpop.f32.mrf.mxu0
        %4000 = vmatprep.mubr.bf16.mxu0 0
        %4001 = vmatmul.mubr.bf16.gmra.mxu0 %v2439
        %v4002 = vpop.f32.mrf.mxu0
        %v4003 = vadd.f32 0.0, %v4002
        %v4004 = vpop.f32.mrf.mxu0
        %v4005 = vpop.f32.mrf.mxu0
        %v4006 = vadd.f32 0.0, %v4005
        %v4007 = vpop.f32.mrf.mxu0
        %4008 = vmatprep.mubr.bf16.mxu0 0
        %4009 = vmatmul.mubr.bf16.gmra.mxu0 %v2442
        %v4010 = vpop.f32.mrf.mxu0
        %v4011 = vadd.f32 0.0, %v4010
        %v4012 = vpop.f32.mrf.mxu0
        %v4013 = vpop.f32.mrf.mxu0
        %v4014 = vadd.f32 0.0, %v4013
        %v4015 = vpop.f32.mrf.mxu0
        %4016 = vmatprep.mubr.bf16.mxu0 0
        %4017 = vmatmul.mubr.bf16.gmra.mxu0 %v2445
        %v4018 = vpop.f32.mrf.mxu0
        %v4019 = vadd.f32 0.0, %v4018
        %v4020 = vpop.f32.mrf.mxu0
        %v4021 = vpop.f32.mrf.mxu0
        %v4022 = vadd.f32 0.0, %v4021
        %v4023 = vpop.f32.mrf.mxu0
        %4024 = vmatprep.mubr.bf16.mxu0 0
        %4025 = vmatmul.mubr.bf16.gmra.mxu0 %v2448
        %v4026 = vpop.f32.mrf.mxu0
        %v4027 = vadd.f32 0.0, %v4026
        %v4028 = vpop.f32.mrf.mxu0
        %v4029 = vpop.f32.mrf.mxu0
        %v4030 = vadd.f32 0.0, %v4029
        %v4031 = vpop.f32.mrf.mxu0
        %4032 = vmatprep.mubr.bf16.mxu0 0
        %4033 = vmatmul.mubr.bf16.gmra.mxu0 %v2451
        %v4034 = vpop.f32.mrf.mxu0
        %v4035 = vadd.f32 0.0, %v4034
        %v4036 = vpop.f32.mrf.mxu0
        %v4037 = vpop.f32.mrf.mxu0
        %v4038 = vadd.f32 0.0, %v4037
        %v4039 = vpop.f32.mrf.mxu0
        %4040 = vmatprep.mubr.bf16.mxu0 0
        %4041 = vmatmul.mubr.bf16.gmra.mxu0 %v2454
        %v4042 = vpop.f32.mrf.mxu0
        %v4043 = vadd.f32 0.0, %v4042
        %v4044 = vpop.f32.mrf.mxu0
        %v4045 = vpop.f32.mrf.mxu0
        %v4046 = vadd.f32 0.0, %v4045
        %v4047 = vpop.f32.mrf.mxu0
        %4048 = vmatprep.mubr.bf16.mxu0 0
        %4049 = vmatmul.mubr.bf16.gmra.mxu0 %v2457
        %v4050 = vpop.f32.mrf.mxu0
        %v4051 = vadd.f32 0.0, %v4050
        %v4052 = vpop.f32.mrf.mxu0
        %v4053 = vpop.f32.mrf.mxu0
        %v4054 = vadd.f32 0.0, %v4053
        %v4055 = vpop.f32.mrf.mxu0
        %4056 = vmatprep.mubr.bf16.mxu0 0
        %4057 = vmatmul.mubr.bf16.gmra.mxu0 %v2460
        %v4058 = vpop.f32.mrf.mxu0
        %v4059 = vadd.f32 0.0, %v4058
        %v4060 = vpop.f32.mrf.mxu0
        %v4061 = vpop.f32.mrf.mxu0
        %v4062 = vadd.f32 0.0, %v4061
        %v4063 = vpop.f32.mrf.mxu0
        %4064 = vdwg.mxu0
        %v4065 = vadd.f32 %v3723, %v3939
        %v4066 = vadd.f32 %v3724, %v3942
        %v4067 = vadd.f32 %v3725, %v3947
        %v4068 = vadd.f32 %v3726, %v3950
        %v4069 = vadd.f32 %v3727, %v3955
        %v4070 = vadd.f32 %v3728, %v3958
        %v4071 = vadd.f32 %v3729, %v3963
        %v4072 = vadd.f32 %v3730, %v3966
        %v4073 = vadd.f32 %v3731, %v3971
        %v4074 = vadd.f32 %v3732, %v3974
        %v4075 = vadd.f32 %v3733, %v3979
        %v4076 = vadd.f32 %v3734, %v3982
        %v4077 = vadd.f32 %v3735, %v3987
        %v4078 = vadd.f32 %v3736, %v3990
        %v4079 = vadd.f32 %v3737, %v3995
        %v4080 = vadd.f32 %v3738, %v3998
        %v4081 = vadd.f32 %v3739, %v4003
        %v4082 = vadd.f32 %v3740, %v4006
        %v4083 = vadd.f32 %v3741, %v4011
        %v4084 = vadd.f32 %v3742, %v4014
        %v4085 = vadd.f32 %v3743, %v4019
        %v4086 = vadd.f32 %v3744, %v4022
        %v4087 = vadd.f32 %v3745, %v4027
        %v4088 = vadd.f32 %v3746, %v4030
        %v4089 = vadd.f32 %v3747, %v4035
        %v4090 = vadd.f32 %v3748, %v4038
        %v4091 = vadd.f32 %v3749, %v4043
        %v4092 = vadd.f32 %v3750, %v4046
        %v4093 = vadd.f32 %v3751, %v4051
        %v4094 = vadd.f32 %v3752, %v4054
        %v4095 = vadd.f32 %v3753, %v4059
        %v4096 = vadd.f32 %v3754, %v4062
        %v4097 = vadd.f32 %v4065, %v2655
        %v4098 = vadd.f32 %v4066, %v2656
        %v4099 = vadd.f32 %v4067, %v2657
        %v4100 = vadd.f32 %v4068, %v2658
        %v4101 = vadd.f32 %v4069, %v2659
        %v4102 = vadd.f32 %v4070, %v2660
        %v4103 = vadd.f32 %v4071, %v2661
        %v4104 = vadd.f32 %v4072, %v2662
        %v4105 = vadd.f32 %v4073, %v2663
        %v4106 = vadd.f32 %v4074, %v2664
        %v4107 = vadd.f32 %v4075, %v2665
        %v4108 = vadd.f32 %v4076, %v2666
        %v4109 = vadd.f32 %v4077, %v2667
        %v4110 = vadd.f32 %v4078, %v2668
        %v4111 = vadd.f32 %v4079, %v2669
        %v4112 = vadd.f32 %v4080, %v2670
        %v4113 = vadd.f32 %v4081, %v2671
        %v4114 = vadd.f32 %v4082, %v2672
        %v4115 = vadd.f32 %v4083, %v2673
        %v4116 = vadd.f32 %v4084, %v2674
        %v4117 = vadd.f32 %v4085, %v2675
        %v4118 = vadd.f32 %v4086, %v2676
        %v4119 = vadd.f32 %v4087, %v2677
        %v4120 = vadd.f32 %v4088, %v2678
        %v4121 = vadd.f32 %v4089, %v2679
        %v4122 = vadd.f32 %v4090, %v2680
        %v4123 = vadd.f32 %v4091, %v2681
        %v4124 = vadd.f32 %v4092, %v2682
        %v4125 = vadd.f32 %v4093, %v2683
        %v4126 = vadd.f32 %v4094, %v2684
        %v4127 = vadd.f32 %v4095, %v2685
        %v4128 = vadd.f32 %v4096, %v2686
        %v4129 = vld [vmem:[%s500] sm:$0xff]
        %v4130 = vpack.c.bf16 %v4098, %v4097
        %v4131 = vpack.c.bf16 %v4100, %v4099
        %v4132 = vpack.c.bf16 %v4102, %v4101
        %v4133 = vpack.c.bf16 %v4104, %v4103
        %v4134 = vpack.c.bf16 %v4106, %v4105
        %v4135 = vpack.c.bf16 %v4108, %v4107
        %v4136 = vpack.c.bf16 %v4110, %v4109
        %v4137 = vpack.c.bf16 %v4112, %v4111
        %v4138 = vpack.c.bf16 %v4114, %v4113
        %v4139 = vpack.c.bf16 %v4116, %v4115
        %v4140 = vpack.c.bf16 %v4118, %v4117
        %v4141 = vpack.c.bf16 %v4120, %v4119
        %v4142 = vpack.c.bf16 %v4122, %v4121
        %v4143 = vpack.c.bf16 %v4124, %v4123
        %v4144 = vpack.c.bf16 %v4126, %v4125
        %v4145 = vpack.c.bf16 %v4128, %v4127
        %v4147 = vunpack.c.l.b16 %v4129
        %v4148 = vunpack.c.h.b16 %v4129
        %v4149 = vpack.c.b16 %v4147, %v4147
        %v4150 = vpack.c.b16 %v4148, %v4148
        %4153 = vmatprep.subr.bf16.mxu0 0
        %4154 = vmatpush1.bf16.msra.mxu0 %v4137
        %4155 = vmatprep.subr.bf16.mxu0 0
        %4156 = vmatpush1.bf16.msra.mxu0 %v4136
        %4157 = vmatprep.subr.bf16.mxu0 0
        %4158 = vmatpush1.bf16.msra.mxu0 %v4135
        %4159 = vmatprep.subr.bf16.mxu0 0
        %4160 = vmatpush1.bf16.msra.mxu0 %v4134
        %4161 = vmatprep.subr.bf16.mxu0 0
        %4162 = vmatpush1.bf16.msra.mxu0 %v4133
        %4163 = vmatprep.subr.bf16.mxu0 0
        %4164 = vmatpush1.bf16.msra.mxu0 %v4132
        %4165 = vmatprep.subr.bf16.mxu0 0
        %4166 = vmatpush1.bf16.msra.mxu0 %v4131
        %4167 = vmatprep.subr.bf16.mxu0 0
        %4168 = vmatpush1.bf16.msra.mxu0 %v4130
        %4169 = vmatprep.subr.bf16.mxu0 0
        %4170 = vmatpush2.bf16.msra.mxu0 %v4145
        %4171 = vmatprep.subr.bf16.mxu0 0
        %4172 = vmatpush2.bf16.msra.mxu0 %v4144
        %4173 = vmatprep.subr.bf16.mxu0 0
        %4174 = vmatpush2.bf16.msra.mxu0 %v4143
        %4175 = vmatprep.subr.bf16.mxu0 0
        %4176 = vmatpush2.bf16.msra.mxu0 %v4142
        %4177 = vmatprep.subr.bf16.mxu0 0
        %4178 = vmatpush2.bf16.msra.mxu0 %v4141
        %4179 = vmatprep.subr.bf16.mxu0 0
        %4180 = vmatpush2.bf16.msra.mxu0 %v4140
        %4181 = vmatprep.subr.bf16.mxu0 0
        %4182 = vmatpush2.bf16.msra.mxu0 %v4139
        %4183 = vmatprep.subr.bf16.mxu0 0
        %4184 = vmatpush2.bf16.msra.mxu0 %v4138
        %4185 = vmatprep.mubr.bf16.mxu0 %v4150
        %4186 = vmatmul.mubr.bf16.gmra.mxu0 %v4149
        %v4187 = vpop.f32.mrf.mxu0
        %v4188 = vadd.f32 0.0, %v4187
        %v4189 = vpop.f32.mrf.mxu0
        %v4190 = vpop.f32.mrf.mxu0
        %v4191 = vpop.f32.mrf.mxu0
        %4192 = vdwg.mxu0
        %v4193 = vpack.c.bf16 %v4188, %v4188
        %v4194 = vld [vmem:[%s9] sm:$0xf]
        %v4195 = vld [vmem:[%s9 + $0x4] sm:$0xf]
        %v4196 = vld [vmem:[%s9 + $0x8] sm:$0xf]
        %v4197 = vld [vmem:[%s9 + $0xc] sm:$0xf]
        %v4198 = vld [vmem:[%s10] sm:$0x1]
        %v4200 = vlaneseq
        %v4201 = vshrl.u32 %v4200, 7
        %v4202 = vsub.s32 0, %v4201
        %v4203 = vrot.slane %v4198, %v4202
        %v4209 = vunpack.c.l.b16 %v4194
        %v4210 = vunpack.c.l.b16 %v4195
        %v4211 = vunpack.c.l.b16 %v4196
        %v4212 = vunpack.c.l.b16 %v4197
        %v4213 = vpack.c.b16 %v4210, %v4209
        %v4214 = vpack.c.b16 %v4212, %v4211
        %v4218 = vsel %vm967, %v4193, 0
        %4220 = vmatprep.subr.bf16.mxu0 0
        %4221 = vmatpush1.bf16.msra.mxu0 0
        %4222 = vmatprep.subr.bf16.mxu0 0
        %4223 = vmatpush1.bf16.msra.mxu0 0
        %4224 = vmatprep.subr.bf16.mxu0 0
        %4225 = vmatpush1.bf16.msra.mxu0 0
        %4226 = vmatprep.subr.bf16.mxu0 0
        %4227 = vmatpush1.bf16.msra.mxu0 0
        %4228 = vmatprep.subr.bf16.mxu0 0
        %4229 = vmatpush1.bf16.msra.mxu0 0
        %4230 = vmatprep.subr.bf16.mxu0 0
        %4231 = vmatpush1.bf16.msra.mxu0 0
        %4232 = vmatprep.subr.bf16.mxu0 0
        %4233 = vmatpush1.bf16.msra.mxu0 %v4214
        %4234 = vmatprep.subr.bf16.mxu0 0
        %4235 = vmatpush1.bf16.msra.mxu0 %v4213
        %4236 = vmatprep.subr.bf16.mxu0 0
        %4237 = vmatpush2.bf16.msra.mxu0 0
        %4238 = vmatprep.subr.bf16.mxu0 0
        %4239 = vmatpush2.bf16.msra.mxu0 0
        %4240 = vmatprep.subr.bf16.mxu0 0
        %4241 = vmatpush2.bf16.msra.mxu0 0
        %4242 = vmatprep.subr.bf16.mxu0 0
        %4243 = vmatpush2.bf16.msra.mxu0 0
        %4244 = vmatprep.subr.bf16.mxu0 0
        %4245 = vmatpush2.bf16.msra.mxu0 0
        %4246 = vmatprep.subr.bf16.mxu0 0
        %4247 = vmatpush2.bf16.msra.mxu0 0
        %4248 = vmatprep.subr.bf16.mxu0 0
        %4249 = vmatpush2.bf16.msra.mxu0 0
        %4250 = vmatprep.subr.bf16.mxu0 0
        %4251 = vmatpush2.bf16.msra.mxu0 0
        %4252 = vmatprep.mubr.bf16.mxu0 0
        %4253 = vmatmul.mubr.bf16.gmra.mxu0 %v4218
        %v4254 = vpop.f32.mrf.mxu0
        %v4255 = vadd.f32 %v4203, %v4254
        %v4256 = vpop.f32.mrf.mxu0
        %v4257 = vpop.f32.mrf.mxu0
        %v4258 = vpop.f32.mrf.mxu0
        %4259 = vdwg.mxu0
        %4260 = vst [vmem:[%s463] sm:$0xff] %v4255
        %s4261 = sand.u32 %s294, 1
        %s4262 = scalar_lea.sflag [#allocation3], %s4261
        %s4263 = sand.u32 %s294, 1
        %s4264 = smul.addr %s4263, 8
        %s4265 = scalar_lea.vmem [#allocation2], %s4264
        // Predicated region
        $region65: #{tpu_custom_call.1} parent=63 // pred_check
          %p4266 = pneg %p304
        $region66: #{tpu_custom_call.1} parent=63 // pred_check_branch
          %4268 = sbr.rel (%p4266) target = $region68
        $region67: #{tpu_custom_call.1} parent=63 // pred_region
          %s4270 = ssub.s32 128, 128
          %4271 = vsyncadd %s4262, %s4270
          %s4272 = smul.addr %s25, 128
          %s4273 = scalar_lea.hbm %s11, %s4272
          %s4275 = sshll.u32 %s4265, 4
          %s4276 = int_to_ptr.vmem [resolvable:$true] %s4275
          %4278 = dma.vmem_to_hbm [thread:$0]  %s4276, 128, %s4273, %s4262
        $region68: #{tpu_custom_call.1} parent=63 // pred_fallthru
          _
      $region64: #{tpu_custom_call.1} parent=5 // pred_fallthru
        _
      %p4279 = scmp.le.s32.totalorder 2, %s20
      // Predicated region
      $region69: #{tpu_custom_call.1} parent=5 // pred_check
        %p4280 = pneg %p4279
      $region70: #{tpu_custom_call.1} parent=5 // pred_check_branch
        %4282 = sbr.rel (%p4280) target = $region72
      $region71: #{tpu_custom_call.1} parent=5 // pred_region
        %s4283 = ssub.s32 %s20, 2
        // Predicated region
        $region73: #{tpu_custom_call.1} parent=71 // pred_check
          %p4284 = pneg %p310
        $region74: #{tpu_custom_call.1} parent=71 // pred_check_branch
          %4286 = sbr.rel (%p4284) target = $region76
        $region75: #{tpu_custom_call.1} parent=71 // pred_region
          %s4287 = sand.u32 %s295, 1
          %s4288 = scalar_lea.sflag [#allocation3], %s4287
          %s4289 = sand.u32 %s295, 1
          %s4290 = smul.addr %s4289, 8
          %s4291 = scalar_lea.vmem [#allocation2], %s4290
          %4292 = dma.done %s4288, 128
        $region76: #{tpu_custom_call.1} parent=71 // pred_fallthru
          _
      $region72: #{tpu_custom_call.1} parent=5 // pred_fallthru
        _
    $region6: #{tpu_custom_call.1} parent=1 // loop_footer
      %s24 = sadd.s32 1, %s20
    $region7: #{tpu_custom_call.1} parent=1 // loop_footer_branch
      %19 = sbr.rel target = $region3
    $region8: #{tpu_custom_call.1} parent=1 // loop_exit
      _
    %4293 = vsyncpa [#allocation3], 1
    %s4294 = scalar_lea.sflag [#allocation3], 1
    %4295 = vsyncpa %s4294, 1

</llo_original>
